<compile_context>
chip_gen: v7x
topology: tpu7x:2x2x1
jax: 0.10.0
libtpu: 0.0.40
codegen_flags: <defaults>
</compile_context>

<pallas_src>
import functools

import jax
import jax.numpy as jnp
from jax.experimental import pallas as pl
from jax.experimental.pallas import tpu as pltpu

BN_EPS = 1e-5


def _round_up(x, m):
    return (x + m - 1) // m * m


def _pad2(x, r, c):
    return jnp.pad(x, ((0, r - x.shape[0]), (0, c - x.shape[1])))


# ----------------------------------------------------------------------------
# Fused Pallas kernel: full forward pass in one invocation (grid=()).
# All operands are single full-array VMEM blocks; 1/N is an SMEM scalar.
# ----------------------------------------------------------------------------

def _fused_kernel(scal_ref,
                  a_ref, dinva_ref, c_ref, dinvc_ref,
                  x0_ref, mask_ref, p_ref, pinv_ref,
                  convw_ref, convb_ref, bng_ref, bnb_ref,
                  conv2w_ref, conv2b_ref, bn2g_ref, bn2b_ref,
                  w1_ref, b1_ref, w2_ref, b2_ref, w3_ref, b3_ref,
                  o_ref, *, n_layer):
    inv_n = scal_ref[0]                       # 1 / (#real nodes), SMEM scalar
    x0 = x0_ref[...]                          # [Np, Hp] f32
    # Hoisted once (JAX does not CSE broadcast_in_dim inside the unrolled loop).
    mask_b = jnp.broadcast_to(mask_ref[...], x0.shape)      # [Np, Hp] f32

    def gcn_bn_relu_res(adj, dinv, x, w, b, gamma, beta):
        # GCNConv:  D^-1/2 (A+I) D^-1/2 (X W) + bias.
        # adj is the exact 0/1 (A+I) in bf16; D^-1/2 is folded in here as two
        # cheap row-scalings, so the adjacency carries no bf16 rounding error.
        xw = jnp.dot(x.astype(jnp.bfloat16), w,
                     preferred_element_type=jnp.float32)
        xw = xw * dinv
        h = jnp.dot(adj, xw.astype(jnp.bfloat16),
                    preferred_element_type=jnp.float32)
        h = h * dinv + b
        # NOTE: padded node rows hold h == bias here (nonzero!). They are
        # excluded from BN stats via mask_b and from pooling via zero P
        # columns; any future row-reduction must keep using the mask.
        # Two-pass masked BatchNorm (training-mode batch stats, biased var).
        mean = jnp.sum(h * mask_b, axis=0, keepdims=True) * inv_n
        cen = (h - mean) * mask_b
        var = jnp.sum(cen * cen, axis=0, keepdims=True) * inv_n
        scale = gamma * jax.lax.rsqrt(var + BN_EPS)
        hn = (h - mean) * scale + beta
        # ReLU + residual (dropout p = 0 -> identity).
        return jnp.maximum(hn, 0.0) + x

    # ---- main GCN stack over edge_index (unrolled, activations stay in VMEM)
    x = x0
    for i in range(n_layer):
        x = gcn_bn_relu_res(a_ref[...], dinva_ref[...], x,
                            convw_ref[i], convb_ref[i], bng_ref[i], bnb_ref[i])
    xa = x

    # ---- cycle-index branch (1 layer) from x0
    xb = gcn_bn_relu_res(c_ref[...], dinvc_ref[...], x0,
                         conv2w_ref[...], conv2b_ref[...],
                         bn2g_ref[...], bn2b_ref[...])

    # ---- fused mean-pool + MLP head:
    # pool cat(xa, xb) with ONE matmul (both halves are 128-lane aligned),
    # then lin1 with the full [2Hp, Hp] weight.
    cat = jnp.concatenate([xa, xb], axis=1)                  # [Np, 2Hp] f32
    pooled = jnp.dot(p_ref[...], cat.astype(jnp.bfloat16),
                     preferred_element_type=jnp.float32) * pinv_ref[...]
    h1 = jnp.maximum(
        jnp.dot(pooled.astype(jnp.bfloat16), w1_ref[...],
                preferred_element_type=jnp.float32) + b1_ref[...], 0.0)
    h2 = jnp.maximum(
        jnp.dot(h1.astype(jnp.bfloat16), w2_ref[...],
                preferred_element_type=jnp.float32) + b2_ref[...], 0.0)
    o_ref[...] = (jnp.dot(h2.astype(jnp.bfloat16), w3_ref[...],
                          preferred_element_type=jnp.float32) + b3_ref[...])


# ----------------------------------------------------------------------------
# pallas_call plumbing (no grid -> single invocation, no pipeline buffers)
# ----------------------------------------------------------------------------

def _fused_call(scal, inputs, out_shape, n_layer, vmem_limit_bytes):
    kernel = functools.partial(_fused_kernel, n_layer=n_layer)
    in_specs = ([pl.BlockSpec(memory_space=pltpu.MemorySpace.SMEM)]
                + [pl.BlockSpec(memory_space=pltpu.MemorySpace.VMEM)
                   for _ in inputs])
    return pl.pallas_call(
        kernel,
        in_specs=in_specs,
        out_specs=pl.BlockSpec(memory_space=pltpu.MemorySpace.VMEM),
        out_shape=out_shape,
        compiler_params=pltpu.CompilerParams(
            vmem_limit_bytes=int(vmem_limit_bytes)),
    )(scal, *inputs)


# ----------------------------------------------------------------------------
# Plain-JAX glue (graph -> dense operands built directly at padded size)
# ----------------------------------------------------------------------------

def build_adjacency(edge_index, n, n_pad):
    """Exact 0/1 (A + I) adjacency in bf16 at padded size, plus D^-1/2 (f32)."""
    A = jnp.zeros((n_pad, n_pad), jnp.bfloat16)
    A = A.at[edge_index[0], edge_index[1]].set(1.0)
    A = jnp.maximum(A, A.T)                               # undirected
    A = A.at[jnp.arange(n), jnp.arange(n)].set(1.0)       # self loops
    deg = jnp.sum(A.astype(jnp.float32), axis=1, keepdims=True)   # [n_pad, 1]
    dinv = jnp.where(deg > 0, jax.lax.rsqrt(deg), 0.0)
    return A, dinv


def build_pool(batch, num_graphs, n, n_pad, g_pad):
    """Exact 0/1 membership matrix in bf16 at padded size, plus 1/count (f32)."""
    onehot = (batch[None, :] == jnp.arange(num_graphs)[:, None]).astype(jnp.bfloat16)
    P = jnp.zeros((g_pad, n_pad), jnp.bfloat16).at[:num_graphs, :n].set(onehot)
    counts = jnp.sum(P.astype(jnp.float32), axis=1, keepdims=True)
    pinv = jnp.where(counts > 0, 1.0 / counts, 0.0)
    return P, pinv


def init_params(key, hidden, out_dim, n_layer, num_feat, vocab):
    ks = jax.random.split(key, 6 + n_layer)

    def w(k, shape, scale=0.1):
        return scale * jax.random.normal(k, shape, jnp.float32)

    p = {}
    p["emb"] = w(ks[0], (num_feat * vocab, hidden))        # stacked AtomEncoder tables
    p["conv_w"] = [w(ks[1 + i], (hidden, hidden)) for i in range(n_layer)]
    p["conv_b"] = [jnp.zeros((1, hidden), jnp.float32) for _ in range(n_layer)]
    p["bn_g"] = [jnp.ones((1, hidden), jnp.float32) for _ in range(n_layer)]
    p["bn_b"] = [jnp.zeros((1, hidden), jnp.float32) for _ in range(n_layer)]
    p["conv2_w"] = w(ks[1 + n_layer], (hidden, hidden))
    p["conv2_b"] = jnp.zeros((1, hidden), jnp.float32)
    p["bn2_g"] = jnp.ones((1, hidden), jnp.float32)
    p["bn2_b"] = jnp.zeros((1, hidden), jnp.float32)
    p["w1"] = w(ks[2 + n_layer], (2 * hidden, hidden))
    p["b1"] = jnp.zeros((1, hidden), jnp.float32)
    p["w2"] = w(ks[3 + n_layer], (hidden, hidden))
    p["b2"] = jnp.zeros((1, hidden), jnp.float32)
    p["w3"] = w(ks[4 + n_layer], (hidden, out_dim))
    p["b3"] = jnp.zeros((1, out_dim), jnp.float32)
    return p


def pack_params(p, hidden, out_dim):
    """Pad params to lane-dense (128-multiple) shapes, cast weights to bf16.

    NOTE: BN gamma / conv bias must be ZERO-padded (as done here) so padded
    hidden lanes stay exactly zero through the residual stream.
    """
    Hp = _round_up(hidden, 128)
    Op = _round_up(out_dim, 128)

    def pad_w(w):
        return _pad2(w, Hp, Hp).astype(jnp.bfloat16)

    def pad_v(v):
        return _pad2(v, 1, Hp)

    # lin1 weight kept as a single [2Hp, Hp] matrix (each half padded to Hp rows)
    w1_full = jnp.concatenate(
        [_pad2(p["w1"][:hidden], Hp, Hp), _pad2(p["w1"][hidden:], Hp, Hp)],
        axis=0).astype(jnp.bfloat16)

    packed = {
        "conv_w": jnp.stack([pad_w(w) for w in p["conv_w"]]),   # [NL, Hp, Hp] bf16
        "conv_b": jnp.stack([pad_v(b) for b in p["conv_b"]]),   # [NL, 1, Hp]  f32
        "bn_g": jnp.stack([pad_v(g) for g in p["bn_g"]]),
        "bn_b": jnp.stack([pad_v(b) for b in p["bn_b"]]),
        "conv2_w": pad_w(p["conv2_w"]),
        "conv2_b": pad_v(p["conv2_b"]),
        "bn2_g": pad_v(p["bn2_g"]),
        "bn2_b": pad_v(p["bn2_b"]),
        "w1": w1_full,                                          # [2Hp, Hp] bf16
        "b1": pad_v(p["b1"]),
        "w2": pad_w(p["w2"]),
        "b2": pad_v(p["b2"]),
        "w3": _pad2(p["w3"], Hp, Op).astype(jnp.bfloat16),
        "b3": _pad2(p["b3"], 1, Op),
        "emb": p["emb"],                                        # f32, wrapper gather
    }
    return packed, Hp, Op


def forward(packed, x_feat, edge_index, cycle_index, batch, num_graphs,
            hidden, out_dim):
    N, F = x_feat.shape
    H = hidden
    Hp = packed["conv2_w"].shape[1]
    Op = packed["w3"].shape[1]
    NL = packed["conv_w"].shape[0]
    vocab = packed["emb"].shape[0] // F

    # Lane-dense layout: node dim padded to 128 (lane dim of A/C/P and the MXU
    # contraction dim); graph rows of the bf16 pooling matrix padded to 16.
    Np = _round_up(N, 128)
    Gp = _round_up(num_graphs, 16)

    # AtomEncoder: sum_j Emb_j(x[:, j])  -- plain embedding gather (no one-hot).
    idx = x_feat + jnp.arange(F, dtype=x_feat.dtype)[None, :] * vocab
    x0 = jnp.take(packed["emb"], idx.reshape(-1), axis=0).reshape(N, F, H)
    x0 = x0.sum(axis=1)                                          # [N, H] f32

    # Exact 0/1 operands built directly at padded bf16 size; normalization
    # vectors folded inside the kernel.
    A, dinv_a = build_adjacency(edge_index, N, Np)
    C, dinv_c = build_adjacency(cycle_index, N, Np)
    P, pinv = build_pool(batch, num_graphs, N, Np, Gp)

    x0_pad = _pad2(x0, Np, Hp)                                   # f32
    mask = _pad2(jnp.ones((N, 1), jnp.float32), Np, 1)           # real-node mask
    scal = jnp.array([1.0 / float(N)], jnp.float32)              # SMEM scalar

    inputs = [
        A, dinv_a, C, dinv_c, x0_pad, mask, P, pinv,
        packed["conv_w"], packed["conv_b"], packed["bn_g"], packed["bn_b"],
        packed["conv2_w"], packed["conv2_b"], packed["bn2_g"], packed["bn2_b"],
        packed["w1"], packed["b1"], packed["w2"], packed["b2"],
        packed["w3"], packed["b3"],
    ]

    # Explicit VMEM budget from the real operand + activation footprint.
    in_bytes = sum(int(x.size) * x.dtype.itemsize for x in inputs)
    out_bytes = Gp * Op * 4
    act_bytes = 8 * Np * Hp * 4 + Np * 2 * Hp * 4                # f32 temporaries
    vmem_limit = min(64 * 2 ** 20,
                     max(16 * 2 ** 20, 2 * (in_bytes + out_bytes + act_bytes)))

    out_pad = _fused_call(
        scal, inputs,
        jax.ShapeDtypeStruct((Gp, Op), jnp.float32),
        n_layer=int(NL),
        vmem_limit_bytes=vmem_limit,
    )
    return out_pad[:num_graphs, :out_dim]


if __name__ == "__main__":
    H, OUT, N, G, F, VOCAB, NL = 32, 8, 32, 2, 3, 16, 3
    key = jax.random.PRNGKey(0)
    k_feat, k_e, k_c, k_p = jax.random.split(key, 4)

    x_feat = jax.random.randint(k_feat, (N, F), 0, VOCAB)          # atom features (int)
    edge_index = jax.random.randint(k_e, (2, 64), 0, N)            # graph edges
    cycle_index = jax.random.randint(k_c, (2, 24), 0, N)           # cycle edges
    batch = jnp.repeat(jnp.arange(G), N // G)                      # graph assignment

    params = init_params(k_p, H, OUT, NL, F, VOCAB)
    packed, _, _ = pack_params(params, H, OUT)

    out = forward(packed, x_feat, edge_index, cycle_index, batch, G, H, OUT)
    out = jax.block_until_ready(out)
    assert out.shape == (G, OUT) and out.dtype == jnp.float32
    assert bool(jnp.all(jnp.isfinite(out)))
    print("KERNEL_OK")
</pallas_src>

<mosaic_0001>
module attributes {stable_mosaic.version = 11 : i64} {
  func.func @_fused_kernel(%arg0: memref<1xf32, #tpu.memory_space<smem>>, %arg1: memref<128x128xbf16, #tpu.memory_space<vmem>>, %arg2: memref<128x1xf32, #tpu.memory_space<vmem>>, %arg3: memref<128x128xbf16, #tpu.memory_space<vmem>>, %arg4: memref<128x1xf32, #tpu.memory_space<vmem>>, %arg5: memref<128x128xf32, #tpu.memory_space<vmem>>, %arg6: memref<128x1xf32, #tpu.memory_space<vmem>>, %arg7: memref<16x128xbf16, #tpu.memory_space<vmem>>, %arg8: memref<16x1xf32, #tpu.memory_space<vmem>>, %arg9: memref<3x128x128xbf16, #tpu.memory_space<vmem>>, %arg10: memref<3x1x128xf32, #tpu.memory_space<vmem>>, %arg11: memref<3x1x128xf32, #tpu.memory_space<vmem>>, %arg12: memref<3x1x128xf32, #tpu.memory_space<vmem>>, %arg13: memref<128x128xbf16, #tpu.memory_space<vmem>>, %arg14: memref<1x128xf32, #tpu.memory_space<vmem>>, %arg15: memref<1x128xf32, #tpu.memory_space<vmem>>, %arg16: memref<1x128xf32, #tpu.memory_space<vmem>>, %arg17: memref<256x128xbf16, #tpu.memory_space<vmem>>, %arg18: memref<1x128xf32, #tpu.memory_space<vmem>>, %arg19: memref<128x128xbf16, #tpu.memory_space<vmem>>, %arg20: memref<1x128xf32, #tpu.memory_space<vmem>>, %arg21: memref<128x128xbf16, #tpu.memory_space<vmem>>, %arg22: memref<1x128xf32, #tpu.memory_space<vmem>>, %arg23: memref<16x128xf32, #tpu.memory_space<vmem>>) attributes {dimension_semantics = [], scalar_prefetch = 0 : i64, scratch_operands = 0 : i64, tpu.core_type = #tpu.core_type<tc>} {
    %c0 = arith.constant 0 : index
    %0 = memref.load %arg0[%c0] : memref<1xf32, #tpu.memory_space<smem>>
    %c0_0 = arith.constant 0 : index
    %c0_1 = arith.constant 0 : index
    %1 = vector.load %arg5[%c0_0, %c0_1] : memref<128x128xf32, #tpu.memory_space<vmem>>, vector<128x128xf32>
    %c0_2 = arith.constant 0 : index
    %c0_3 = arith.constant 0 : index
    %2 = vector.load %arg6[%c0_2, %c0_3] : memref<128x1xf32, #tpu.memory_space<vmem>>, vector<128x1xf32>
    %3 = vector.shape_cast %2 : vector<128x1xf32> to vector<128x1xf32>
    %4 = vector.broadcast %3 : vector<128x1xf32> to vector<128x128xf32>
    %c0_4 = arith.constant 0 : index
    %c0_5 = arith.constant 0 : index
    %5 = vector.load %arg1[%c0_4, %c0_5] : memref<128x128xbf16, #tpu.memory_space<vmem>>, vector<128x128xbf16>
    %c0_6 = arith.constant 0 : index
    %c0_7 = arith.constant 0 : index
    %6 = vector.load %arg2[%c0_6, %c0_7] : memref<128x1xf32, #tpu.memory_space<vmem>>, vector<128x1xf32>
    %c0_8 = arith.constant 0 : index
    %c0_9 = arith.constant 0 : index
    %c0_10 = arith.constant 0 : index
    %7 = vector.load %arg9[%c0_8, %c0_9, %c0_10] : memref<3x128x128xbf16, #tpu.memory_space<vmem>>, vector<1x128x128xbf16>
    %8 = vector.shape_cast %7 : vector<1x128x128xbf16> to vector<128x128xbf16>
    %c0_11 = arith.constant 0 : index
    %c0_12 = arith.constant 0 : index
    %c0_13 = arith.constant 0 : index
    %9 = vector.load %arg10[%c0_11, %c0_12, %c0_13] : memref<3x1x128xf32, #tpu.memory_space<vmem>>, vector<1x1x128xf32>
    %10 = vector.shape_cast %9 : vector<1x1x128xf32> to vector<1x128xf32>
    %c0_14 = arith.constant 0 : index
    %c0_15 = arith.constant 0 : index
    %c0_16 = arith.constant 0 : index
    %11 = vector.load %arg11[%c0_14, %c0_15, %c0_16] : memref<3x1x128xf32, #tpu.memory_space<vmem>>, vector<1x1x128xf32>
    %12 = vector.shape_cast %11 : vector<1x1x128xf32> to vector<1x128xf32>
    %c0_17 = arith.constant 0 : index
    %c0_18 = arith.constant 0 : index
    %c0_19 = arith.constant 0 : index
    %13 = vector.load %arg12[%c0_17, %c0_18, %c0_19] : memref<3x1x128xf32, #tpu.memory_space<vmem>>, vector<1x1x128xf32>
    %14 = vector.shape_cast %13 : vector<1x1x128xf32> to vector<1x128xf32>
    %15 = arith.truncf %1 : vector<128x128xf32> to vector<128x128xbf16>
    %cst = arith.constant dense<0.000000e+00> : vector<128x128xf32>
    %16 = tpu.matmul %15, %8, %cst {dimension_numbers = #tpu.dot_dimension_numbers<[1], [0], [0], [1], [0, 0, 1, 1], [], []>} : vector<128x128xbf16>, vector<128x128xbf16>, vector<128x128xf32> -> vector<128x128xf32>
    %17 = vector.broadcast %6 : vector<128x1xf32> to vector<128x128xf32>
    %18 = arith.mulf %16, %17 : vector<128x128xf32>
    %19 = arith.truncf %18 : vector<128x128xf32> to vector<128x128xbf16>
    %cst_20 = arith.constant dense<0.000000e+00> : vector<128x128xf32>
    %20 = tpu.matmul %5, %19, %cst_20 {dimension_numbers = #tpu.dot_dimension_numbers<[1], [0], [0], [1], [0, 0, 1, 1], [], []>} : vector<128x128xbf16>, vector<128x128xbf16>, vector<128x128xf32> -> vector<128x128xf32>
    %21 = vector.broadcast %6 : vector<128x1xf32> to vector<128x128xf32>
    %22 = arith.mulf %20, %21 : vector<128x128xf32>
    %23 = vector.broadcast %10 : vector<1x128xf32> to vector<128x128xf32>
    %24 = arith.addf %22, %23 : vector<128x128xf32>
    %25 = arith.mulf %24, %4 : vector<128x128xf32>
    %cst_21 = arith.constant dense<0.000000e+00> : vector<128xf32>
    %26 = vector.multi_reduction <add>, %25, %cst_21 [0] : vector<128x128xf32> to vector<128xf32>
    %27 = vector.shape_cast %26 : vector<128xf32> to vector<1x128xf32>
    %28 = vector.broadcast %0 : f32 to vector<1x128xf32>
    %29 = arith.mulf %27, %28 : vector<1x128xf32>
    %30 = vector.broadcast %29 : vector<1x128xf32> to vector<128x128xf32>
    %31 = arith.subf %24, %30 : vector<128x128xf32>
    %32 = arith.mulf %31, %4 : vector<128x128xf32>
    %33 = arith.mulf %32, %32 : vector<128x128xf32>
    %cst_22 = arith.constant dense<0.000000e+00> : vector<128xf32>
    %34 = vector.multi_reduction <add>, %33, %cst_22 [0] : vector<128x128xf32> to vector<128xf32>
    %35 = vector.shape_cast %34 : vector<128xf32> to vector<1x128xf32>
    %36 = vector.broadcast %0 : f32 to vector<1x128xf32>
    %37 = arith.mulf %35, %36 : vector<1x128xf32>
    %cst_23 = arith.constant 9.99999974E-6 : f32
    %38 = vector.broadcast %cst_23 : f32 to vector<1x128xf32>
    %39 = arith.addf %37, %38 : vector<1x128xf32>
    %40 = math.rsqrt %39 : vector<1x128xf32>
    %41 = arith.mulf %12, %40 : vector<1x128xf32>
    %42 = vector.broadcast %29 : vector<1x128xf32> to vector<128x128xf32>
    %43 = arith.subf %24, %42 : vector<128x128xf32>
    %44 = vector.broadcast %41 : vector<1x128xf32> to vector<128x128xf32>
    %45 = arith.mulf %43, %44 : vector<128x128xf32>
    %46 = vector.broadcast %14 : vector<1x128xf32> to vector<128x128xf32>
    %47 = arith.addf %45, %46 : vector<128x128xf32>
    %cst_24 = arith.constant 0.000000e+00 : f32
    %48 = vector.broadcast %cst_24 : f32 to vector<128x128xf32>
    %49 = arith.maximumf %47, %48 : vector<128x128xf32>
    %50 = arith.addf %49, %1 : vector<128x128xf32>
    %c0_25 = arith.constant 0 : index
    %c0_26 = arith.constant 0 : index
    %51 = vector.load %arg1[%c0_25, %c0_26] : memref<128x128xbf16, #tpu.memory_space<vmem>>, vector<128x128xbf16>
    %c0_27 = arith.constant 0 : index
    %c0_28 = arith.constant 0 : index
    %52 = vector.load %arg2[%c0_27, %c0_28] : memref<128x1xf32, #tpu.memory_space<vmem>>, vector<128x1xf32>
    %c1 = arith.constant 1 : index
    %c0_29 = arith.constant 0 : index
    %c0_30 = arith.constant 0 : index
    %53 = vector.load %arg9[%c1, %c0_29, %c0_30] : memref<3x128x128xbf16, #tpu.memory_space<vmem>>, vector<1x128x128xbf16>
    %54 = vector.shape_cast %53 : vector<1x128x128xbf16> to vector<128x128xbf16>
    %c1_31 = arith.constant 1 : index
    %c0_32 = arith.constant 0 : index
    %c0_33 = arith.constant 0 : index
    %55 = vector.load %arg10[%c1_31, %c0_32, %c0_33] : memref<3x1x128xf32, #tpu.memory_space<vmem>>, vector<1x1x128xf32>
    %56 = vector.shape_cast %55 : vector<1x1x128xf32> to vector<1x128xf32>
    %c1_34 = arith.constant 1 : index
    %c0_35 = arith.constant 0 : index
    %c0_36 = arith.constant 0 : index
    %57 = vector.load %arg11[%c1_34, %c0_35, %c0_36] : memref<3x1x128xf32, #tpu.memory_space<vmem>>, vector<1x1x128xf32>
    %58 = vector.shape_cast %57 : vector<1x1x128xf32> to vector<1x128xf32>
    %c1_37 = arith.constant 1 : index
    %c0_38 = arith.constant 0 : index
    %c0_39 = arith.constant 0 : index
    %59 = vector.load %arg12[%c1_37, %c0_38, %c0_39] : memref<3x1x128xf32, #tpu.memory_space<vmem>>, vector<1x1x128xf32>
    %60 = vector.shape_cast %59 : vector<1x1x128xf32> to vector<1x128xf32>
    %61 = arith.truncf %50 : vector<128x128xf32> to vector<128x128xbf16>
    %cst_40 = arith.constant dense<0.000000e+00> : vector<128x128xf32>
    %62 = tpu.matmul %61, %54, %cst_40 {dimension_numbers = #tpu.dot_dimension_numbers<[1], [0], [0], [1], [0, 0, 1, 1], [], []>} : vector<128x128xbf16>, vector<128x128xbf16>, vector<128x128xf32> -> vector<128x128xf32>
    %63 = vector.broadcast %52 : vector<128x1xf32> to vector<128x128xf32>
    %64 = arith.mulf %62, %63 : vector<128x128xf32>
    %65 = arith.truncf %64 : vector<128x128xf32> to vector<128x128xbf16>
    %cst_41 = arith.constant dense<0.000000e+00> : vector<128x128xf32>
    %66 = tpu.matmul %51, %65, %cst_41 {dimension_numbers = #tpu.dot_dimension_numbers<[1], [0], [0], [1], [0, 0, 1, 1], [], []>} : vector<128x128xbf16>, vector<128x128xbf16>, vector<128x128xf32> -> vector<128x128xf32>
    %67 = vector.broadcast %52 : vector<128x1xf32> to vector<128x128xf32>
    %68 = arith.mulf %66, %67 : vector<128x128xf32>
    %69 = vector.broadcast %56 : vector<1x128xf32> to vector<128x128xf32>
    %70 = arith.addf %68, %69 : vector<128x128xf32>
    %71 = arith.mulf %70, %4 : vector<128x128xf32>
    %cst_42 = arith.constant dense<0.000000e+00> : vector<128xf32>
    %72 = vector.multi_reduction <add>, %71, %cst_42 [0] : vector<128x128xf32> to vector<128xf32>
    %73 = vector.shape_cast %72 : vector<128xf32> to vector<1x128xf32>
    %74 = vector.broadcast %0 : f32 to vector<1x128xf32>
    %75 = arith.mulf %73, %74 : vector<1x128xf32>
    %76 = vector.broadcast %75 : vector<1x128xf32> to vector<128x128xf32>
    %77 = arith.subf %70, %76 : vector<128x128xf32>
    %78 = arith.mulf %77, %4 : vector<128x128xf32>
    %79 = arith.mulf %78, %78 : vector<128x128xf32>
    %cst_43 = arith.constant dense<0.000000e+00> : vector<128xf32>
    %80 = vector.multi_reduction <add>, %79, %cst_43 [0] : vector<128x128xf32> to vector<128xf32>
    %81 = vector.shape_cast %80 : vector<128xf32> to vector<1x128xf32>
    %82 = vector.broadcast %0 : f32 to vector<1x128xf32>
    %83 = arith.mulf %81, %82 : vector<1x128xf32>
    %cst_44 = arith.constant 9.99999974E-6 : f32
    %84 = vector.broadcast %cst_44 : f32 to vector<1x128xf32>
    %85 = arith.addf %83, %84 : vector<1x128xf32>
    %86 = math.rsqrt %85 : vector<1x128xf32>
    %87 = arith.mulf %58, %86 : vector<1x128xf32>
    %88 = vector.broadcast %75 : vector<1x128xf32> to vector<128x128xf32>
    %89 = arith.subf %70, %88 : vector<128x128xf32>
    %90 = vector.broadcast %87 : vector<1x128xf32> to vector<128x128xf32>
    %91 = arith.mulf %89, %90 : vector<128x128xf32>
    %92 = vector.broadcast %60 : vector<1x128xf32> to vector<128x128xf32>
    %93 = arith.addf %91, %92 : vector<128x128xf32>
    %cst_45 = arith.constant 0.000000e+00 : f32
    %94 = vector.broadcast %cst_45 : f32 to vector<128x128xf32>
    %95 = arith.maximumf %93, %94 : vector<128x128xf32>
    %96 = arith.addf %95, %50 : vector<128x128xf32>
    %c0_46 = arith.constant 0 : index
    %c0_47 = arith.constant 0 : index
    %97 = vector.load %arg1[%c0_46, %c0_47] : memref<128x128xbf16, #tpu.memory_space<vmem>>, vector<128x128xbf16>
    %c0_48 = arith.constant 0 : index
    %c0_49 = arith.constant 0 : index
    %98 = vector.load %arg2[%c0_48, %c0_49] : memref<128x1xf32, #tpu.memory_space<vmem>>, vector<128x1xf32>
    %c2 = arith.constant 2 : index
    %c0_50 = arith.constant 0 : index
    %c0_51 = arith.constant 0 : index
    %99 = vector.load %arg9[%c2, %c0_50, %c0_51] : memref<3x128x128xbf16, #tpu.memory_space<vmem>>, vector<1x128x128xbf16>
    %100 = vector.shape_cast %99 : vector<1x128x128xbf16> to vector<128x128xbf16>
    %c2_52 = arith.constant 2 : index
    %c0_53 = arith.constant 0 : index
    %c0_54 = arith.constant 0 : index
    %101 = vector.load %arg10[%c2_52, %c0_53, %c0_54] : memref<3x1x128xf32, #tpu.memory_space<vmem>>, vector<1x1x128xf32>
    %102 = vector.shape_cast %101 : vector<1x1x128xf32> to vector<1x128xf32>
    %c2_55 = arith.constant 2 : index
    %c0_56 = arith.constant 0 : index
    %c0_57 = arith.constant 0 : index
    %103 = vector.load %arg11[%c2_55, %c0_56, %c0_57] : memref<3x1x128xf32, #tpu.memory_space<vmem>>, vector<1x1x128xf32>
    %104 = vector.shape_cast %103 : vector<1x1x128xf32> to vector<1x128xf32>
    %c2_58 = arith.constant 2 : index
    %c0_59 = arith.constant 0 : index
    %c0_60 = arith.constant 0 : index
    %105 = vector.load %arg12[%c2_58, %c0_59, %c0_60] : memref<3x1x128xf32, #tpu.memory_space<vmem>>, vector<1x1x128xf32>
    %106 = vector.shape_cast %105 : vector<1x1x128xf32> to vector<1x128xf32>
    %107 = arith.truncf %96 : vector<128x128xf32> to vector<128x128xbf16>
    %cst_61 = arith.constant dense<0.000000e+00> : vector<128x128xf32>
    %108 = tpu.matmul %107, %100, %cst_61 {dimension_numbers = #tpu.dot_dimension_numbers<[1], [0], [0], [1], [0, 0, 1, 1], [], []>} : vector<128x128xbf16>, vector<128x128xbf16>, vector<128x128xf32> -> vector<128x128xf32>
    %109 = vector.broadcast %98 : vector<128x1xf32> to vector<128x128xf32>
    %110 = arith.mulf %108, %109 : vector<128x128xf32>
    %111 = arith.truncf %110 : vector<128x128xf32> to vector<128x128xbf16>
    %cst_62 = arith.constant dense<0.000000e+00> : vector<128x128xf32>
    %112 = tpu.matmul %97, %111, %cst_62 {dimension_numbers = #tpu.dot_dimension_numbers<[1], [0], [0], [1], [0, 0, 1, 1], [], []>} : vector<128x128xbf16>, vector<128x128xbf16>, vector<128x128xf32> -> vector<128x128xf32>
    %113 = vector.broadcast %98 : vector<128x1xf32> to vector<128x128xf32>
    %114 = arith.mulf %112, %113 : vector<128x128xf32>
    %115 = vector.broadcast %102 : vector<1x128xf32> to vector<128x128xf32>
    %116 = arith.addf %114, %115 : vector<128x128xf32>
    %117 = arith.mulf %116, %4 : vector<128x128xf32>
    %cst_63 = arith.constant dense<0.000000e+00> : vector<128xf32>
    %118 = vector.multi_reduction <add>, %117, %cst_63 [0] : vector<128x128xf32> to vector<128xf32>
    %119 = vector.shape_cast %118 : vector<128xf32> to vector<1x128xf32>
    %120 = vector.broadcast %0 : f32 to vector<1x128xf32>
    %121 = arith.mulf %119, %120 : vector<1x128xf32>
    %122 = vector.broadcast %121 : vector<1x128xf32> to vector<128x128xf32>
    %123 = arith.subf %116, %122 : vector<128x128xf32>
    %124 = arith.mulf %123, %4 : vector<128x128xf32>
    %125 = arith.mulf %124, %124 : vector<128x128xf32>
    %cst_64 = arith.constant dense<0.000000e+00> : vector<128xf32>
    %126 = vector.multi_reduction <add>, %125, %cst_64 [0] : vector<128x128xf32> to vector<128xf32>
    %127 = vector.shape_cast %126 : vector<128xf32> to vector<1x128xf32>
    %128 = vector.broadcast %0 : f32 to vector<1x128xf32>
    %129 = arith.mulf %127, %128 : vector<1x128xf32>
    %cst_65 = arith.constant 9.99999974E-6 : f32
    %130 = vector.broadcast %cst_65 : f32 to vector<1x128xf32>
    %131 = arith.addf %129, %130 : vector<1x128xf32>
    %132 = math.rsqrt %131 : vector<1x128xf32>
    %133 = arith.mulf %104, %132 : vector<1x128xf32>
    %134 = vector.broadcast %121 : vector<1x128xf32> to vector<128x128xf32>
    %135 = arith.subf %116, %134 : vector<128x128xf32>
    %136 = vector.broadcast %133 : vector<1x128xf32> to vector<128x128xf32>
    %137 = arith.mulf %135, %136 : vector<128x128xf32>
    %138 = vector.broadcast %106 : vector<1x128xf32> to vector<128x128xf32>
    %139 = arith.addf %137, %138 : vector<128x128xf32>
    %cst_66 = arith.constant 0.000000e+00 : f32
    %140 = vector.broadcast %cst_66 : f32 to vector<128x128xf32>
    %141 = arith.maximumf %139, %140 : vector<128x128xf32>
    %142 = arith.addf %141, %96 : vector<128x128xf32>
    %c0_67 = arith.constant 0 : index
    %c0_68 = arith.constant 0 : index
    %143 = vector.load %arg3[%c0_67, %c0_68] : memref<128x128xbf16, #tpu.memory_space<vmem>>, vector<128x128xbf16>
    %c0_69 = arith.constant 0 : index
    %c0_70 = arith.constant 0 : index
    %144 = vector.load %arg4[%c0_69, %c0_70] : memref<128x1xf32, #tpu.memory_space<vmem>>, vector<128x1xf32>
    %c0_71 = arith.constant 0 : index
    %c0_72 = arith.constant 0 : index
    %145 = vector.load %arg13[%c0_71, %c0_72] : memref<128x128xbf16, #tpu.memory_space<vmem>>, vector<128x128xbf16>
    %c0_73 = arith.constant 0 : index
    %c0_74 = arith.constant 0 : index
    %146 = vector.load %arg14[%c0_73, %c0_74] : memref<1x128xf32, #tpu.memory_space<vmem>>, vector<1x128xf32>
    %c0_75 = arith.constant 0 : index
    %c0_76 = arith.constant 0 : index
    %147 = vector.load %arg15[%c0_75, %c0_76] : memref<1x128xf32, #tpu.memory_space<vmem>>, vector<1x128xf32>
    %c0_77 = arith.constant 0 : index
    %c0_78 = arith.constant 0 : index
    %148 = vector.load %arg16[%c0_77, %c0_78] : memref<1x128xf32, #tpu.memory_space<vmem>>, vector<1x128xf32>
    %149 = arith.truncf %1 : vector<128x128xf32> to vector<128x128xbf16>
    %cst_79 = arith.constant dense<0.000000e+00> : vector<128x128xf32>
    %150 = tpu.matmul %149, %145, %cst_79 {dimension_numbers = #tpu.dot_dimension_numbers<[1], [0], [0], [1], [0, 0, 1, 1], [], []>} : vector<128x128xbf16>, vector<128x128xbf16>, vector<128x128xf32> -> vector<128x128xf32>
    %151 = vector.broadcast %144 : vector<128x1xf32> to vector<128x128xf32>
    %152 = arith.mulf %150, %151 : vector<128x128xf32>
    %153 = arith.truncf %152 : vector<128x128xf32> to vector<128x128xbf16>
    %cst_80 = arith.constant dense<0.000000e+00> : vector<128x128xf32>
    %154 = tpu.matmul %143, %153, %cst_80 {dimension_numbers = #tpu.dot_dimension_numbers<[1], [0], [0], [1], [0, 0, 1, 1], [], []>} : vector<128x128xbf16>, vector<128x128xbf16>, vector<128x128xf32> -> vector<128x128xf32>
    %155 = vector.broadcast %144 : vector<128x1xf32> to vector<128x128xf32>
    %156 = arith.mulf %154, %155 : vector<128x128xf32>
    %157 = vector.broadcast %146 : vector<1x128xf32> to vector<128x128xf32>
    %158 = arith.addf %156, %157 : vector<128x128xf32>
    %159 = arith.mulf %158, %4 : vector<128x128xf32>
    %cst_81 = arith.constant dense<0.000000e+00> : vector<128xf32>
    %160 = vector.multi_reduction <add>, %159, %cst_81 [0] : vector<128x128xf32> to vector<128xf32>
    %161 = vector.shape_cast %160 : vector<128xf32> to vector<1x128xf32>
    %162 = vector.broadcast %0 : f32 to vector<1x128xf32>
    %163 = arith.mulf %161, %162 : vector<1x128xf32>
    %164 = vector.broadcast %163 : vector<1x128xf32> to vector<128x128xf32>
    %165 = arith.subf %158, %164 : vector<128x128xf32>
    %166 = arith.mulf %165, %4 : vector<128x128xf32>
    %167 = arith.mulf %166, %166 : vector<128x128xf32>
    %cst_82 = arith.constant dense<0.000000e+00> : vector<128xf32>
    %168 = vector.multi_reduction <add>, %167, %cst_82 [0] : vector<128x128xf32> to vector<128xf32>
    %169 = vector.shape_cast %168 : vector<128xf32> to vector<1x128xf32>
    %170 = vector.broadcast %0 : f32 to vector<1x128xf32>
    %171 = arith.mulf %169, %170 : vector<1x128xf32>
    %cst_83 = arith.constant 9.99999974E-6 : f32
    %172 = vector.broadcast %cst_83 : f32 to vector<1x128xf32>
    %173 = arith.addf %171, %172 : vector<1x128xf32>
    %174 = math.rsqrt %173 : vector<1x128xf32>
    %175 = arith.mulf %147, %174 : vector<1x128xf32>
    %176 = vector.broadcast %163 : vector<1x128xf32> to vector<128x128xf32>
    %177 = arith.subf %158, %176 : vector<128x128xf32>
    %178 = vector.broadcast %175 : vector<1x128xf32> to vector<128x128xf32>
    %179 = arith.mulf %177, %178 : vector<128x128xf32>
    %180 = vector.broadcast %148 : vector<1x128xf32> to vector<128x128xf32>
    %181 = arith.addf %179, %180 : vector<128x128xf32>
    %cst_84 = arith.constant 0.000000e+00 : f32
    %182 = vector.broadcast %cst_84 : f32 to vector<128x128xf32>
    %183 = arith.maximumf %181, %182 : vector<128x128xf32>
    %184 = arith.addf %183, %1 : vector<128x128xf32>
    %185 = tpu.concatenate %142, %184 in 1 : vector<128x128xf32>, vector<128x128xf32> -> vector<128x256xf32>
    %c0_85 = arith.constant 0 : index
    %c0_86 = arith.constant 0 : index
    %186 = vector.load %arg7[%c0_85, %c0_86] : memref<16x128xbf16, #tpu.memory_space<vmem>>, vector<16x128xbf16>
    %187 = arith.truncf %185 : vector<128x256xf32> to vector<128x256xbf16>
    %cst_87 = arith.constant dense<0.000000e+00> : vector<16x256xf32>
    %188 = tpu.matmul %186, %187, %cst_87 {dimension_numbers = #tpu.dot_dimension_numbers<[1], [0], [0], [1], [0, 0, 1, 1], [], []>} : vector<16x128xbf16>, vector<128x256xbf16>, vector<16x256xf32> -> vector<16x256xf32>
    %c0_88 = arith.constant 0 : index
    %c0_89 = arith.constant 0 : index
    %189 = vector.load %arg8[%c0_88, %c0_89] : memref<16x1xf32, #tpu.memory_space<vmem>>, vector<16x1xf32>
    %190 = vector.broadcast %189 : vector<16x1xf32> to vector<16x256xf32>
    %191 = arith.mulf %188, %190 : vector<16x256xf32>
    %192 = arith.truncf %191 : vector<16x256xf32> to vector<16x256xbf16>
    %c0_90 = arith.constant 0 : index
    %c0_91 = arith.constant 0 : index
    %193 = vector.load %arg17[%c0_90, %c0_91] : memref<256x128xbf16, #tpu.memory_space<vmem>>, vector<256x128xbf16>
    %cst_92 = arith.constant dense<0.000000e+00> : vector<16x128xf32>
    %194 = tpu.matmul %192, %193, %cst_92 {dimension_numbers = #tpu.dot_dimension_numbers<[1], [0], [0], [1], [0, 0, 1, 1], [], []>} : vector<16x256xbf16>, vector<256x128xbf16>, vector<16x128xf32> -> vector<16x128xf32>
    %c0_93 = arith.constant 0 : index
    %c0_94 = arith.constant 0 : index
    %195 = vector.load %arg18[%c0_93, %c0_94] : memref<1x128xf32, #tpu.memory_space<vmem>>, vector<1x128xf32>
    %196 = vector.broadcast %195 : vector<1x128xf32> to vector<16x128xf32>
    %197 = arith.addf %194, %196 : vector<16x128xf32>
    %cst_95 = arith.constant 0.000000e+00 : f32
    %198 = vector.broadcast %cst_95 : f32 to vector<16x128xf32>
    %199 = arith.maximumf %197, %198 : vector<16x128xf32>
    %200 = arith.truncf %199 : vector<16x128xf32> to vector<16x128xbf16>
    %c0_96 = arith.constant 0 : index
    %c0_97 = arith.constant 0 : index
    %201 = vector.load %arg19[%c0_96, %c0_97] : memref<128x128xbf16, #tpu.memory_space<vmem>>, vector<128x128xbf16>
    %cst_98 = arith.constant dense<0.000000e+00> : vector<16x128xf32>
    %202 = tpu.matmul %200, %201, %cst_98 {dimension_numbers = #tpu.dot_dimension_numbers<[1], [0], [0], [1], [0, 0, 1, 1], [], []>} : vector<16x128xbf16>, vector<128x128xbf16>, vector<16x128xf32> -> vector<16x128xf32>
    %c0_99 = arith.constant 0 : index
    %c0_100 = arith.constant 0 : index
    %203 = vector.load %arg20[%c0_99, %c0_100] : memref<1x128xf32, #tpu.memory_space<vmem>>, vector<1x128xf32>
    %204 = vector.broadcast %203 : vector<1x128xf32> to vector<16x128xf32>
    %205 = arith.addf %202, %204 : vector<16x128xf32>
    %cst_101 = arith.constant 0.000000e+00 : f32
    %206 = vector.broadcast %cst_101 : f32 to vector<16x128xf32>
    %207 = arith.maximumf %205, %206 : vector<16x128xf32>
    %208 = arith.truncf %207 : vector<16x128xf32> to vector<16x128xbf16>
    %c0_102 = arith.constant 0 : index
    %c0_103 = arith.constant 0 : index
    %209 = vector.load %arg21[%c0_102, %c0_103] : memref<128x128xbf16, #tpu.memory_space<vmem>>, vector<128x128xbf16>
    %cst_104 = arith.constant dense<0.000000e+00> : vector<16x128xf32>
    %210 = tpu.matmul %208, %209, %cst_104 {dimension_numbers = #tpu.dot_dimension_numbers<[1], [0], [0], [1], [0, 0, 1, 1], [], []>} : vector<16x128xbf16>, vector<128x128xbf16>, vector<16x128xf32> -> vector<16x128xf32>
    %c0_105 = arith.constant 0 : index
    %c0_106 = arith.constant 0 : index
    %211 = vector.load %arg22[%c0_105, %c0_106] : memref<1x128xf32, #tpu.memory_space<vmem>>, vector<1x128xf32>
    %212 = vector.broadcast %211 : vector<1x128xf32> to vector<16x128xf32>
    %213 = arith.addf %210, %212 : vector<16x128xf32>
    %c0_107 = arith.constant 0 : index
    %c0_108 = arith.constant 0 : index
    %214 = vector.load %arg23[%c0_107, %c0_108] : memref<16x128xf32, #tpu.memory_space<vmem>>, vector<16x128xf32>
    tpu.vector_store %arg23[%c0_107, %c0_108], %213 {strides = array<i32>} : memref<16x128xf32, #tpu.memory_space<vmem>>, vector<16x128xf32>,
    return
  }
}

</mosaic_0001>

<llo_original>
// kernel: tpu_custom_call.1
$region0: #{tpu_custom_call.1}
  #allocation0 [shape = 'u32[]', space=smem, size = 0x4, offset = 0x4, fixed_abs, tag = 'smem constant byte address 0x4 - core index']
  #allocation1 [shape = 'u32[144,128]{1,0:T(1,128)}', space=vmem, size = 0x12000, scoped, tag = 'internal scratch']
  #allocation2 [shape = 'f32[1]{0:T(128)S(6)}', space=smem, size = 0x200, scoped, tag = 'scoped memory for tpu_custom_call.1']
  %s0 = inlined_call_operand.<no memory space> [shape: f32[1], index: 0, kind: input, shape index: {}]
  %s1 = inlined_call_operand.hbm [shape: bf16[128,128], index: 1, kind: input, shape index: {}]
  %s2 = inlined_call_operand.vmem [shape: f32[128,1], index: 2, kind: input, shape index: {}]
  %s3 = inlined_call_operand.hbm [shape: bf16[128,128], index: 3, kind: input, shape index: {}]
  %s4 = inlined_call_operand.vmem [shape: f32[128,1], index: 4, kind: input, shape index: {}]
  %s5 = inlined_call_operand.vmem [shape: f32[128,128], index: 5, kind: input, shape index: {}]
  %s6 = inlined_call_operand.vmem [shape: f32[128,1], index: 6, kind: input, shape index: {}]
  %s7 = inlined_call_operand.hbm [shape: bf16[16,128], index: 7, kind: input, shape index: {}]
  %s8 = inlined_call_operand.vmem [shape: f32[16,1], index: 8, kind: input, shape index: {}]
  %s9 = inlined_call_operand.vmem [shape: bf16[3,128,128], index: 9, kind: input, shape index: {}]
  %s10 = inlined_call_operand.hbm [shape: f32[3,1,128], index: 10, kind: input, shape index: {}]
  %s11 = inlined_call_operand.hbm [shape: f32[3,1,128], index: 11, kind: input, shape index: {}]
  %s12 = inlined_call_operand.hbm [shape: f32[3,1,128], index: 12, kind: input, shape index: {}]
  %s13 = inlined_call_operand.hbm [shape: bf16[128,128], index: 13, kind: input, shape index: {}]
  %s14 = inlined_call_operand.vmem [shape: f32[1,128], index: 14, kind: input, shape index: {}]
  %s15 = inlined_call_operand.vmem [shape: f32[1,128], index: 15, kind: input, shape index: {}]
  %s16 = inlined_call_operand.vmem [shape: f32[1,128], index: 16, kind: input, shape index: {}]
  %s17 = inlined_call_operand.vmem [shape: bf16[256,128], index: 17, kind: input, shape index: {}]
  %s18 = inlined_call_operand.vmem [shape: f32[1,128], index: 18, kind: input, shape index: {}]
  %s19 = inlined_call_operand.hbm [shape: bf16[128,128], index: 19, kind: input, shape index: {}]
  %s20 = inlined_call_operand.vmem [shape: f32[1,128], index: 20, kind: input, shape index: {}]
  %s21 = inlined_call_operand.hbm [shape: bf16[128,128], index: 21, kind: input, shape index: {}]
  %s22 = inlined_call_operand.vmem [shape: f32[1,128], index: 22, kind: input, shape index: {}]
  %s23 = inlined_call_operand.hbm [shape: f32[16,128], index: 23, kind: output, shape index: {}]
  %s24 = sld [smem:[#allocation0]]
  $region138: #{tpu_custom_call.1} parent=0
    _
  %s26 = ssub.s32 1, %s24
  %s27 = scalar_select 0, %s26, %s24
  %28 = sst [smem:[#allocation2]] %s0
  $region1: #{tpu_custom_call.1} parent=0
    #allocation3 [shape = 'u8[32768]{0}', space=vmem, size = 0x8000, scoped, tag = 'input window, operand 1, single buffered']
    #allocation4 [shape = 's32[1]{0}', space=sflag, size = 0x4, scoped, tag = 'scoped memory for tpu_custom_call.1']
    #allocation5 [shape = 's32[1]{0}', space=sflag, size = 0x4, scoped, tag = 'scoped memory for tpu_custom_call.1']
    #allocation6 [shape = 'u8[32768]{0}', space=vmem, size = 0x8000, scoped, tag = 'input window, operand 3, single buffered']
    #allocation7 [shape = 's32[1]{0}', space=sflag, size = 0x4, scoped, tag = 'scoped memory for tpu_custom_call.1']
    #allocation8 [shape = 'u8[4096]{0}', space=vmem, size = 0x1000, scoped, tag = 'input window, operand 7, single buffered']
    #allocation9 [shape = 'u8[1536]{0}', space=vmem, size = 0x800, scoped, tag = 'input window, operand 10, single buffered']
    #allocation10 [shape = 's32[1]{0}', space=sflag, size = 0x4, scoped, tag = 'scoped memory for tpu_custom_call.1']
    #allocation11 [shape = 'u8[1536]{0}', space=vmem, size = 0x800, scoped, tag = 'input window, operand 11, single buffered']
    #allocation12 [shape = 'u8[1536]{0}', space=vmem, size = 0x800, scoped, tag = 'input window, operand 12, single buffered']
    #allocation13 [shape = 's32[1]{0}', space=sflag, size = 0x4, scoped, tag = 'scoped memory for tpu_custom_call.1']
    #allocation14 [shape = 'u8[32768]{0}', space=vmem, size = 0x8000, scoped, tag = 'input window, operand 13, single buffered']
    #allocation15 [shape = 'u8[32768]{0}', space=vmem, size = 0x8000, scoped, tag = 'input window, operand 19, single buffered']
    #allocation16 [shape = 's32[1]{0}', space=sflag, size = 0x4, scoped, tag = 'scoped memory for tpu_custom_call.1']
    #allocation17 [shape = 'u8[32768]{0}', space=vmem, size = 0x8000, scoped, tag = 'input window, operand 21, single buffered']
    #allocation18 [shape = 'u8[8192]{0}', space=vmem, size = 0x2000, scoped, tag = 'output window, operand 0, single buffered']
    %29 = vsyncpa [#allocation4], 0
    %30 = vsyncpa [#allocation7], 0
    %31 = vsyncpa [#allocation10], 0
    %32 = vsyncpa [#allocation13], 0
    %33 = vsyncpa [#allocation16], 0
    %34 = vsyncpa [#allocation5], 0
    // Predicated region
    $region2: #{tpu_custom_call.1} parent=1 // pred_check
      _
    $region3: #{tpu_custom_call.1} parent=1 // pred_check_branch
      %36 = sbr.rel (0) target = $region5
    $region4: #{tpu_custom_call.1} parent=1 // pred_region
      _
    $region5: #{tpu_custom_call.1} parent=1 // pred_fallthru
      _
    // Predicated region
    $region6: #{tpu_custom_call.1} parent=1 // pred_check
      _
    $region7: #{tpu_custom_call.1} parent=1 // pred_check_branch
      %38 = sbr.rel (0) target = $region9
    $region8: #{tpu_custom_call.1} parent=1 // pred_region
      %s40 = ssub.s32 1024, 1024
      %41 = vsyncadd [#allocation4], %s40
      %s42 = sshll.u32 [#allocation3], 4
      %s43 = int_to_ptr.vmem [resolvable:$true] %s42
      %48 = dma.hbm_to_vmem [thread:$0]  %s1, 1024, %s43, [#allocation4], 64, 64, 4
    $region9: #{tpu_custom_call.1} parent=1 // pred_fallthru
      _
    // Predicated region
    $region10: #{tpu_custom_call.1} parent=1 // pred_check
      _
    $region11: #{tpu_custom_call.1} parent=1 // pred_check_branch
      %50 = sbr.rel (0) target = $region13
    $region12: #{tpu_custom_call.1} parent=1 // pred_region
      _
    $region13: #{tpu_custom_call.1} parent=1 // pred_fallthru
      _
    // Predicated region
    $region14: #{tpu_custom_call.1} parent=1 // pred_check
      _
    $region15: #{tpu_custom_call.1} parent=1 // pred_check_branch
      %52 = sbr.rel (0) target = $region17
    $region16: #{tpu_custom_call.1} parent=1 // pred_region
      %s54 = ssub.s32 1024, 1024
      %55 = vsyncadd [#allocation7], %s54
      %s56 = sshll.u32 [#allocation6], 4
      %s57 = int_to_ptr.vmem [resolvable:$true] %s56
      %62 = dma.hbm_to_vmem [thread:$0]  %s3, 1024, %s57, [#allocation7], 64, 64, 4
    $region17: #{tpu_custom_call.1} parent=1 // pred_fallthru
      _
    // Predicated region
    $region18: #{tpu_custom_call.1} parent=1 // pred_check
      _
    $region19: #{tpu_custom_call.1} parent=1 // pred_check_branch
      %64 = sbr.rel (0) target = $region21
    $region20: #{tpu_custom_call.1} parent=1 // pred_region
      _
    $region21: #{tpu_custom_call.1} parent=1 // pred_fallthru
      _
    // Predicated region
    $region22: #{tpu_custom_call.1} parent=1 // pred_check
      _
    $region23: #{tpu_custom_call.1} parent=1 // pred_check_branch
      %66 = sbr.rel (0) target = $region25
    $region24: #{tpu_custom_call.1} parent=1 // pred_region
      _
    $region25: #{tpu_custom_call.1} parent=1 // pred_fallthru
      _
    // Predicated region
    $region26: #{tpu_custom_call.1} parent=1 // pred_check
      _
    $region27: #{tpu_custom_call.1} parent=1 // pred_check_branch
      %68 = sbr.rel (0) target = $region29
    $region28: #{tpu_custom_call.1} parent=1 // pred_region
      _
    $region29: #{tpu_custom_call.1} parent=1 // pred_fallthru
      _
    // Predicated region
    $region30: #{tpu_custom_call.1} parent=1 // pred_check
      _
    $region31: #{tpu_custom_call.1} parent=1 // pred_check_branch
      %70 = sbr.rel (0) target = $region33
    $region32: #{tpu_custom_call.1} parent=1 // pred_region
      %s72 = ssub.s32 128, 128
      %73 = vsyncadd [#allocation7], %s72
      %s74 = sshll.u32 [#allocation8], 4
      %s75 = int_to_ptr.vmem [resolvable:$true] %s74
      %80 = dma.hbm_to_vmem [thread:$0]  %s7, 128, %s75, [#allocation7], 64, 64, 4
    $region33: #{tpu_custom_call.1} parent=1 // pred_fallthru
      _
    // Predicated region
    $region34: #{tpu_custom_call.1} parent=1 // pred_check
      _
    $region35: #{tpu_custom_call.1} parent=1 // pred_check_branch
      %82 = sbr.rel (0) target = $region37
    $region36: #{tpu_custom_call.1} parent=1 // pred_region
      _
    $region37: #{tpu_custom_call.1} parent=1 // pred_fallthru
      _
    // Predicated region
    $region38: #{tpu_custom_call.1} parent=1 // pred_check
      _
    $region39: #{tpu_custom_call.1} parent=1 // pred_check_branch
      %84 = sbr.rel (0) target = $region41
    $region40: #{tpu_custom_call.1} parent=1 // pred_region
      _
    $region41: #{tpu_custom_call.1} parent=1 // pred_fallthru
      _
    // Predicated region
    $region42: #{tpu_custom_call.1} parent=1 // pred_check
      _
    $region43: #{tpu_custom_call.1} parent=1 // pred_check_branch
      %86 = sbr.rel (0) target = $region45
    $region44: #{tpu_custom_call.1} parent=1 // pred_region
      %s88 = ssub.s32 48, 48
      %89 = vsyncadd [#allocation10], %s88
      %s90 = sshll.u32 [#allocation9], 4
      %s91 = int_to_ptr.vmem [resolvable:$true] %s90
      %96 = dma.hbm_to_vmem [thread:$0]  %s10, 48, %s91, [#allocation10], 16, 16, 1
    $region45: #{tpu_custom_call.1} parent=1 // pred_fallthru
      _
    // Predicated region
    $region46: #{tpu_custom_call.1} parent=1 // pred_check
      _
    $region47: #{tpu_custom_call.1} parent=1 // pred_check_branch
      %98 = sbr.rel (0) target = $region49
    $region48: #{tpu_custom_call.1} parent=1 // pred_region
      %s100 = ssub.s32 48, 48
      %101 = vsyncadd [#allocation10], %s100
      %s102 = sshll.u32 [#allocation11], 4
      %s103 = int_to_ptr.vmem [resolvable:$true] %s102
      %108 = dma.hbm_to_vmem [thread:$0]  %s11, 48, %s103, [#allocation10], 16, 16, 1
    $region49: #{tpu_custom_call.1} parent=1 // pred_fallthru
      _
    // Predicated region
    $region50: #{tpu_custom_call.1} parent=1 // pred_check
      _
    $region51: #{tpu_custom_call.1} parent=1 // pred_check_branch
      %110 = sbr.rel (0) target = $region53
    $region52: #{tpu_custom_call.1} parent=1 // pred_region
      %s112 = ssub.s32 48, 48
      %113 = vsyncadd [#allocation13], %s112
      %s114 = sshll.u32 [#allocation12], 4
      %s115 = int_to_ptr.vmem [resolvable:$true] %s114
      %120 = dma.hbm_to_vmem [thread:$0]  %s12, 48, %s115, [#allocation13], 16, 16, 1
    $region53: #{tpu_custom_call.1} parent=1 // pred_fallthru
      _
    // Predicated region
    $region54: #{tpu_custom_call.1} parent=1 // pred_check
      _
    $region55: #{tpu_custom_call.1} parent=1 // pred_check_branch
      %122 = sbr.rel (0) target = $region57
    $region56: #{tpu_custom_call.1} parent=1 // pred_region
      %s124 = ssub.s32 1024, 1024
      %125 = vsyncadd [#allocation13], %s124
      %s126 = sshll.u32 [#allocation14], 4
      %s127 = int_to_ptr.vmem [resolvable:$true] %s126
      %132 = dma.hbm_to_vmem [thread:$0]  %s13, 1024, %s127, [#allocation13], 64, 64, 4
    $region57: #{tpu_custom_call.1} parent=1 // pred_fallthru
      _
    // Predicated region
    $region58: #{tpu_custom_call.1} parent=1 // pred_check
      _
    $region59: #{tpu_custom_call.1} parent=1 // pred_check_branch
      %134 = sbr.rel (0) target = $region61
    $region60: #{tpu_custom_call.1} parent=1 // pred_region
      _
    $region61: #{tpu_custom_call.1} parent=1 // pred_fallthru
      _
    // Predicated region
    $region62: #{tpu_custom_call.1} parent=1 // pred_check
      _
    $region63: #{tpu_custom_call.1} parent=1 // pred_check_branch
      %136 = sbr.rel (0) target = $region65
    $region64: #{tpu_custom_call.1} parent=1 // pred_region
      _
    $region65: #{tpu_custom_call.1} parent=1 // pred_fallthru
      _
    // Predicated region
    $region66: #{tpu_custom_call.1} parent=1 // pred_check
      _
    $region67: #{tpu_custom_call.1} parent=1 // pred_check_branch
      %138 = sbr.rel (0) target = $region69
    $region68: #{tpu_custom_call.1} parent=1 // pred_region
      _
    $region69: #{tpu_custom_call.1} parent=1 // pred_fallthru
      _
    // Predicated region
    $region70: #{tpu_custom_call.1} parent=1 // pred_check
      _
    $region71: #{tpu_custom_call.1} parent=1 // pred_check_branch
      %140 = sbr.rel (0) target = $region73
    $region72: #{tpu_custom_call.1} parent=1 // pred_region
      _
    $region73: #{tpu_custom_call.1} parent=1 // pred_fallthru
      _
    // Predicated region
    $region74: #{tpu_custom_call.1} parent=1 // pred_check
      _
    $region75: #{tpu_custom_call.1} parent=1 // pred_check_branch
      %142 = sbr.rel (0) target = $region77
    $region76: #{tpu_custom_call.1} parent=1 // pred_region
      _
    $region77: #{tpu_custom_call.1} parent=1 // pred_fallthru
      _
    // Predicated region
    $region78: #{tpu_custom_call.1} parent=1 // pred_check
      _
    $region79: #{tpu_custom_call.1} parent=1 // pred_check_branch
      %144 = sbr.rel (0) target = $region81
    $region80: #{tpu_custom_call.1} parent=1 // pred_region
      %s146 = ssub.s32 1024, 1024
      %147 = vsyncadd [#allocation16], %s146
      %s148 = sshll.u32 [#allocation15], 4
      %s149 = int_to_ptr.vmem [resolvable:$true] %s148
      %154 = dma.hbm_to_vmem [thread:$0]  %s19, 1024, %s149, [#allocation16], 64, 64, 4
    $region81: #{tpu_custom_call.1} parent=1 // pred_fallthru
      _
    // Predicated region
    $region82: #{tpu_custom_call.1} parent=1 // pred_check
      _
    $region83: #{tpu_custom_call.1} parent=1 // pred_check_branch
      %156 = sbr.rel (0) target = $region85
    $region84: #{tpu_custom_call.1} parent=1 // pred_region
      _
    $region85: #{tpu_custom_call.1} parent=1 // pred_fallthru
      _
    // Predicated region
    $region86: #{tpu_custom_call.1} parent=1 // pred_check
      _
    $region87: #{tpu_custom_call.1} parent=1 // pred_check_branch
      %158 = sbr.rel (0) target = $region89
    $region88: #{tpu_custom_call.1} parent=1 // pred_region
      %s160 = ssub.s32 1024, 1024
      %161 = vsyncadd [#allocation16], %s160
      %s162 = sshll.u32 [#allocation17], 4
      %s163 = int_to_ptr.vmem [resolvable:$true] %s162
      %168 = dma.hbm_to_vmem [thread:$0]  %s21, 1024, %s163, [#allocation16], 64, 64, 4
    $region89: #{tpu_custom_call.1} parent=1 // pred_fallthru
      _
    // Predicated region
    $region90: #{tpu_custom_call.1} parent=1 // pred_check
      _
    $region91: #{tpu_custom_call.1} parent=1 // pred_check_branch
      %170 = sbr.rel (0) target = $region93
    $region92: #{tpu_custom_call.1} parent=1 // pred_region
      _
    $region93: #{tpu_custom_call.1} parent=1 // pred_fallthru
      _
    // Predicated region
    $region94: #{tpu_custom_call.1} parent=1 // pred_check
      _
    $region95: #{tpu_custom_call.1} parent=1 // pred_check_branch
      %172 = sbr.rel (0) target = $region97
    $region96: #{tpu_custom_call.1} parent=1 // pred_region
      %173 = dma.done [#allocation4], 1024
    $region97: #{tpu_custom_call.1} parent=1 // pred_fallthru
      _
    // Predicated region
    $region98: #{tpu_custom_call.1} parent=1 // pred_check
      _
    $region99: #{tpu_custom_call.1} parent=1 // pred_check_branch
      %175 = sbr.rel (0) target = $region101
    $region100: #{tpu_custom_call.1} parent=1 // pred_region
      %176 = dma.done [#allocation7], 1024
    $region101: #{tpu_custom_call.1} parent=1 // pred_fallthru
      _
    // Predicated region
    $region102: #{tpu_custom_call.1} parent=1 // pred_check
      _
    $region103: #{tpu_custom_call.1} parent=1 // pred_check_branch
      %178 = sbr.rel (0) target = $region105
    $region104: #{tpu_custom_call.1} parent=1 // pred_region
      %179 = dma.done [#allocation7], 128
    $region105: #{tpu_custom_call.1} parent=1 // pred_fallthru
      _
    // Predicated region
    $region106: #{tpu_custom_call.1} parent=1 // pred_check
      _
    $region107: #{tpu_custom_call.1} parent=1 // pred_check_branch
      %181 = sbr.rel (0) target = $region109
    $region108: #{tpu_custom_call.1} parent=1 // pred_region
      %182 = dma.done [#allocation10], 48
    $region109: #{tpu_custom_call.1} parent=1 // pred_fallthru
      _
    // Predicated region
    $region110: #{tpu_custom_call.1} parent=1 // pred_check
      _
    $region111: #{tpu_custom_call.1} parent=1 // pred_check_branch
      %184 = sbr.rel (0) target = $region113
    $region112: #{tpu_custom_call.1} parent=1 // pred_region
      %185 = dma.done [#allocation10], 48
    $region113: #{tpu_custom_call.1} parent=1 // pred_fallthru
      _
    // Predicated region
    $region114: #{tpu_custom_call.1} parent=1 // pred_check
      _
    $region115: #{tpu_custom_call.1} parent=1 // pred_check_branch
      %187 = sbr.rel (0) target = $region117
    $region116: #{tpu_custom_call.1} parent=1 // pred_region
      %188 = dma.done [#allocation13], 48
    $region117: #{tpu_custom_call.1} parent=1 // pred_fallthru
      _
    // Predicated region
    $region118: #{tpu_custom_call.1} parent=1 // pred_check
      _
    $region119: #{tpu_custom_call.1} parent=1 // pred_check_branch
      %190 = sbr.rel (0) target = $region121
    $region120: #{tpu_custom_call.1} parent=1 // pred_region
      %191 = dma.done [#allocation13], 1024
    $region121: #{tpu_custom_call.1} parent=1 // pred_fallthru
      _
    // Predicated region
    $region122: #{tpu_custom_call.1} parent=1 // pred_check
      _
    $region123: #{tpu_custom_call.1} parent=1 // pred_check_branch
      %193 = sbr.rel (0) target = $region125
    $region124: #{tpu_custom_call.1} parent=1 // pred_region
      %194 = dma.done [#allocation16], 1024
    $region125: #{tpu_custom_call.1} parent=1 // pred_fallthru
      _
    // Predicated region
    $region126: #{tpu_custom_call.1} parent=1 // pred_check
      _
    $region127: #{tpu_custom_call.1} parent=1 // pred_check_branch
      %196 = sbr.rel (0) target = $region129
    $region128: #{tpu_custom_call.1} parent=1 // pred_region
      %197 = dma.done [#allocation16], 1024
    $region129: #{tpu_custom_call.1} parent=1 // pred_fallthru
      _
    %s199 = sld [smem:[#allocation2]]
    %v200 = vld [vmem:[%s5] sm:$0xff]
    %v201 = vld [vmem:[%s5 + $0x8] sm:$0xff]
    %v202 = vld [vmem:[%s5 + $0x10] sm:$0xff]
    %v203 = vld [vmem:[%s5 + $0x18] sm:$0xff]
    %v204 = vld [vmem:[%s5 + $0x20] sm:$0xff]
    %v205 = vld [vmem:[%s5 + $0x28] sm:$0xff]
    %v206 = vld [vmem:[%s5 + $0x30] sm:$0xff]
    %v207 = vld [vmem:[%s5 + $0x38] sm:$0xff]
    %v208 = vld [vmem:[%s5 + $0x40] sm:$0xff]
    %v209 = vld [vmem:[%s5 + $0x48] sm:$0xff]
    %v210 = vld [vmem:[%s5 + $0x50] sm:$0xff]
    %v211 = vld [vmem:[%s5 + $0x58] sm:$0xff]
    %v212 = vld [vmem:[%s5 + $0x60] sm:$0xff]
    %v213 = vld [vmem:[%s5 + $0x68] sm:$0xff]
    %v214 = vld [vmem:[%s5 + $0x70] sm:$0xff]
    %v215 = vld [vmem:[%s5 + $0x78] sm:$0xff]
    %v216 = vld [vmem:[%s6] sm:$0xff]
    %v217 = vld [vmem:[%s6 + $0x8] sm:$0xff]
    %v218 = vld [vmem:[%s6 + $0x10] sm:$0xff]
    %v219 = vld [vmem:[%s6 + $0x18] sm:$0xff]
    %v220 = vld [vmem:[%s6 + $0x20] sm:$0xff]
    %v221 = vld [vmem:[%s6 + $0x28] sm:$0xff]
    %v222 = vld [vmem:[%s6 + $0x30] sm:$0xff]
    %v223 = vld [vmem:[%s6 + $0x38] sm:$0xff]
    %v224 = vld [vmem:[%s6 + $0x40] sm:$0xff]
    %v225 = vld [vmem:[%s6 + $0x48] sm:$0xff]
    %v226 = vld [vmem:[%s6 + $0x50] sm:$0xff]
    %v227 = vld [vmem:[%s6 + $0x58] sm:$0xff]
    %v228 = vld [vmem:[%s6 + $0x60] sm:$0xff]
    %v229 = vld [vmem:[%s6 + $0x68] sm:$0xff]
    %v230 = vld [vmem:[%s6 + $0x70] sm:$0xff]
    %v231 = vld [vmem:[%s6 + $0x78] sm:$0xff]
    %233 = vset.pattern.permute.xlu0 0
    %234 = vperm.xlu0 %233, %v216
    %v235 = vpop.permute.xlu0 %234
    %238 = vset.pattern.permute.xlu0 0
    %239 = vperm.xlu0 %238, %v217
    %v240 = vpop.permute.xlu0 %239
    %243 = vset.pattern.permute.xlu0 0
    %244 = vperm.xlu0 %243, %v218
    %v245 = vpop.permute.xlu0 %244
    %248 = vset.pattern.permute.xlu0 0
    %249 = vperm.xlu0 %248, %v219
    %v250 = vpop.permute.xlu0 %249
    %253 = vset.pattern.permute.xlu0 0
    %254 = vperm.xlu0 %253, %v220
    %v255 = vpop.permute.xlu0 %254
    %258 = vset.pattern.permute.xlu0 0
    %259 = vperm.xlu0 %258, %v221
    %v260 = vpop.permute.xlu0 %259
    %263 = vset.pattern.permute.xlu0 0
    %264 = vperm.xlu0 %263, %v222
    %v265 = vpop.permute.xlu0 %264
    %268 = vset.pattern.permute.xlu0 0
    %269 = vperm.xlu0 %268, %v223
    %v270 = vpop.permute.xlu0 %269
    %273 = vset.pattern.permute.xlu0 0
    %274 = vperm.xlu0 %273, %v224
    %v275 = vpop.permute.xlu0 %274
    %278 = vset.pattern.permute.xlu0 0
    %279 = vperm.xlu0 %278, %v225
    %v280 = vpop.permute.xlu0 %279
    %283 = vset.pattern.permute.xlu0 0
    %284 = vperm.xlu0 %283, %v226
    %v285 = vpop.permute.xlu0 %284
    %288 = vset.pattern.permute.xlu0 0
    %289 = vperm.xlu0 %288, %v227
    %v290 = vpop.permute.xlu0 %289
    %293 = vset.pattern.permute.xlu0 0
    %294 = vperm.xlu0 %293, %v228
    %v295 = vpop.permute.xlu0 %294
    %298 = vset.pattern.permute.xlu0 0
    %299 = vperm.xlu0 %298, %v229
    %v300 = vpop.permute.xlu0 %299
    %303 = vset.pattern.permute.xlu0 0
    %304 = vperm.xlu0 %303, %v230
    %v305 = vpop.permute.xlu0 %304
    %308 = vset.pattern.permute.xlu0 0
    %309 = vperm.xlu0 %308, %v231
    %v310 = vpop.permute.xlu0 %309
    %v312 = vld [vmem:[#allocation3] sm:$0xf]
    %v313 = vld [vmem:[#allocation3 + $0x4] sm:$0xf]
    %v314 = vld [vmem:[#allocation3 + $0x8] sm:$0xf]
    %v315 = vld [vmem:[#allocation3 + $0xc] sm:$0xf]
    %v316 = vld [vmem:[#allocation3 + $0x10] sm:$0xf]
    %v317 = vld [vmem:[#allocation3 + $0x14] sm:$0xf]
    %v318 = vld [vmem:[#allocation3 + $0x18] sm:$0xf]
    %v319 = vld [vmem:[#allocation3 + $0x1c] sm:$0xf]
    %v320 = vld [vmem:[#allocation3 + $0x20] sm:$0xf]
    %v321 = vld [vmem:[#allocation3 + $0x24] sm:$0xf]
    %v322 = vld [vmem:[#allocation3 + $0x28] sm:$0xf]
    %v323 = vld [vmem:[#allocation3 + $0x2c] sm:$0xf]
    %v324 = vld [vmem:[#allocation3 + $0x30] sm:$0xf]
    %v325 = vld [vmem:[#allocation3 + $0x34] sm:$0xf]
    %v326 = vld [vmem:[#allocation3 + $0x38] sm:$0xf]
    %v327 = vld [vmem:[#allocation3 + $0x3c] sm:$0xf]
    %v328 = vld [vmem:[%s2] sm:$0xff]
    %v329 = vld [vmem:[%s2 + $0x8] sm:$0xff]
    %v330 = vld [vmem:[%s2 + $0x10] sm:$0xff]
    %v331 = vld [vmem:[%s2 + $0x18] sm:$0xff]
    %v332 = vld [vmem:[%s2 + $0x20] sm:$0xff]
    %v333 = vld [vmem:[%s2 + $0x28] sm:$0xff]
    %v334 = vld [vmem:[%s2 + $0x30] sm:$0xff]
    %v335 = vld [vmem:[%s2 + $0x38] sm:$0xff]
    %v336 = vld [vmem:[%s2 + $0x40] sm:$0xff]
    %v337 = vld [vmem:[%s2 + $0x48] sm:$0xff]
    %v338 = vld [vmem:[%s2 + $0x50] sm:$0xff]
    %v339 = vld [vmem:[%s2 + $0x58] sm:$0xff]
    %v340 = vld [vmem:[%s2 + $0x60] sm:$0xff]
    %v341 = vld [vmem:[%s2 + $0x68] sm:$0xff]
    %v342 = vld [vmem:[%s2 + $0x70] sm:$0xff]
    %v343 = vld [vmem:[%s2 + $0x78] sm:$0xff]
    %v344 = vld [vmem:[%s9] sm:$0xf]
    %v345 = vld [vmem:[%s9 + $0x4] sm:$0xf]
    %v346 = vld [vmem:[%s9 + $0x8] sm:$0xf]
    %v347 = vld [vmem:[%s9 + $0xc] sm:$0xf]
    %v348 = vld [vmem:[%s9 + $0x10] sm:$0xf]
    %v349 = vld [vmem:[%s9 + $0x14] sm:$0xf]
    %v350 = vld [vmem:[%s9 + $0x18] sm:$0xf]
    %v351 = vld [vmem:[%s9 + $0x1c] sm:$0xf]
    %v352 = vld [vmem:[%s9 + $0x20] sm:$0xf]
    %v353 = vld [vmem:[%s9 + $0x24] sm:$0xf]
    %v354 = vld [vmem:[%s9 + $0x28] sm:$0xf]
    %v355 = vld [vmem:[%s9 + $0x2c] sm:$0xf]
    %v356 = vld [vmem:[%s9 + $0x30] sm:$0xf]
    %v357 = vld [vmem:[%s9 + $0x34] sm:$0xf]
    %v358 = vld [vmem:[%s9 + $0x38] sm:$0xf]
    %v359 = vld [vmem:[%s9 + $0x3c] sm:$0xf]
    %v360 = vld [vmem:[#allocation9] sm:$0x1]
    %v361 = vld [vmem:[#allocation11] sm:$0x1]
    %v362 = vld [vmem:[#allocation12] sm:$0x1]
    %v363 = vpack.c.bf16 %v201, %v200
    %v364 = vpack.c.bf16 %v203, %v202
    %v365 = vpack.c.bf16 %v205, %v204
    %v366 = vpack.c.bf16 %v207, %v206
    %v367 = vpack.c.bf16 %v209, %v208
    %v368 = vpack.c.bf16 %v211, %v210
    %v369 = vpack.c.bf16 %v213, %v212
    %v370 = vpack.c.bf16 %v215, %v214
    %v387 = vunpack.c.l.b16 %v344
    %v388 = vunpack.c.l.b16 %v345
    %v389 = vunpack.c.l.b16 %v346
    %v390 = vunpack.c.l.b16 %v347
    %v391 = vunpack.c.l.b16 %v348
    %v392 = vunpack.c.l.b16 %v349
    %v393 = vunpack.c.l.b16 %v350
    %v394 = vunpack.c.l.b16 %v351
    %v395 = vunpack.c.l.b16 %v352
    %v396 = vunpack.c.l.b16 %v353
    %v397 = vunpack.c.l.b16 %v354
    %v398 = vunpack.c.l.b16 %v355
    %v399 = vunpack.c.l.b16 %v356
    %v400 = vunpack.c.l.b16 %v357
    %v401 = vunpack.c.l.b16 %v358
    %v402 = vunpack.c.l.b16 %v359
    %v403 = vpack.c.b16 %v388, %v387
    %v404 = vpack.c.b16 %v390, %v389
    %v405 = vpack.c.b16 %v392, %v391
    %v406 = vpack.c.b16 %v394, %v393
    %v407 = vpack.c.b16 %v396, %v395
    %v408 = vpack.c.b16 %v398, %v397
    %v409 = vpack.c.b16 %v400, %v399
    %v410 = vpack.c.b16 %v402, %v401
    %419 = vmatprep.subr.bf16.mxu0 0
    %420 = vmatpush1.bf16.msra.mxu0 %v403
    %421 = vmatprep.subr.bf16.mxu0 0
    %422 = vmatpush1.bf16.msra.mxu0 %v404
    %423 = vmatprep.subr.bf16.mxu0 0
    %424 = vmatpush1.bf16.msra.mxu0 %v405
    %425 = vmatprep.subr.bf16.mxu0 0
    %426 = vmatpush1.bf16.msra.mxu0 %v406
    %427 = vmatprep.subr.bf16.mxu0 0
    %428 = vmatpush1.bf16.msra.mxu0 %v407
    %429 = vmatprep.subr.bf16.mxu0 0
    %430 = vmatpush1.bf16.msra.mxu0 %v408
    %431 = vmatprep.subr.bf16.mxu0 0
    %432 = vmatpush1.bf16.msra.mxu0 %v409
    %433 = vmatprep.subr.bf16.mxu0 0
    %434 = vmatpush1.bf16.msra.mxu0 %v410
    %435 = vmatprep.subr.bf16.mxu0 0
    %436 = vmatpush1.bf16.msra.mxu0 0
    %437 = vmatprep.subr.bf16.mxu0 0
    %438 = vmatpush1.bf16.msra.mxu0 0
    %439 = vmatprep.subr.bf16.mxu0 0
    %440 = vmatpush1.bf16.msra.mxu0 0
    %441 = vmatprep.subr.bf16.mxu0 0
    %442 = vmatpush1.bf16.msra.mxu0 0
    %443 = vmatprep.subr.bf16.mxu0 0
    %444 = vmatpush1.bf16.msra.mxu0 0
    %445 = vmatprep.subr.bf16.mxu0 0
    %446 = vmatpush1.bf16.msra.mxu0 0
    %447 = vmatprep.subr.bf16.mxu0 0
    %448 = vmatpush1.bf16.msra.mxu0 0
    %449 = vmatprep.subr.bf16.mxu0 0
    %450 = vmatpush1.bf16.msra.mxu0 0
    %451 = vmatprep.mubr.bf16.mxu0 0
    %452 = vmatmul.mubr.bf16.gmra.mrb[0].mxu0 %v363
    %v453 = vpop.f32.mrb[0].mxu0
    %v454 = vadd.f32 0.0, %v453
    %v455 = vpop.f32.mrb[0].mxu0
    %v456 = vpop.f32.mrb[0].mxu0
    %v457 = vadd.f32 0.0, %v456
    %v458 = vpop.f32.mrb[0].mxu0
    %459 = vmatprep.mubr.bf16.mxu0 0
    %460 = vmatmul.mubr.bf16.gmra.mrb[0].mxu0 %v364
    %v461 = vpop.f32.mrb[0].mxu0
    %v462 = vadd.f32 0.0, %v461
    %v463 = vpop.f32.mrb[0].mxu0
    %v464 = vpop.f32.mrb[0].mxu0
    %v465 = vadd.f32 0.0, %v464
    %v466 = vpop.f32.mrb[0].mxu0
    %467 = vmatprep.mubr.bf16.mxu0 0
    %468 = vmatmul.mubr.bf16.gmra.mrb[0].mxu0 %v365
    %v469 = vpop.f32.mrb[0].mxu0
    %v470 = vadd.f32 0.0, %v469
    %v471 = vpop.f32.mrb[0].mxu0
    %v472 = vpop.f32.mrb[0].mxu0
    %v473 = vadd.f32 0.0, %v472
    %v474 = vpop.f32.mrb[0].mxu0
    %475 = vmatprep.mubr.bf16.mxu0 0
    %476 = vmatmul.mubr.bf16.gmra.mrb[0].mxu0 %v366
    %v477 = vpop.f32.mrb[0].mxu0
    %v478 = vadd.f32 0.0, %v477
    %v479 = vpop.f32.mrb[0].mxu0
    %v480 = vpop.f32.mrb[0].mxu0
    %v481 = vadd.f32 0.0, %v480
    %v482 = vpop.f32.mrb[0].mxu0
    %483 = vmatprep.mubr.bf16.mxu0 0
    %484 = vmatmul.mubr.bf16.gmra.mrb[0].mxu0 %v367
    %v485 = vpop.f32.mrb[0].mxu0
    %v486 = vadd.f32 0.0, %v485
    %v487 = vpop.f32.mrb[0].mxu0
    %v488 = vpop.f32.mrb[0].mxu0
    %v489 = vadd.f32 0.0, %v488
    %v490 = vpop.f32.mrb[0].mxu0
    %491 = vmatprep.mubr.bf16.mxu0 0
    %492 = vmatmul.mubr.bf16.gmra.mrb[0].mxu0 %v368
    %v493 = vpop.f32.mrb[0].mxu0
    %v494 = vadd.f32 0.0, %v493
    %v495 = vpop.f32.mrb[0].mxu0
    %v496 = vpop.f32.mrb[0].mxu0
    %v497 = vadd.f32 0.0, %v496
    %v498 = vpop.f32.mrb[0].mxu0
    %499 = vmatprep.mubr.bf16.mxu0 0
    %500 = vmatmul.mubr.bf16.gmra.mrb[0].mxu0 %v369
    %v501 = vpop.f32.mrb[0].mxu0
    %v502 = vadd.f32 0.0, %v501
    %v503 = vpop.f32.mrb[0].mxu0
    %v504 = vpop.f32.mrb[0].mxu0
    %v505 = vadd.f32 0.0, %v504
    %v506 = vpop.f32.mrb[0].mxu0
    %507 = vmatprep.mubr.bf16.mxu0 0
    %508 = vmatmul.mubr.bf16.gmra.mrb[0].mxu0 %v370
    %v509 = vpop.f32.mrb[0].mxu0
    %v510 = vadd.f32 0.0, %v509
    %v511 = vpop.f32.mrb[0].mxu0
    %v512 = vpop.f32.mrb[0].mxu0
    %v513 = vadd.f32 0.0, %v512
    %v514 = vpop.f32.mrb[0].mxu0
    %515 = vdwg.mxu0
    %517 = vset.pattern.permute.xlu0 0
    %518 = vperm.xlu0 %517, %v328
    %v519 = vpop.permute.xlu0 %518
    %522 = vset.pattern.permute.xlu0 0
    %523 = vperm.xlu0 %522, %v329
    %v524 = vpop.permute.xlu0 %523
    %527 = vset.pattern.permute.xlu0 0
    %528 = vperm.xlu0 %527, %v330
    %v529 = vpop.permute.xlu0 %528
    %532 = vset.pattern.permute.xlu0 0
    %533 = vperm.xlu0 %532, %v331
    %v534 = vpop.permute.xlu0 %533
    %537 = vset.pattern.permute.xlu0 0
    %538 = vperm.xlu0 %537, %v332
    %v539 = vpop.permute.xlu0 %538
    %542 = vset.pattern.permute.xlu0 0
    %543 = vperm.xlu0 %542, %v333
    %v544 = vpop.permute.xlu0 %543
    %547 = vset.pattern.permute.xlu0 0
    %548 = vperm.xlu0 %547, %v334
    %v549 = vpop.permute.xlu0 %548
    %552 = vset.pattern.permute.xlu0 0
    %553 = vperm.xlu0 %552, %v335
    %v554 = vpop.permute.xlu0 %553
    %557 = vset.pattern.permute.xlu0 0
    %558 = vperm.xlu0 %557, %v336
    %v559 = vpop.permute.xlu0 %558
    %562 = vset.pattern.permute.xlu0 0
    %563 = vperm.xlu0 %562, %v337
    %v564 = vpop.permute.xlu0 %563
    %567 = vset.pattern.permute.xlu0 0
    %568 = vperm.xlu0 %567, %v338
    %v569 = vpop.permute.xlu0 %568
    %572 = vset.pattern.permute.xlu0 0
    %573 = vperm.xlu0 %572, %v339
    %v574 = vpop.permute.xlu0 %573
    %577 = vset.pattern.permute.xlu0 0
    %578 = vperm.xlu0 %577, %v340
    %v579 = vpop.permute.xlu0 %578
    %582 = vset.pattern.permute.xlu0 0
    %583 = vperm.xlu0 %582, %v341
    %v584 = vpop.permute.xlu0 %583
    %587 = vset.pattern.permute.xlu0 0
    %588 = vperm.xlu0 %587, %v342
    %v589 = vpop.permute.xlu0 %588
    %592 = vset.pattern.permute.xlu0 0
    %593 = vperm.xlu0 %592, %v343
    %v594 = vpop.permute.xlu0 %593
    %v596 = vmul.f32 %v454, %v519
    %v597 = vmul.f32 %v457, %v524
    %v598 = vmul.f32 %v462, %v529
    %v599 = vmul.f32 %v465, %v534
    %v600 = vmul.f32 %v470, %v539
    %v601 = vmul.f32 %v473, %v544
    %v602 = vmul.f32 %v478, %v549
    %v603 = vmul.f32 %v481, %v554
    %v604 = vmul.f32 %v486, %v559
    %v605 = vmul.f32 %v489, %v564
    %v606 = vmul.f32 %v494, %v569
    %v607 = vmul.f32 %v497, %v574
    %v608 = vmul.f32 %v502, %v579
    %v609 = vmul.f32 %v505, %v584
    %v610 = vmul.f32 %v510, %v589
    %v611 = vmul.f32 %v513, %v594
    %v612 = vpack.c.bf16 %v597, %v596
    %v613 = vpack.c.bf16 %v599, %v598
    %v614 = vpack.c.bf16 %v601, %v600
    %v615 = vpack.c.bf16 %v603, %v602
    %v616 = vpack.c.bf16 %v605, %v604
    %v617 = vpack.c.bf16 %v607, %v606
    %v618 = vpack.c.bf16 %v609, %v608
    %v619 = vpack.c.bf16 %v611, %v610
    %v636 = vunpack.c.l.b16 %v312
    %v637 = vunpack.c.l.b16 %v313
    %v638 = vunpack.c.l.b16 %v314
    %v639 = vunpack.c.l.b16 %v315
    %v640 = vunpack.c.l.b16 %v316
    %v641 = vunpack.c.l.b16 %v317
    %v642 = vunpack.c.l.b16 %v318
    %v643 = vunpack.c.l.b16 %v319
    %v644 = vunpack.c.l.b16 %v320
    %v645 = vunpack.c.l.b16 %v321
    %v646 = vunpack.c.l.b16 %v322
    %v647 = vunpack.c.l.b16 %v323
    %v648 = vunpack.c.l.b16 %v324
    %v649 = vunpack.c.l.b16 %v325
    %v650 = vunpack.c.l.b16 %v326
    %v651 = vunpack.c.l.b16 %v327
    %v652 = vpack.c.b16 %v637, %v636
    %v653 = vpack.c.b16 %v639, %v638
    %v654 = vpack.c.b16 %v641, %v640
    %v655 = vpack.c.b16 %v643, %v642
    %v656 = vpack.c.b16 %v645, %v644
    %v657 = vpack.c.b16 %v647, %v646
    %v658 = vpack.c.b16 %v649, %v648
    %v659 = vpack.c.b16 %v651, %v650
    %668 = vmatprep.subr.bf16.mxu0 0
    %669 = vmatpush1.bf16.msra.mxu0 %v612
    %670 = vmatprep.subr.bf16.mxu0 0
    %671 = vmatpush1.bf16.msra.mxu0 %v613
    %672 = vmatprep.subr.bf16.mxu0 0
    %673 = vmatpush1.bf16.msra.mxu0 %v614
    %674 = vmatprep.subr.bf16.mxu0 0
    %675 = vmatpush1.bf16.msra.mxu0 %v615
    %676 = vmatprep.subr.bf16.mxu0 0
    %677 = vmatpush1.bf16.msra.mxu0 %v616
    %678 = vmatprep.subr.bf16.mxu0 0
    %679 = vmatpush1.bf16.msra.mxu0 %v617
    %680 = vmatprep.subr.bf16.mxu0 0
    %681 = vmatpush1.bf16.msra.mxu0 %v618
    %682 = vmatprep.subr.bf16.mxu0 0
    %683 = vmatpush1.bf16.msra.mxu0 %v619
    %684 = vmatprep.subr.bf16.mxu0 0
    %685 = vmatpush1.bf16.msra.mxu0 0
    %686 = vmatprep.subr.bf16.mxu0 0
    %687 = vmatpush1.bf16.msra.mxu0 0
    %688 = vmatprep.subr.bf16.mxu0 0
    %689 = vmatpush1.bf16.msra.mxu0 0
    %690 = vmatprep.subr.bf16.mxu0 0
    %691 = vmatpush1.bf16.msra.mxu0 0
    %692 = vmatprep.subr.bf16.mxu0 0
    %693 = vmatpush1.bf16.msra.mxu0 0
    %694 = vmatprep.subr.bf16.mxu0 0
    %695 = vmatpush1.bf16.msra.mxu0 0
    %696 = vmatprep.subr.bf16.mxu0 0
    %697 = vmatpush1.bf16.msra.mxu0 0
    %698 = vmatprep.subr.bf16.mxu0 0
    %699 = vmatpush1.bf16.msra.mxu0 0
    %700 = vmatprep.mubr.bf16.mxu0 0
    %701 = vmatmul.mubr.bf16.gmra.mrb[0].mxu0 %v652
    %v702 = vpop.f32.mrb[0].mxu0
    %v703 = vadd.f32 0.0, %v702
    %v704 = vpop.f32.mrb[0].mxu0
    %v705 = vpop.f32.mrb[0].mxu0
    %v706 = vadd.f32 0.0, %v705
    %v707 = vpop.f32.mrb[0].mxu0
    %708 = vmatprep.mubr.bf16.mxu0 0
    %709 = vmatmul.mubr.bf16.gmra.mrb[0].mxu0 %v653
    %v710 = vpop.f32.mrb[0].mxu0
    %v711 = vadd.f32 0.0, %v710
    %v712 = vpop.f32.mrb[0].mxu0
    %v713 = vpop.f32.mrb[0].mxu0
    %v714 = vadd.f32 0.0, %v713
    %v715 = vpop.f32.mrb[0].mxu0
    %716 = vmatprep.mubr.bf16.mxu0 0
    %717 = vmatmul.mubr.bf16.gmra.mrb[0].mxu0 %v654
    %v718 = vpop.f32.mrb[0].mxu0
    %v719 = vadd.f32 0.0, %v718
    %v720 = vpop.f32.mrb[0].mxu0
    %v721 = vpop.f32.mrb[0].mxu0
    %v722 = vadd.f32 0.0, %v721
    %v723 = vpop.f32.mrb[0].mxu0
    %724 = vmatprep.mubr.bf16.mxu0 0
    %725 = vmatmul.mubr.bf16.gmra.mrb[0].mxu0 %v655
    %v726 = vpop.f32.mrb[0].mxu0
    %v727 = vadd.f32 0.0, %v726
    %v728 = vpop.f32.mrb[0].mxu0
    %v729 = vpop.f32.mrb[0].mxu0
    %v730 = vadd.f32 0.0, %v729
    %v731 = vpop.f32.mrb[0].mxu0
    %732 = vmatprep.mubr.bf16.mxu0 0
    %733 = vmatmul.mubr.bf16.gmra.mrb[0].mxu0 %v656
    %v734 = vpop.f32.mrb[0].mxu0
    %v735 = vadd.f32 0.0, %v734
    %v736 = vpop.f32.mrb[0].mxu0
    %v737 = vpop.f32.mrb[0].mxu0
    %v738 = vadd.f32 0.0, %v737
    %v739 = vpop.f32.mrb[0].mxu0
    %740 = vmatprep.mubr.bf16.mxu0 0
    %741 = vmatmul.mubr.bf16.gmra.mrb[0].mxu0 %v657
    %v742 = vpop.f32.mrb[0].mxu0
    %v743 = vadd.f32 0.0, %v742
    %v744 = vpop.f32.mrb[0].mxu0
    %v745 = vpop.f32.mrb[0].mxu0
    %v746 = vadd.f32 0.0, %v745
    %v747 = vpop.f32.mrb[0].mxu0
    %748 = vmatprep.mubr.bf16.mxu0 0
    %749 = vmatmul.mubr.bf16.gmra.mrb[0].mxu0 %v658
    %v750 = vpop.f32.mrb[0].mxu0
    %v751 = vadd.f32 0.0, %v750
    %v752 = vpop.f32.mrb[0].mxu0
    %v753 = vpop.f32.mrb[0].mxu0
    %v754 = vadd.f32 0.0, %v753
    %v755 = vpop.f32.mrb[0].mxu0
    %756 = vmatprep.mubr.bf16.mxu0 0
    %757 = vmatmul.mubr.bf16.gmra.mrb[0].mxu0 %v659
    %v758 = vpop.f32.mrb[0].mxu0
    %v759 = vadd.f32 0.0, %v758
    %v760 = vpop.f32.mrb[0].mxu0
    %v761 = vpop.f32.mrb[0].mxu0
    %v762 = vadd.f32 0.0, %v761
    %v763 = vpop.f32.mrb[0].mxu0
    %764 = vdwg.mxu0
    %v765 = vmul.f32 %v703, %v519
    %v766 = vmul.f32 %v706, %v524
    %v767 = vmul.f32 %v711, %v529
    %v768 = vmul.f32 %v714, %v534
    %v769 = vmul.f32 %v719, %v539
    %v770 = vmul.f32 %v722, %v544
    %v771 = vmul.f32 %v727, %v549
    %v772 = vmul.f32 %v730, %v554
    %v773 = vmul.f32 %v735, %v559
    %v774 = vmul.f32 %v738, %v564
    %v775 = vmul.f32 %v743, %v569
    %v776 = vmul.f32 %v746, %v574
    %v777 = vmul.f32 %v751, %v579
    %v778 = vmul.f32 %v754, %v584
    %v779 = vmul.f32 %v759, %v589
    %v780 = vmul.f32 %v762, %v594
    %v782 = vlaneseq
    %v783 = vshrl.u32 %v782, 7
    %v784 = vsub.s32 0, %v783
    %v785 = vrot.slane %v360, %v784
    %v787 = vadd.f32 %v765, %v785
    %v788 = vadd.f32 %v766, %v785
    %v789 = vadd.f32 %v767, %v785
    %v790 = vadd.f32 %v768, %v785
    %v791 = vadd.f32 %v769, %v785
    %v792 = vadd.f32 %v770, %v785
    %v793 = vadd.f32 %v771, %v785
    %v794 = vadd.f32 %v772, %v785
    %v795 = vadd.f32 %v773, %v785
    %v796 = vadd.f32 %v774, %v785
    %v797 = vadd.f32 %v775, %v785
    %v798 = vadd.f32 %v776, %v785
    %v799 = vadd.f32 %v777, %v785
    %v800 = vadd.f32 %v778, %v785
    %v801 = vadd.f32 %v779, %v785
    %v802 = vadd.f32 %v780, %v785
    %v803 = vmul.f32 %v787, %v235
    %v804 = vmul.f32 %v788, %v240
    %v805 = vmul.f32 %v789, %v245
    %v806 = vmul.f32 %v790, %v250
    %v807 = vmul.f32 %v791, %v255
    %v808 = vmul.f32 %v792, %v260
    %v809 = vmul.f32 %v793, %v265
    %v810 = vmul.f32 %v794, %v270
    %v811 = vmul.f32 %v795, %v275
    %v812 = vmul.f32 %v796, %v280
    %v813 = vmul.f32 %v797, %v285
    %v814 = vmul.f32 %v798, %v290
    %v815 = vmul.f32 %v799, %v295
    %v816 = vmul.f32 %v800, %v300
    %v817 = vmul.f32 %v801, %v305
    %v818 = vmul.f32 %v802, %v310
    %v819 = vadd.f32 %v803, %v804
    %v820 = vadd.f32 %v819, %v805
    %v821 = vadd.f32 %v820, %v806
    %v822 = vadd.f32 %v821, %v807
    %v823 = vadd.f32 %v822, %v808
    %v824 = vadd.f32 %v823, %v809
    %v825 = vadd.f32 %v824, %v810
    %v826 = vadd.f32 %v825, %v811
    %v827 = vadd.f32 %v826, %v812
    %v828 = vadd.f32 %v827, %v813
    %v829 = vadd.f32 %v828, %v814
    %v830 = vadd.f32 %v829, %v815
    %v831 = vadd.f32 %v830, %v816
    %v832 = vadd.f32 %v831, %v817
    %v833 = vadd.f32 %v832, %v818
    %v834 = vrot.slane %v833, 4
    %v835 = vadd.f32 %v833, %v834
    %v836 = vrot.slane %v835, 2
    %v837 = vadd.f32 %v835, %v836
    %v838 = vrot.slane %v837, 1
    %v839 = vadd.f32 %v837, %v838
    %v840 = vstv %s199
    %v841 = vmul.f32 %v839, %v840
    %v842 = vsub.f32 %v787, %v841
    %v843 = vsub.f32 %v788, %v841
    %v844 = vsub.f32 %v789, %v841
    %v845 = vsub.f32 %v790, %v841
    %v846 = vsub.f32 %v791, %v841
    %v847 = vsub.f32 %v792, %v841
    %v848 = vsub.f32 %v793, %v841
    %v849 = vsub.f32 %v794, %v841
    %v850 = vsub.f32 %v795, %v841
    %v851 = vsub.f32 %v796, %v841
    %v852 = vsub.f32 %v797, %v841
    %v853 = vsub.f32 %v798, %v841
    %v854 = vsub.f32 %v799, %v841
    %v855 = vsub.f32 %v800, %v841
    %v856 = vsub.f32 %v801, %v841
    %v857 = vsub.f32 %v802, %v841
    %v858 = vmul.f32 %v842, %v235
    %v859 = vmul.f32 %v843, %v240
    %v860 = vmul.f32 %v844, %v245
    %v861 = vmul.f32 %v845, %v250
    %v862 = vmul.f32 %v846, %v255
    %v863 = vmul.f32 %v847, %v260
    %v864 = vmul.f32 %v848, %v265
    %v865 = vmul.f32 %v849, %v270
    %v866 = vmul.f32 %v850, %v275
    %v867 = vmul.f32 %v851, %v280
    %v868 = vmul.f32 %v852, %v285
    %v869 = vmul.f32 %v853, %v290
    %v870 = vmul.f32 %v854, %v295
    %v871 = vmul.f32 %v855, %v300
    %v872 = vmul.f32 %v856, %v305
    %v873 = vmul.f32 %v857, %v310
    %v874 = vmul.f32 %v858, %v858
    %v875 = vmul.f32 %v859, %v859
    %v876 = vmul.f32 %v860, %v860
    %v877 = vmul.f32 %v861, %v861
    %v878 = vmul.f32 %v862, %v862
    %v879 = vmul.f32 %v863, %v863
    %v880 = vmul.f32 %v864, %v864
    %v881 = vmul.f32 %v865, %v865
    %v882 = vmul.f32 %v866, %v866
    %v883 = vmul.f32 %v867, %v867
    %v884 = vmul.f32 %v868, %v868
    %v885 = vmul.f32 %v869, %v869
    %v886 = vmul.f32 %v870, %v870
    %v887 = vmul.f32 %v871, %v871
    %v888 = vmul.f32 %v872, %v872
    %v889 = vmul.f32 %v873, %v873
    %v890 = vadd.f32 %v874, %v875
    %v891 = vadd.f32 %v890, %v876
    %v892 = vadd.f32 %v891, %v877
    %v893 = vadd.f32 %v892, %v878
    %v894 = vadd.f32 %v893, %v879
    %v895 = vadd.f32 %v894, %v880
    %v896 = vadd.f32 %v895, %v881
    %v897 = vadd.f32 %v896, %v882
    %v898 = vadd.f32 %v897, %v883
    %v899 = vadd.f32 %v898, %v884
    %v900 = vadd.f32 %v899, %v885
    %v901 = vadd.f32 %v900, %v886
    %v902 = vadd.f32 %v901, %v887
    %v903 = vadd.f32 %v902, %v888
    %v904 = vadd.f32 %v903, %v889
    %v905 = vrot.slane %v904, 4
    %v906 = vadd.f32 %v904, %v905
    %v907 = vrot.slane %v906, 2
    %v908 = vadd.f32 %v906, %v907
    %v909 = vrot.slane %v908, 1
    %v910 = vadd.f32 %v908, %v909
    %v911 = vmul.f32 %v910, %v840
    %v912 = vadd.f32 %v911, 1e-05
    %v913 = vrsqrt.pop %v912
    %v914 = vmul.f32 %v361, %v913
    %v916 = vlaneseq
    %v917 = vshrl.u32 %v916, 7
    %v918 = vsub.s32 0, %v917
    %v919 = vrot.slane %v914, %v918
    %v921 = vmul.f32 %v842, %v919
    %v922 = vmul.f32 %v843, %v919
    %v923 = vmul.f32 %v844, %v919
    %v924 = vmul.f32 %v845, %v919
    %v925 = vmul.f32 %v846, %v919
    %v926 = vmul.f32 %v847, %v919
    %v927 = vmul.f32 %v848, %v919
    %v928 = vmul.f32 %v849, %v919
    %v929 = vmul.f32 %v850, %v919
    %v930 = vmul.f32 %v851, %v919
    %v931 = vmul.f32 %v852, %v919
    %v932 = vmul.f32 %v853, %v919
    %v933 = vmul.f32 %v854, %v919
    %v934 = vmul.f32 %v855, %v919
    %v935 = vmul.f32 %v856, %v919
    %v936 = vmul.f32 %v857, %v919
    %v938 = vlaneseq
    %v939 = vshrl.u32 %v938, 7
    %v940 = vsub.s32 0, %v939
    %v941 = vrot.slane %v362, %v940
    %v943 = vadd.f32 %v921, %v941
    %v944 = vadd.f32 %v922, %v941
    %v945 = vadd.f32 %v923, %v941
    %v946 = vadd.f32 %v924, %v941
    %v947 = vadd.f32 %v925, %v941
    %v948 = vadd.f32 %v926, %v941
    %v949 = vadd.f32 %v927, %v941
    %v950 = vadd.f32 %v928, %v941
    %v951 = vadd.f32 %v929, %v941
    %v952 = vadd.f32 %v930, %v941
    %v953 = vadd.f32 %v931, %v941
    %v954 = vadd.f32 %v932, %v941
    %v955 = vadd.f32 %v933, %v941
    %v956 = vadd.f32 %v934, %v941
    %v957 = vadd.f32 %v935, %v941
    %v958 = vadd.f32 %v936, %v941
    %v959 = vmax.f32 %v943, 0.0
    %v960 = vmax.f32 %v944, 0.0
    %v961 = vmax.f32 %v945, 0.0
    %v962 = vmax.f32 %v946, 0.0
    %v963 = vmax.f32 %v947, 0.0
    %v964 = vmax.f32 %v948, 0.0
    %v965 = vmax.f32 %v949, 0.0
    %v966 = vmax.f32 %v950, 0.0
    %v967 = vmax.f32 %v951, 0.0
    %v968 = vmax.f32 %v952, 0.0
    %v969 = vmax.f32 %v953, 0.0
    %v970 = vmax.f32 %v954, 0.0
    %v971 = vmax.f32 %v955, 0.0
    %v972 = vmax.f32 %v956, 0.0
    %v973 = vmax.f32 %v957, 0.0
    %v974 = vmax.f32 %v958, 0.0
    %v975 = vadd.f32 %v959, %v200
    %v976 = vadd.f32 %v960, %v201
    %v977 = vadd.f32 %v961, %v202
    %v978 = vadd.f32 %v962, %v203
    %v979 = vadd.f32 %v963, %v204
    %v980 = vadd.f32 %v964, %v205
    %v981 = vadd.f32 %v965, %v206
    %v982 = vadd.f32 %v966, %v207
    %v983 = vadd.f32 %v967, %v208
    %v984 = vadd.f32 %v968, %v209
    %v985 = vadd.f32 %v969, %v210
    %v986 = vadd.f32 %v970, %v211
    %v987 = vadd.f32 %v971, %v212
    %v988 = vadd.f32 %v972, %v213
    %v989 = vadd.f32 %v973, %v214
    %v990 = vadd.f32 %v974, %v215
    %s991 = scalar_lea.vmem %s9, 64
    %v992 = vld [vmem:[%s991] sm:$0xf]
    %v993 = vld [vmem:[%s991 + $0x4] sm:$0xf]
    %v994 = vld [vmem:[%s991 + $0x8] sm:$0xf]
    %v995 = vld [vmem:[%s991 + $0xc] sm:$0xf]
    %v996 = vld [vmem:[%s991 + $0x10] sm:$0xf]
    %v997 = vld [vmem:[%s991 + $0x14] sm:$0xf]
    %v998 = vld [vmem:[%s991 + $0x18] sm:$0xf]
    %v999 = vld [vmem:[%s991 + $0x1c] sm:$0xf]
    %v1000 = vld [vmem:[%s991 + $0x20] sm:$0xf]
    %v1001 = vld [vmem:[%s991 + $0x24] sm:$0xf]
    %v1002 = vld [vmem:[%s991 + $0x28] sm:$0xf]
    %v1003 = vld [vmem:[%s991 + $0x2c] sm:$0xf]
    %v1004 = vld [vmem:[%s991 + $0x30] sm:$0xf]
    %v1005 = vld [vmem:[%s991 + $0x34] sm:$0xf]
    %v1006 = vld [vmem:[%s991 + $0x38] sm:$0xf]
    %v1007 = vld [vmem:[%s991 + $0x3c] sm:$0xf]
    %s1008 = scalar_lea.vmem [#allocation9], 1
    %v1009 = vld [vmem:[%s1008] sm:$0x1]
    %s1010 = scalar_lea.vmem [#allocation11], 1
    %v1011 = vld [vmem:[%s1010] sm:$0x1]
    %s1012 = scalar_lea.vmem [#allocation12], 1
    %v1013 = vld [vmem:[%s1012] sm:$0x1]
    %v1014 = vpack.c.bf16 %v976, %v975
    %v1015 = vpack.c.bf16 %v978, %v977
    %v1016 = vpack.c.bf16 %v980, %v979
    %v1017 = vpack.c.bf16 %v982, %v981
    %v1018 = vpack.c.bf16 %v984, %v983
    %v1019 = vpack.c.bf16 %v986, %v985
    %v1020 = vpack.c.bf16 %v988, %v987
    %v1021 = vpack.c.bf16 %v990, %v989
    %v1038 = vunpack.c.l.b16 %v992
    %v1039 = vunpack.c.l.b16 %v993
    %v1040 = vunpack.c.l.b16 %v994
    %v1041 = vunpack.c.l.b16 %v995
    %v1042 = vunpack.c.l.b16 %v996
    %v1043 = vunpack.c.l.b16 %v997
    %v1044 = vunpack.c.l.b16 %v998
    %v1045 = vunpack.c.l.b16 %v999
    %v1046 = vunpack.c.l.b16 %v1000
    %v1047 = vunpack.c.l.b16 %v1001
    %v1048 = vunpack.c.l.b16 %v1002
    %v1049 = vunpack.c.l.b16 %v1003
    %v1050 = vunpack.c.l.b16 %v1004
    %v1051 = vunpack.c.l.b16 %v1005
    %v1052 = vunpack.c.l.b16 %v1006
    %v1053 = vunpack.c.l.b16 %v1007
    %v1054 = vpack.c.b16 %v1039, %v1038
    %v1055 = vpack.c.b16 %v1041, %v1040
    %v1056 = vpack.c.b16 %v1043, %v1042
    %v1057 = vpack.c.b16 %v1045, %v1044
    %v1058 = vpack.c.b16 %v1047, %v1046
    %v1059 = vpack.c.b16 %v1049, %v1048
    %v1060 = vpack.c.b16 %v1051, %v1050
    %v1061 = vpack.c.b16 %v1053, %v1052
    %1070 = vmatprep.subr.bf16.mxu0 0
    %1071 = vmatpush1.bf16.msra.mxu0 %v1054
    %1072 = vmatprep.subr.bf16.mxu0 0
    %1073 = vmatpush1.bf16.msra.mxu0 %v1055
    %1074 = vmatprep.subr.bf16.mxu0 0
    %1075 = vmatpush1.bf16.msra.mxu0 %v1056
    %1076 = vmatprep.subr.bf16.mxu0 0
    %1077 = vmatpush1.bf16.msra.mxu0 %v1057
    %1078 = vmatprep.subr.bf16.mxu0 0
    %1079 = vmatpush1.bf16.msra.mxu0 %v1058
    %1080 = vmatprep.subr.bf16.mxu0 0
    %1081 = vmatpush1.bf16.msra.mxu0 %v1059
    %1082 = vmatprep.subr.bf16.mxu0 0
    %1083 = vmatpush1.bf16.msra.mxu0 %v1060
    %1084 = vmatprep.subr.bf16.mxu0 0
    %1085 = vmatpush1.bf16.msra.mxu0 %v1061
    %1086 = vmatprep.subr.bf16.mxu0 0
    %1087 = vmatpush1.bf16.msra.mxu0 0
    %1088 = vmatprep.subr.bf16.mxu0 0
    %1089 = vmatpush1.bf16.msra.mxu0 0
    %1090 = vmatprep.subr.bf16.mxu0 0
    %1091 = vmatpush1.bf16.msra.mxu0 0
    %1092 = vmatprep.subr.bf16.mxu0 0
    %1093 = vmatpush1.bf16.msra.mxu0 0
    %1094 = vmatprep.subr.bf16.mxu0 0
    %1095 = vmatpush1.bf16.msra.mxu0 0
    %1096 = vmatprep.subr.bf16.mxu0 0
    %1097 = vmatpush1.bf16.msra.mxu0 0
    %1098 = vmatprep.subr.bf16.mxu0 0
    %1099 = vmatpush1.bf16.msra.mxu0 0
    %1100 = vmatprep.subr.bf16.mxu0 0
    %1101 = vmatpush1.bf16.msra.mxu0 0
    %1102 = vmatprep.mubr.bf16.mxu0 0
    %1103 = vmatmul.mubr.bf16.gmra.mrb[0].mxu0 %v1014
    %v1104 = vpop.f32.mrb[0].mxu0
    %v1105 = vadd.f32 0.0, %v1104
    %v1106 = vpop.f32.mrb[0].mxu0
    %v1107 = vpop.f32.mrb[0].mxu0
    %v1108 = vadd.f32 0.0, %v1107
    %v1109 = vpop.f32.mrb[0].mxu0
    %1110 = vmatprep.mubr.bf16.mxu0 0
    %1111 = vmatmul.mubr.bf16.gmra.mrb[0].mxu0 %v1015
    %v1112 = vpop.f32.mrb[0].mxu0
    %v1113 = vadd.f32 0.0, %v1112
    %v1114 = vpop.f32.mrb[0].mxu0
    %v1115 = vpop.f32.mrb[0].mxu0
    %v1116 = vadd.f32 0.0, %v1115
    %v1117 = vpop.f32.mrb[0].mxu0
    %1118 = vmatprep.mubr.bf16.mxu0 0
    %1119 = vmatmul.mubr.bf16.gmra.mrb[0].mxu0 %v1016
    %v1120 = vpop.f32.mrb[0].mxu0
    %v1121 = vadd.f32 0.0, %v1120
    %v1122 = vpop.f32.mrb[0].mxu0
    %v1123 = vpop.f32.mrb[0].mxu0
    %v1124 = vadd.f32 0.0, %v1123
    %v1125 = vpop.f32.mrb[0].mxu0
    %1126 = vmatprep.mubr.bf16.mxu0 0
    %1127 = vmatmul.mubr.bf16.gmra.mrb[0].mxu0 %v1017
    %v1128 = vpop.f32.mrb[0].mxu0
    %v1129 = vadd.f32 0.0, %v1128
    %v1130 = vpop.f32.mrb[0].mxu0
    %v1131 = vpop.f32.mrb[0].mxu0
    %v1132 = vadd.f32 0.0, %v1131
    %v1133 = vpop.f32.mrb[0].mxu0
    %1134 = vmatprep.mubr.bf16.mxu0 0
    %1135 = vmatmul.mubr.bf16.gmra.mrb[0].mxu0 %v1018
    %v1136 = vpop.f32.mrb[0].mxu0
    %v1137 = vadd.f32 0.0, %v1136
    %v1138 = vpop.f32.mrb[0].mxu0
    %v1139 = vpop.f32.mrb[0].mxu0
    %v1140 = vadd.f32 0.0, %v1139
    %v1141 = vpop.f32.mrb[0].mxu0
    %1142 = vmatprep.mubr.bf16.mxu0 0
    %1143 = vmatmul.mubr.bf16.gmra.mrb[0].mxu0 %v1019
    %v1144 = vpop.f32.mrb[0].mxu0
    %v1145 = vadd.f32 0.0, %v1144
    %v1146 = vpop.f32.mrb[0].mxu0
    %v1147 = vpop.f32.mrb[0].mxu0
    %v1148 = vadd.f32 0.0, %v1147
    %v1149 = vpop.f32.mrb[0].mxu0
    %1150 = vmatprep.mubr.bf16.mxu0 0
    %1151 = vmatmul.mubr.bf16.gmra.mrb[0].mxu0 %v1020
    %v1152 = vpop.f32.mrb[0].mxu0
    %v1153 = vadd.f32 0.0, %v1152
    %v1154 = vpop.f32.mrb[0].mxu0
    %v1155 = vpop.f32.mrb[0].mxu0
    %v1156 = vadd.f32 0.0, %v1155
    %v1157 = vpop.f32.mrb[0].mxu0
    %1158 = vmatprep.mubr.bf16.mxu0 0
    %1159 = vmatmul.mubr.bf16.gmra.mrb[0].mxu0 %v1021
    %v1160 = vpop.f32.mrb[0].mxu0
    %v1161 = vadd.f32 0.0, %v1160
    %v1162 = vpop.f32.mrb[0].mxu0
    %v1163 = vpop.f32.mrb[0].mxu0
    %v1164 = vadd.f32 0.0, %v1163
    %v1165 = vpop.f32.mrb[0].mxu0
    %1166 = vdwg.mxu0
    %v1167 = vmul.f32 %v1105, %v519
    %v1168 = vmul.f32 %v1108, %v524
    %v1169 = vmul.f32 %v1113, %v529
    %v1170 = vmul.f32 %v1116, %v534
    %v1171 = vmul.f32 %v1121, %v539
    %v1172 = vmul.f32 %v1124, %v544
    %v1173 = vmul.f32 %v1129, %v549
    %v1174 = vmul.f32 %v1132, %v554
    %v1175 = vmul.f32 %v1137, %v559
    %v1176 = vmul.f32 %v1140, %v564
    %v1177 = vmul.f32 %v1145, %v569
    %v1178 = vmul.f32 %v1148, %v574
    %v1179 = vmul.f32 %v1153, %v579
    %v1180 = vmul.f32 %v1156, %v584
    %v1181 = vmul.f32 %v1161, %v589
    %v1182 = vmul.f32 %v1164, %v594
    %v1183 = vpack.c.bf16 %v1168, %v1167
    %v1184 = vpack.c.bf16 %v1170, %v1169
    %v1185 = vpack.c.bf16 %v1172, %v1171
    %v1186 = vpack.c.bf16 %v1174, %v1173
    %v1187 = vpack.c.bf16 %v1176, %v1175
    %v1188 = vpack.c.bf16 %v1178, %v1177
    %v1189 = vpack.c.bf16 %v1180, %v1179
    %v1190 = vpack.c.bf16 %v1182, %v1181
    %1191 = vmatprep.subr.bf16.mxu0 0
    %1192 = vmatpush1.bf16.msra.mxu0 %v1183
    %1193 = vmatprep.subr.bf16.mxu0 0
    %1194 = vmatpush1.bf16.msra.mxu0 %v1184
    %1195 = vmatprep.subr.bf16.mxu0 0
    %1196 = vmatpush1.bf16.msra.mxu0 %v1185
    %1197 = vmatprep.subr.bf16.mxu0 0
    %1198 = vmatpush1.bf16.msra.mxu0 %v1186
    %1199 = vmatprep.subr.bf16.mxu0 0
    %1200 = vmatpush1.bf16.msra.mxu0 %v1187
    %1201 = vmatprep.subr.bf16.mxu0 0
    %1202 = vmatpush1.bf16.msra.mxu0 %v1188
    %1203 = vmatprep.subr.bf16.mxu0 0
    %1204 = vmatpush1.bf16.msra.mxu0 %v1189
    %1205 = vmatprep.subr.bf16.mxu0 0
    %1206 = vmatpush1.bf16.msra.mxu0 %v1190
    %1207 = vmatprep.subr.bf16.mxu0 0
    %1208 = vmatpush1.bf16.msra.mxu0 0
    %1209 = vmatprep.subr.bf16.mxu0 0
    %1210 = vmatpush1.bf16.msra.mxu0 0
    %1211 = vmatprep.subr.bf16.mxu0 0
    %1212 = vmatpush1.bf16.msra.mxu0 0
    %1213 = vmatprep.subr.bf16.mxu0 0
    %1214 = vmatpush1.bf16.msra.mxu0 0
    %1215 = vmatprep.subr.bf16.mxu0 0
    %1216 = vmatpush1.bf16.msra.mxu0 0
    %1217 = vmatprep.subr.bf16.mxu0 0
    %1218 = vmatpush1.bf16.msra.mxu0 0
    %1219 = vmatprep.subr.bf16.mxu0 0
    %1220 = vmatpush1.bf16.msra.mxu0 0
    %1221 = vmatprep.subr.bf16.mxu0 0
    %1222 = vmatpush1.bf16.msra.mxu0 0
    %1223 = vmatprep.mubr.bf16.mxu0 0
    %1224 = vmatmul.mubr.bf16.gmra.mrb[0].mxu0 %v652
    %v1225 = vpop.f32.mrb[0].mxu0
    %v1226 = vadd.f32 0.0, %v1225
    %v1227 = vpop.f32.mrb[0].mxu0
    %v1228 = vpop.f32.mrb[0].mxu0
    %v1229 = vadd.f32 0.0, %v1228
    %v1230 = vpop.f32.mrb[0].mxu0
    %1231 = vmatprep.mubr.bf16.mxu0 0
    %1232 = vmatmul.mubr.bf16.gmra.mrb[0].mxu0 %v653
    %v1233 = vpop.f32.mrb[0].mxu0
    %v1234 = vadd.f32 0.0, %v1233
    %v1235 = vpop.f32.mrb[0].mxu0
    %v1236 = vpop.f32.mrb[0].mxu0
    %v1237 = vadd.f32 0.0, %v1236
    %v1238 = vpop.f32.mrb[0].mxu0
    %1239 = vmatprep.mubr.bf16.mxu0 0
    %1240 = vmatmul.mubr.bf16.gmra.mrb[0].mxu0 %v654
    %v1241 = vpop.f32.mrb[0].mxu0
    %v1242 = vadd.f32 0.0, %v1241
    %v1243 = vpop.f32.mrb[0].mxu0
    %v1244 = vpop.f32.mrb[0].mxu0
    %v1245 = vadd.f32 0.0, %v1244
    %v1246 = vpop.f32.mrb[0].mxu0
    %1247 = vmatprep.mubr.bf16.mxu0 0
    %1248 = vmatmul.mubr.bf16.gmra.mrb[0].mxu0 %v655
    %v1249 = vpop.f32.mrb[0].mxu0
    %v1250 = vadd.f32 0.0, %v1249
    %v1251 = vpop.f32.mrb[0].mxu0
    %v1252 = vpop.f32.mrb[0].mxu0
    %v1253 = vadd.f32 0.0, %v1252
    %v1254 = vpop.f32.mrb[0].mxu0
    %1255 = vmatprep.mubr.bf16.mxu0 0
    %1256 = vmatmul.mubr.bf16.gmra.mrb[0].mxu0 %v656
    %v1257 = vpop.f32.mrb[0].mxu0
    %v1258 = vadd.f32 0.0, %v1257
    %v1259 = vpop.f32.mrb[0].mxu0
    %v1260 = vpop.f32.mrb[0].mxu0
    %v1261 = vadd.f32 0.0, %v1260
    %v1262 = vpop.f32.mrb[0].mxu0
    %1263 = vmatprep.mubr.bf16.mxu0 0
    %1264 = vmatmul.mubr.bf16.gmra.mrb[0].mxu0 %v657
    %v1265 = vpop.f32.mrb[0].mxu0
    %v1266 = vadd.f32 0.0, %v1265
    %v1267 = vpop.f32.mrb[0].mxu0
    %v1268 = vpop.f32.mrb[0].mxu0
    %v1269 = vadd.f32 0.0, %v1268
    %v1270 = vpop.f32.mrb[0].mxu0
    %1271 = vmatprep.mubr.bf16.mxu0 0
    %1272 = vmatmul.mubr.bf16.gmra.mrb[0].mxu0 %v658
    %v1273 = vpop.f32.mrb[0].mxu0
    %v1274 = vadd.f32 0.0, %v1273
    %v1275 = vpop.f32.mrb[0].mxu0
    %v1276 = vpop.f32.mrb[0].mxu0
    %v1277 = vadd.f32 0.0, %v1276
    %v1278 = vpop.f32.mrb[0].mxu0
    %1279 = vmatprep.mubr.bf16.mxu0 0
    %1280 = vmatmul.mubr.bf16.gmra.mrb[0].mxu0 %v659
    %v1281 = vpop.f32.mrb[0].mxu0
    %v1282 = vadd.f32 0.0, %v1281
    %v1283 = vpop.f32.mrb[0].mxu0
    %v1284 = vpop.f32.mrb[0].mxu0
    %v1285 = vadd.f32 0.0, %v1284
    %v1286 = vpop.f32.mrb[0].mxu0
    %1287 = vdwg.mxu0
    %v1288 = vmul.f32 %v1226, %v519
    %v1289 = vmul.f32 %v1229, %v524
    %v1290 = vmul.f32 %v1234, %v529
    %v1291 = vmul.f32 %v1237, %v534
    %v1292 = vmul.f32 %v1242, %v539
    %v1293 = vmul.f32 %v1245, %v544
    %v1294 = vmul.f32 %v1250, %v549
    %v1295 = vmul.f32 %v1253, %v554
    %v1296 = vmul.f32 %v1258, %v559
    %v1297 = vmul.f32 %v1261, %v564
    %v1298 = vmul.f32 %v1266, %v569
    %v1299 = vmul.f32 %v1269, %v574
    %v1300 = vmul.f32 %v1274, %v579
    %v1301 = vmul.f32 %v1277, %v584
    %v1302 = vmul.f32 %v1282, %v589
    %v1303 = vmul.f32 %v1285, %v594
    %v1305 = vlaneseq
    %v1306 = vshrl.u32 %v1305, 7
    %v1307 = vsub.s32 0, %v1306
    %v1308 = vrot.slane %v1009, %v1307
    %v1310 = vadd.f32 %v1288, %v1308
    %v1311 = vadd.f32 %v1289, %v1308
    %v1312 = vadd.f32 %v1290, %v1308
    %v1313 = vadd.f32 %v1291, %v1308
    %v1314 = vadd.f32 %v1292, %v1308
    %v1315 = vadd.f32 %v1293, %v1308
    %v1316 = vadd.f32 %v1294, %v1308
    %v1317 = vadd.f32 %v1295, %v1308
    %v1318 = vadd.f32 %v1296, %v1308
    %v1319 = vadd.f32 %v1297, %v1308
    %v1320 = vadd.f32 %v1298, %v1308
    %v1321 = vadd.f32 %v1299, %v1308
    %v1322 = vadd.f32 %v1300, %v1308
    %v1323 = vadd.f32 %v1301, %v1308
    %v1324 = vadd.f32 %v1302, %v1308
    %v1325 = vadd.f32 %v1303, %v1308
    %v1326 = vmul.f32 %v1310, %v235
    %v1327 = vmul.f32 %v1311, %v240
    %v1328 = vmul.f32 %v1312, %v245
    %v1329 = vmul.f32 %v1313, %v250
    %v1330 = vmul.f32 %v1314, %v255
    %v1331 = vmul.f32 %v1315, %v260
    %v1332 = vmul.f32 %v1316, %v265
    %v1333 = vmul.f32 %v1317, %v270
    %v1334 = vmul.f32 %v1318, %v275
    %v1335 = vmul.f32 %v1319, %v280
    %v1336 = vmul.f32 %v1320, %v285
    %v1337 = vmul.f32 %v1321, %v290
    %v1338 = vmul.f32 %v1322, %v295
    %v1339 = vmul.f32 %v1323, %v300
    %v1340 = vmul.f32 %v1324, %v305
    %v1341 = vmul.f32 %v1325, %v310
    %v1342 = vadd.f32 %v1326, %v1327
    %v1343 = vadd.f32 %v1342, %v1328
    %v1344 = vadd.f32 %v1343, %v1329
    %v1345 = vadd.f32 %v1344, %v1330
    %v1346 = vadd.f32 %v1345, %v1331
    %v1347 = vadd.f32 %v1346, %v1332
    %v1348 = vadd.f32 %v1347, %v1333
    %v1349 = vadd.f32 %v1348, %v1334
    %v1350 = vadd.f32 %v1349, %v1335
    %v1351 = vadd.f32 %v1350, %v1336
    %v1352 = vadd.f32 %v1351, %v1337
    %v1353 = vadd.f32 %v1352, %v1338
    %v1354 = vadd.f32 %v1353, %v1339
    %v1355 = vadd.f32 %v1354, %v1340
    %v1356 = vadd.f32 %v1355, %v1341
    %v1357 = vrot.slane %v1356, 4
    %v1358 = vadd.f32 %v1356, %v1357
    %v1359 = vrot.slane %v1358, 2
    %v1360 = vadd.f32 %v1358, %v1359
    %v1361 = vrot.slane %v1360, 1
    %v1362 = vadd.f32 %v1360, %v1361
    %v1363 = vmul.f32 %v1362, %v840
    %v1364 = vsub.f32 %v1310, %v1363
    %v1365 = vsub.f32 %v1311, %v1363
    %v1366 = vsub.f32 %v1312, %v1363
    %v1367 = vsub.f32 %v1313, %v1363
    %v1368 = vsub.f32 %v1314, %v1363
    %v1369 = vsub.f32 %v1315, %v1363
    %v1370 = vsub.f32 %v1316, %v1363
    %v1371 = vsub.f32 %v1317, %v1363
    %v1372 = vsub.f32 %v1318, %v1363
    %v1373 = vsub.f32 %v1319, %v1363
    %v1374 = vsub.f32 %v1320, %v1363
    %v1375 = vsub.f32 %v1321, %v1363
    %v1376 = vsub.f32 %v1322, %v1363
    %v1377 = vsub.f32 %v1323, %v1363
    %v1378 = vsub.f32 %v1324, %v1363
    %v1379 = vsub.f32 %v1325, %v1363
    %v1380 = vmul.f32 %v1364, %v235
    %v1381 = vmul.f32 %v1365, %v240
    %v1382 = vmul.f32 %v1366, %v245
    %v1383 = vmul.f32 %v1367, %v250
    %v1384 = vmul.f32 %v1368, %v255
    %v1385 = vmul.f32 %v1369, %v260
    %v1386 = vmul.f32 %v1370, %v265
    %v1387 = vmul.f32 %v1371, %v270
    %v1388 = vmul.f32 %v1372, %v275
    %v1389 = vmul.f32 %v1373, %v280
    %v1390 = vmul.f32 %v1374, %v285
    %v1391 = vmul.f32 %v1375, %v290
    %v1392 = vmul.f32 %v1376, %v295
    %v1393 = vmul.f32 %v1377, %v300
    %v1394 = vmul.f32 %v1378, %v305
    %v1395 = vmul.f32 %v1379, %v310
    %v1396 = vmul.f32 %v1380, %v1380
    %v1397 = vmul.f32 %v1381, %v1381
    %v1398 = vmul.f32 %v1382, %v1382
    %v1399 = vmul.f32 %v1383, %v1383
    %v1400 = vmul.f32 %v1384, %v1384
    %v1401 = vmul.f32 %v1385, %v1385
    %v1402 = vmul.f32 %v1386, %v1386
    %v1403 = vmul.f32 %v1387, %v1387
    %v1404 = vmul.f32 %v1388, %v1388
    %v1405 = vmul.f32 %v1389, %v1389
    %v1406 = vmul.f32 %v1390, %v1390
    %v1407 = vmul.f32 %v1391, %v1391
    %v1408 = vmul.f32 %v1392, %v1392
    %v1409 = vmul.f32 %v1393, %v1393
    %v1410 = vmul.f32 %v1394, %v1394
    %v1411 = vmul.f32 %v1395, %v1395
    %v1412 = vadd.f32 %v1396, %v1397
    %v1413 = vadd.f32 %v1412, %v1398
    %v1414 = vadd.f32 %v1413, %v1399
    %v1415 = vadd.f32 %v1414, %v1400
    %v1416 = vadd.f32 %v1415, %v1401
    %v1417 = vadd.f32 %v1416, %v1402
    %v1418 = vadd.f32 %v1417, %v1403
    %v1419 = vadd.f32 %v1418, %v1404
    %v1420 = vadd.f32 %v1419, %v1405
    %v1421 = vadd.f32 %v1420, %v1406
    %v1422 = vadd.f32 %v1421, %v1407
    %v1423 = vadd.f32 %v1422, %v1408
    %v1424 = vadd.f32 %v1423, %v1409
    %v1425 = vadd.f32 %v1424, %v1410
    %v1426 = vadd.f32 %v1425, %v1411
    %v1427 = vrot.slane %v1426, 4
    %v1428 = vadd.f32 %v1426, %v1427
    %v1429 = vrot.slane %v1428, 2
    %v1430 = vadd.f32 %v1428, %v1429
    %v1431 = vrot.slane %v1430, 1
    %v1432 = vadd.f32 %v1430, %v1431
    %v1433 = vmul.f32 %v1432, %v840
    %v1434 = vadd.f32 %v1433, 1e-05
    %v1435 = vrsqrt.pop %v1434
    %v1436 = vmul.f32 %v1011, %v1435
    %v1438 = vlaneseq
    %v1439 = vshrl.u32 %v1438, 7
    %v1440 = vsub.s32 0, %v1439
    %v1441 = vrot.slane %v1436, %v1440
    %v1443 = vmul.f32 %v1364, %v1441
    %v1444 = vmul.f32 %v1365, %v1441
    %v1445 = vmul.f32 %v1366, %v1441
    %v1446 = vmul.f32 %v1367, %v1441
    %v1447 = vmul.f32 %v1368, %v1441
    %v1448 = vmul.f32 %v1369, %v1441
    %v1449 = vmul.f32 %v1370, %v1441
    %v1450 = vmul.f32 %v1371, %v1441
    %v1451 = vmul.f32 %v1372, %v1441
    %v1452 = vmul.f32 %v1373, %v1441
    %v1453 = vmul.f32 %v1374, %v1441
    %v1454 = vmul.f32 %v1375, %v1441
    %v1455 = vmul.f32 %v1376, %v1441
    %v1456 = vmul.f32 %v1377, %v1441
    %v1457 = vmul.f32 %v1378, %v1441
    %v1458 = vmul.f32 %v1379, %v1441
    %v1460 = vlaneseq
    %v1461 = vshrl.u32 %v1460, 7
    %v1462 = vsub.s32 0, %v1461
    %v1463 = vrot.slane %v1013, %v1462
    %v1465 = vadd.f32 %v1443, %v1463
    %v1466 = vadd.f32 %v1444, %v1463
    %v1467 = vadd.f32 %v1445, %v1463
    %v1468 = vadd.f32 %v1446, %v1463
    %v1469 = vadd.f32 %v1447, %v1463
    %v1470 = vadd.f32 %v1448, %v1463
    %v1471 = vadd.f32 %v1449, %v1463
    %v1472 = vadd.f32 %v1450, %v1463
    %v1473 = vadd.f32 %v1451, %v1463
    %v1474 = vadd.f32 %v1452, %v1463
    %v1475 = vadd.f32 %v1453, %v1463
    %v1476 = vadd.f32 %v1454, %v1463
    %v1477 = vadd.f32 %v1455, %v1463
    %v1478 = vadd.f32 %v1456, %v1463
    %v1479 = vadd.f32 %v1457, %v1463
    %v1480 = vadd.f32 %v1458, %v1463
    %v1481 = vmax.f32 %v1465, 0.0
    %v1482 = vmax.f32 %v1466, 0.0
    %v1483 = vmax.f32 %v1467, 0.0
    %v1484 = vmax.f32 %v1468, 0.0
    %v1485 = vmax.f32 %v1469, 0.0
    %v1486 = vmax.f32 %v1470, 0.0
    %v1487 = vmax.f32 %v1471, 0.0
    %v1488 = vmax.f32 %v1472, 0.0
    %v1489 = vmax.f32 %v1473, 0.0
    %v1490 = vmax.f32 %v1474, 0.0
    %v1491 = vmax.f32 %v1475, 0.0
    %v1492 = vmax.f32 %v1476, 0.0
    %v1493 = vmax.f32 %v1477, 0.0
    %v1494 = vmax.f32 %v1478, 0.0
    %v1495 = vmax.f32 %v1479, 0.0
    %v1496 = vmax.f32 %v1480, 0.0
    %v1497 = vadd.f32 %v1481, %v975
    %v1498 = vadd.f32 %v1482, %v976
    %v1499 = vadd.f32 %v1483, %v977
    %v1500 = vadd.f32 %v1484, %v978
    %v1501 = vadd.f32 %v1485, %v979
    %v1502 = vadd.f32 %v1486, %v980
    %v1503 = vadd.f32 %v1487, %v981
    %v1504 = vadd.f32 %v1488, %v982
    %v1505 = vadd.f32 %v1489, %v983
    %v1506 = vadd.f32 %v1490, %v984
    %v1507 = vadd.f32 %v1491, %v985
    %v1508 = vadd.f32 %v1492, %v986
    %v1509 = vadd.f32 %v1493, %v987
    %v1510 = vadd.f32 %v1494, %v988
    %v1511 = vadd.f32 %v1495, %v989
    %v1512 = vadd.f32 %v1496, %v990
    %s1513 = scalar_lea.vmem %s9, 128
    %v1514 = vld [vmem:[%s1513] sm:$0xf]
    %v1515 = vld [vmem:[%s1513 + $0x4] sm:$0xf]
    %v1516 = vld [vmem:[%s1513 + $0x8] sm:$0xf]
    %v1517 = vld [vmem:[%s1513 + $0xc] sm:$0xf]
    %v1518 = vld [vmem:[%s1513 + $0x10] sm:$0xf]
    %v1519 = vld [vmem:[%s1513 + $0x14] sm:$0xf]
    %v1520 = vld [vmem:[%s1513 + $0x18] sm:$0xf]
    %v1521 = vld [vmem:[%s1513 + $0x1c] sm:$0xf]
    %v1522 = vld [vmem:[%s1513 + $0x20] sm:$0xf]
    %v1523 = vld [vmem:[%s1513 + $0x24] sm:$0xf]
    %v1524 = vld [vmem:[%s1513 + $0x28] sm:$0xf]
    %v1525 = vld [vmem:[%s1513 + $0x2c] sm:$0xf]
    %v1526 = vld [vmem:[%s1513 + $0x30] sm:$0xf]
    %v1527 = vld [vmem:[%s1513 + $0x34] sm:$0xf]
    %v1528 = vld [vmem:[%s1513 + $0x38] sm:$0xf]
    %v1529 = vld [vmem:[%s1513 + $0x3c] sm:$0xf]
    %s1530 = scalar_lea.vmem [#allocation9], 2
    %v1531 = vld [vmem:[%s1530] sm:$0x1]
    %s1532 = scalar_lea.vmem [#allocation11], 2
    %v1533 = vld [vmem:[%s1532] sm:$0x1]
    %s1534 = scalar_lea.vmem [#allocation12], 2
    %v1535 = vld [vmem:[%s1534] sm:$0x1]
    %v1536 = vpack.c.bf16 %v1498, %v1497
    %v1537 = vpack.c.bf16 %v1500, %v1499
    %v1538 = vpack.c.bf16 %v1502, %v1501
    %v1539 = vpack.c.bf16 %v1504, %v1503
    %v1540 = vpack.c.bf16 %v1506, %v1505
    %v1541 = vpack.c.bf16 %v1508, %v1507
    %v1542 = vpack.c.bf16 %v1510, %v1509
    %v1543 = vpack.c.bf16 %v1512, %v1511
    %v1560 = vunpack.c.l.b16 %v1514
    %v1561 = vunpack.c.l.b16 %v1515
    %v1562 = vunpack.c.l.b16 %v1516
    %v1563 = vunpack.c.l.b16 %v1517
    %v1564 = vunpack.c.l.b16 %v1518
    %v1565 = vunpack.c.l.b16 %v1519
    %v1566 = vunpack.c.l.b16 %v1520
    %v1567 = vunpack.c.l.b16 %v1521
    %v1568 = vunpack.c.l.b16 %v1522
    %v1569 = vunpack.c.l.b16 %v1523
    %v1570 = vunpack.c.l.b16 %v1524
    %v1571 = vunpack.c.l.b16 %v1525
    %v1572 = vunpack.c.l.b16 %v1526
    %v1573 = vunpack.c.l.b16 %v1527
    %v1574 = vunpack.c.l.b16 %v1528
    %v1575 = vunpack.c.l.b16 %v1529
    %v1576 = vpack.c.b16 %v1561, %v1560
    %v1577 = vpack.c.b16 %v1563, %v1562
    %v1578 = vpack.c.b16 %v1565, %v1564
    %v1579 = vpack.c.b16 %v1567, %v1566
    %v1580 = vpack.c.b16 %v1569, %v1568
    %v1581 = vpack.c.b16 %v1571, %v1570
    %v1582 = vpack.c.b16 %v1573, %v1572
    %v1583 = vpack.c.b16 %v1575, %v1574
    %1592 = vmatprep.subr.bf16.mxu0 0
    %1593 = vmatpush1.bf16.msra.mxu0 %v1576
    %1594 = vmatprep.subr.bf16.mxu0 0
    %1595 = vmatpush1.bf16.msra.mxu0 %v1577
    %1596 = vmatprep.subr.bf16.mxu0 0
    %1597 = vmatpush1.bf16.msra.mxu0 %v1578
    %1598 = vmatprep.subr.bf16.mxu0 0
    %1599 = vmatpush1.bf16.msra.mxu0 %v1579
    %1600 = vmatprep.subr.bf16.mxu0 0
    %1601 = vmatpush1.bf16.msra.mxu0 %v1580
    %1602 = vmatprep.subr.bf16.mxu0 0
    %1603 = vmatpush1.bf16.msra.mxu0 %v1581
    %1604 = vmatprep.subr.bf16.mxu0 0
    %1605 = vmatpush1.bf16.msra.mxu0 %v1582
    %1606 = vmatprep.subr.bf16.mxu0 0
    %1607 = vmatpush1.bf16.msra.mxu0 %v1583
    %1608 = vmatprep.subr.bf16.mxu0 0
    %1609 = vmatpush1.bf16.msra.mxu0 0
    %1610 = vmatprep.subr.bf16.mxu0 0
    %1611 = vmatpush1.bf16.msra.mxu0 0
    %1612 = vmatprep.subr.bf16.mxu0 0
    %1613 = vmatpush1.bf16.msra.mxu0 0
    %1614 = vmatprep.subr.bf16.mxu0 0
    %1615 = vmatpush1.bf16.msra.mxu0 0
    %1616 = vmatprep.subr.bf16.mxu0 0
    %1617 = vmatpush1.bf16.msra.mxu0 0
    %1618 = vmatprep.subr.bf16.mxu0 0
    %1619 = vmatpush1.bf16.msra.mxu0 0
    %1620 = vmatprep.subr.bf16.mxu0 0
    %1621 = vmatpush1.bf16.msra.mxu0 0
    %1622 = vmatprep.subr.bf16.mxu0 0
    %1623 = vmatpush1.bf16.msra.mxu0 0
    %1624 = vmatprep.mubr.bf16.mxu0 0
    %1625 = vmatmul.mubr.bf16.gmra.mrb[0].mxu0 %v1536
    %v1626 = vpop.f32.mrb[0].mxu0
    %v1627 = vadd.f32 0.0, %v1626
    %v1628 = vpop.f32.mrb[0].mxu0
    %v1629 = vpop.f32.mrb[0].mxu0
    %v1630 = vadd.f32 0.0, %v1629
    %v1631 = vpop.f32.mrb[0].mxu0
    %1632 = vmatprep.mubr.bf16.mxu0 0
    %1633 = vmatmul.mubr.bf16.gmra.mrb[0].mxu0 %v1537
    %v1634 = vpop.f32.mrb[0].mxu0
    %v1635 = vadd.f32 0.0, %v1634
    %v1636 = vpop.f32.mrb[0].mxu0
    %v1637 = vpop.f32.mrb[0].mxu0
    %v1638 = vadd.f32 0.0, %v1637
    %v1639 = vpop.f32.mrb[0].mxu0
    %1640 = vmatprep.mubr.bf16.mxu0 0
    %1641 = vmatmul.mubr.bf16.gmra.mrb[0].mxu0 %v1538
    %v1642 = vpop.f32.mrb[0].mxu0
    %v1643 = vadd.f32 0.0, %v1642
    %v1644 = vpop.f32.mrb[0].mxu0
    %v1645 = vpop.f32.mrb[0].mxu0
    %v1646 = vadd.f32 0.0, %v1645
    %v1647 = vpop.f32.mrb[0].mxu0
    %1648 = vmatprep.mubr.bf16.mxu0 0
    %1649 = vmatmul.mubr.bf16.gmra.mrb[0].mxu0 %v1539
    %v1650 = vpop.f32.mrb[0].mxu0
    %v1651 = vadd.f32 0.0, %v1650
    %v1652 = vpop.f32.mrb[0].mxu0
    %v1653 = vpop.f32.mrb[0].mxu0
    %v1654 = vadd.f32 0.0, %v1653
    %v1655 = vpop.f32.mrb[0].mxu0
    %1656 = vmatprep.mubr.bf16.mxu0 0
    %1657 = vmatmul.mubr.bf16.gmra.mrb[0].mxu0 %v1540
    %v1658 = vpop.f32.mrb[0].mxu0
    %v1659 = vadd.f32 0.0, %v1658
    %v1660 = vpop.f32.mrb[0].mxu0
    %v1661 = vpop.f32.mrb[0].mxu0
    %v1662 = vadd.f32 0.0, %v1661
    %v1663 = vpop.f32.mrb[0].mxu0
    %1664 = vmatprep.mubr.bf16.mxu0 0
    %1665 = vmatmul.mubr.bf16.gmra.mrb[0].mxu0 %v1541
    %v1666 = vpop.f32.mrb[0].mxu0
    %v1667 = vadd.f32 0.0, %v1666
    %v1668 = vpop.f32.mrb[0].mxu0
    %v1669 = vpop.f32.mrb[0].mxu0
    %v1670 = vadd.f32 0.0, %v1669
    %v1671 = vpop.f32.mrb[0].mxu0
    %1672 = vmatprep.mubr.bf16.mxu0 0
    %1673 = vmatmul.mubr.bf16.gmra.mrb[0].mxu0 %v1542
    %v1674 = vpop.f32.mrb[0].mxu0
    %v1675 = vadd.f32 0.0, %v1674
    %v1676 = vpop.f32.mrb[0].mxu0
    %v1677 = vpop.f32.mrb[0].mxu0
    %v1678 = vadd.f32 0.0, %v1677
    %v1679 = vpop.f32.mrb[0].mxu0
    %1680 = vmatprep.mubr.bf16.mxu0 0
    %1681 = vmatmul.mubr.bf16.gmra.mrb[0].mxu0 %v1543
    %v1682 = vpop.f32.mrb[0].mxu0
    %v1683 = vadd.f32 0.0, %v1682
    %v1684 = vpop.f32.mrb[0].mxu0
    %v1685 = vpop.f32.mrb[0].mxu0
    %v1686 = vadd.f32 0.0, %v1685
    %v1687 = vpop.f32.mrb[0].mxu0
    %1688 = vdwg.mxu0
    %v1689 = vmul.f32 %v1627, %v519
    %v1690 = vmul.f32 %v1630, %v524
    %v1691 = vmul.f32 %v1635, %v529
    %v1692 = vmul.f32 %v1638, %v534
    %v1693 = vmul.f32 %v1643, %v539
    %v1694 = vmul.f32 %v1646, %v544
    %v1695 = vmul.f32 %v1651, %v549
    %v1696 = vmul.f32 %v1654, %v554
    %v1697 = vmul.f32 %v1659, %v559
    %v1698 = vmul.f32 %v1662, %v564
    %v1699 = vmul.f32 %v1667, %v569
    %v1700 = vmul.f32 %v1670, %v574
    %v1701 = vmul.f32 %v1675, %v579
    %v1702 = vmul.f32 %v1678, %v584
    %v1703 = vmul.f32 %v1683, %v589
    %v1704 = vmul.f32 %v1686, %v594
    %v1705 = vpack.c.bf16 %v1690, %v1689
    %v1706 = vpack.c.bf16 %v1692, %v1691
    %v1707 = vpack.c.bf16 %v1694, %v1693
    %v1708 = vpack.c.bf16 %v1696, %v1695
    %v1709 = vpack.c.bf16 %v1698, %v1697
    %v1710 = vpack.c.bf16 %v1700, %v1699
    %v1711 = vpack.c.bf16 %v1702, %v1701
    %v1712 = vpack.c.bf16 %v1704, %v1703
    %1713 = vmatprep.subr.bf16.mxu0 0
    %1714 = vmatpush1.bf16.msra.mxu0 %v1705
    %1715 = vmatprep.subr.bf16.mxu0 0
    %1716 = vmatpush1.bf16.msra.mxu0 %v1706
    %1717 = vmatprep.subr.bf16.mxu0 0
    %1718 = vmatpush1.bf16.msra.mxu0 %v1707
    %1719 = vmatprep.subr.bf16.mxu0 0
    %1720 = vmatpush1.bf16.msra.mxu0 %v1708
    %1721 = vmatprep.subr.bf16.mxu0 0
    %1722 = vmatpush1.bf16.msra.mxu0 %v1709
    %1723 = vmatprep.subr.bf16.mxu0 0
    %1724 = vmatpush1.bf16.msra.mxu0 %v1710
    %1725 = vmatprep.subr.bf16.mxu0 0
    %1726 = vmatpush1.bf16.msra.mxu0 %v1711
    %1727 = vmatprep.subr.bf16.mxu0 0
    %1728 = vmatpush1.bf16.msra.mxu0 %v1712
    %1729 = vmatprep.subr.bf16.mxu0 0
    %1730 = vmatpush1.bf16.msra.mxu0 0
    %1731 = vmatprep.subr.bf16.mxu0 0
    %1732 = vmatpush1.bf16.msra.mxu0 0
    %1733 = vmatprep.subr.bf16.mxu0 0
    %1734 = vmatpush1.bf16.msra.mxu0 0
    %1735 = vmatprep.subr.bf16.mxu0 0
    %1736 = vmatpush1.bf16.msra.mxu0 0
    %1737 = vmatprep.subr.bf16.mxu0 0
    %1738 = vmatpush1.bf16.msra.mxu0 0
    %1739 = vmatprep.subr.bf16.mxu0 0
    %1740 = vmatpush1.bf16.msra.mxu0 0
    %1741 = vmatprep.subr.bf16.mxu0 0
    %1742 = vmatpush1.bf16.msra.mxu0 0
    %1743 = vmatprep.subr.bf16.mxu0 0
    %1744 = vmatpush1.bf16.msra.mxu0 0
    %1745 = vmatprep.mubr.bf16.mxu0 0
    %1746 = vmatmul.mubr.bf16.gmra.mrb[0].mxu0 %v652
    %v1747 = vpop.f32.mrb[0].mxu0
    %v1748 = vadd.f32 0.0, %v1747
    %v1749 = vpop.f32.mrb[0].mxu0
    %v1750 = vpop.f32.mrb[0].mxu0
    %v1751 = vadd.f32 0.0, %v1750
    %v1752 = vpop.f32.mrb[0].mxu0
    %1753 = vmatprep.mubr.bf16.mxu0 0
    %1754 = vmatmul.mubr.bf16.gmra.mrb[0].mxu0 %v653
    %v1755 = vpop.f32.mrb[0].mxu0
    %v1756 = vadd.f32 0.0, %v1755
    %v1757 = vpop.f32.mrb[0].mxu0
    %v1758 = vpop.f32.mrb[0].mxu0
    %v1759 = vadd.f32 0.0, %v1758
    %v1760 = vpop.f32.mrb[0].mxu0
    %1761 = vmatprep.mubr.bf16.mxu0 0
    %1762 = vmatmul.mubr.bf16.gmra.mrb[0].mxu0 %v654
    %v1763 = vpop.f32.mrb[0].mxu0
    %v1764 = vadd.f32 0.0, %v1763
    %v1765 = vpop.f32.mrb[0].mxu0
    %v1766 = vpop.f32.mrb[0].mxu0
    %v1767 = vadd.f32 0.0, %v1766
    %v1768 = vpop.f32.mrb[0].mxu0
    %1769 = vmatprep.mubr.bf16.mxu0 0
    %1770 = vmatmul.mubr.bf16.gmra.mrb[0].mxu0 %v655
    %v1771 = vpop.f32.mrb[0].mxu0
    %v1772 = vadd.f32 0.0, %v1771
    %v1773 = vpop.f32.mrb[0].mxu0
    %v1774 = vpop.f32.mrb[0].mxu0
    %v1775 = vadd.f32 0.0, %v1774
    %v1776 = vpop.f32.mrb[0].mxu0
    %1777 = vmatprep.mubr.bf16.mxu0 0
    %1778 = vmatmul.mubr.bf16.gmra.mrb[0].mxu0 %v656
    %v1779 = vpop.f32.mrb[0].mxu0
    %v1780 = vadd.f32 0.0, %v1779
    %v1781 = vpop.f32.mrb[0].mxu0
    %v1782 = vpop.f32.mrb[0].mxu0
    %v1783 = vadd.f32 0.0, %v1782
    %v1784 = vpop.f32.mrb[0].mxu0
    %1785 = vmatprep.mubr.bf16.mxu0 0
    %1786 = vmatmul.mubr.bf16.gmra.mrb[0].mxu0 %v657
    %v1787 = vpop.f32.mrb[0].mxu0
    %v1788 = vadd.f32 0.0, %v1787
    %v1789 = vpop.f32.mrb[0].mxu0
    %v1790 = vpop.f32.mrb[0].mxu0
    %v1791 = vadd.f32 0.0, %v1790
    %v1792 = vpop.f32.mrb[0].mxu0
    %1793 = vmatprep.mubr.bf16.mxu0 0
    %1794 = vmatmul.mubr.bf16.gmra.mrb[0].mxu0 %v658
    %v1795 = vpop.f32.mrb[0].mxu0
    %v1796 = vadd.f32 0.0, %v1795
    %v1797 = vpop.f32.mrb[0].mxu0
    %v1798 = vpop.f32.mrb[0].mxu0
    %v1799 = vadd.f32 0.0, %v1798
    %v1800 = vpop.f32.mrb[0].mxu0
    %1801 = vmatprep.mubr.bf16.mxu0 0
    %1802 = vmatmul.mubr.bf16.gmra.mrb[0].mxu0 %v659
    %v1803 = vpop.f32.mrb[0].mxu0
    %v1804 = vadd.f32 0.0, %v1803
    %v1805 = vpop.f32.mrb[0].mxu0
    %v1806 = vpop.f32.mrb[0].mxu0
    %v1807 = vadd.f32 0.0, %v1806
    %v1808 = vpop.f32.mrb[0].mxu0
    %1809 = vdwg.mxu0
    %v1810 = vmul.f32 %v1748, %v519
    %v1811 = vmul.f32 %v1751, %v524
    %v1812 = vmul.f32 %v1756, %v529
    %v1813 = vmul.f32 %v1759, %v534
    %v1814 = vmul.f32 %v1764, %v539
    %v1815 = vmul.f32 %v1767, %v544
    %v1816 = vmul.f32 %v1772, %v549
    %v1817 = vmul.f32 %v1775, %v554
    %v1818 = vmul.f32 %v1780, %v559
    %v1819 = vmul.f32 %v1783, %v564
    %v1820 = vmul.f32 %v1788, %v569
    %v1821 = vmul.f32 %v1791, %v574
    %v1822 = vmul.f32 %v1796, %v579
    %v1823 = vmul.f32 %v1799, %v584
    %v1824 = vmul.f32 %v1804, %v589
    %v1825 = vmul.f32 %v1807, %v594
    %v1827 = vlaneseq
    %v1828 = vshrl.u32 %v1827, 7
    %v1829 = vsub.s32 0, %v1828
    %v1830 = vrot.slane %v1531, %v1829
    %v1832 = vadd.f32 %v1810, %v1830
    %v1833 = vadd.f32 %v1811, %v1830
    %v1834 = vadd.f32 %v1812, %v1830
    %v1835 = vadd.f32 %v1813, %v1830
    %v1836 = vadd.f32 %v1814, %v1830
    %v1837 = vadd.f32 %v1815, %v1830
    %v1838 = vadd.f32 %v1816, %v1830
    %v1839 = vadd.f32 %v1817, %v1830
    %v1840 = vadd.f32 %v1818, %v1830
    %v1841 = vadd.f32 %v1819, %v1830
    %v1842 = vadd.f32 %v1820, %v1830
    %v1843 = vadd.f32 %v1821, %v1830
    %v1844 = vadd.f32 %v1822, %v1830
    %v1845 = vadd.f32 %v1823, %v1830
    %v1846 = vadd.f32 %v1824, %v1830
    %v1847 = vadd.f32 %v1825, %v1830
    %v1848 = vmul.f32 %v1832, %v235
    %v1849 = vmul.f32 %v1833, %v240
    %v1850 = vmul.f32 %v1834, %v245
    %v1851 = vmul.f32 %v1835, %v250
    %v1852 = vmul.f32 %v1836, %v255
    %v1853 = vmul.f32 %v1837, %v260
    %v1854 = vmul.f32 %v1838, %v265
    %v1855 = vmul.f32 %v1839, %v270
    %v1856 = vmul.f32 %v1840, %v275
    %v1857 = vmul.f32 %v1841, %v280
    %v1858 = vmul.f32 %v1842, %v285
    %v1859 = vmul.f32 %v1843, %v290
    %v1860 = vmul.f32 %v1844, %v295
    %v1861 = vmul.f32 %v1845, %v300
    %v1862 = vmul.f32 %v1846, %v305
    %v1863 = vmul.f32 %v1847, %v310
    %v1864 = vadd.f32 %v1848, %v1849
    %v1865 = vadd.f32 %v1864, %v1850
    %v1866 = vadd.f32 %v1865, %v1851
    %v1867 = vadd.f32 %v1866, %v1852
    %v1868 = vadd.f32 %v1867, %v1853
    %v1869 = vadd.f32 %v1868, %v1854
    %v1870 = vadd.f32 %v1869, %v1855
    %v1871 = vadd.f32 %v1870, %v1856
    %v1872 = vadd.f32 %v1871, %v1857
    %v1873 = vadd.f32 %v1872, %v1858
    %v1874 = vadd.f32 %v1873, %v1859
    %v1875 = vadd.f32 %v1874, %v1860
    %v1876 = vadd.f32 %v1875, %v1861
    %v1877 = vadd.f32 %v1876, %v1862
    %v1878 = vadd.f32 %v1877, %v1863
    %v1879 = vrot.slane %v1878, 4
    %v1880 = vadd.f32 %v1878, %v1879
    %v1881 = vrot.slane %v1880, 2
    %v1882 = vadd.f32 %v1880, %v1881
    %v1883 = vrot.slane %v1882, 1
    %v1884 = vadd.f32 %v1882, %v1883
    %v1885 = vmul.f32 %v1884, %v840
    %v1886 = vsub.f32 %v1832, %v1885
    %v1887 = vsub.f32 %v1833, %v1885
    %v1888 = vsub.f32 %v1834, %v1885
    %v1889 = vsub.f32 %v1835, %v1885
    %v1890 = vsub.f32 %v1836, %v1885
    %v1891 = vsub.f32 %v1837, %v1885
    %v1892 = vsub.f32 %v1838, %v1885
    %v1893 = vsub.f32 %v1839, %v1885
    %v1894 = vsub.f32 %v1840, %v1885
    %v1895 = vsub.f32 %v1841, %v1885
    %v1896 = vsub.f32 %v1842, %v1885
    %v1897 = vsub.f32 %v1843, %v1885
    %v1898 = vsub.f32 %v1844, %v1885
    %v1899 = vsub.f32 %v1845, %v1885
    %v1900 = vsub.f32 %v1846, %v1885
    %v1901 = vsub.f32 %v1847, %v1885
    %v1902 = vmul.f32 %v1886, %v235
    %v1903 = vmul.f32 %v1887, %v240
    %v1904 = vmul.f32 %v1888, %v245
    %v1905 = vmul.f32 %v1889, %v250
    %v1906 = vmul.f32 %v1890, %v255
    %v1907 = vmul.f32 %v1891, %v260
    %v1908 = vmul.f32 %v1892, %v265
    %v1909 = vmul.f32 %v1893, %v270
    %v1910 = vmul.f32 %v1894, %v275
    %v1911 = vmul.f32 %v1895, %v280
    %v1912 = vmul.f32 %v1896, %v285
    %v1913 = vmul.f32 %v1897, %v290
    %v1914 = vmul.f32 %v1898, %v295
    %v1915 = vmul.f32 %v1899, %v300
    %v1916 = vmul.f32 %v1900, %v305
    %v1917 = vmul.f32 %v1901, %v310
    %v1918 = vmul.f32 %v1902, %v1902
    %v1919 = vmul.f32 %v1903, %v1903
    %v1920 = vmul.f32 %v1904, %v1904
    %v1921 = vmul.f32 %v1905, %v1905
    %v1922 = vmul.f32 %v1906, %v1906
    %v1923 = vmul.f32 %v1907, %v1907
    %v1924 = vmul.f32 %v1908, %v1908
    %v1925 = vmul.f32 %v1909, %v1909
    %v1926 = vmul.f32 %v1910, %v1910
    %v1927 = vmul.f32 %v1911, %v1911
    %v1928 = vmul.f32 %v1912, %v1912
    %v1929 = vmul.f32 %v1913, %v1913
    %v1930 = vmul.f32 %v1914, %v1914
    %v1931 = vmul.f32 %v1915, %v1915
    %v1932 = vmul.f32 %v1916, %v1916
    %v1933 = vmul.f32 %v1917, %v1917
    %v1934 = vadd.f32 %v1918, %v1919
    %v1935 = vadd.f32 %v1934, %v1920
    %v1936 = vadd.f32 %v1935, %v1921
    %v1937 = vadd.f32 %v1936, %v1922
    %v1938 = vadd.f32 %v1937, %v1923
    %v1939 = vadd.f32 %v1938, %v1924
    %v1940 = vadd.f32 %v1939, %v1925
    %v1941 = vadd.f32 %v1940, %v1926
    %v1942 = vadd.f32 %v1941, %v1927
    %v1943 = vadd.f32 %v1942, %v1928
    %v1944 = vadd.f32 %v1943, %v1929
    %v1945 = vadd.f32 %v1944, %v1930
    %v1946 = vadd.f32 %v1945, %v1931
    %v1947 = vadd.f32 %v1946, %v1932
    %v1948 = vadd.f32 %v1947, %v1933
    %v1949 = vrot.slane %v1948, 4
    %v1950 = vadd.f32 %v1948, %v1949
    %v1951 = vrot.slane %v1950, 2
    %v1952 = vadd.f32 %v1950, %v1951
    %v1953 = vrot.slane %v1952, 1
    %v1954 = vadd.f32 %v1952, %v1953
    %v1955 = vmul.f32 %v1954, %v840
    %v1956 = vadd.f32 %v1955, 1e-05
    %v1957 = vrsqrt.pop %v1956
    %v1958 = vmul.f32 %v1533, %v1957
    %v1960 = vlaneseq
    %v1961 = vshrl.u32 %v1960, 7
    %v1962 = vsub.s32 0, %v1961
    %v1963 = vrot.slane %v1958, %v1962
    %v1965 = vmul.f32 %v1886, %v1963
    %v1966 = vmul.f32 %v1887, %v1963
    %v1967 = vmul.f32 %v1888, %v1963
    %v1968 = vmul.f32 %v1889, %v1963
    %v1969 = vmul.f32 %v1890, %v1963
    %v1970 = vmul.f32 %v1891, %v1963
    %v1971 = vmul.f32 %v1892, %v1963
    %v1972 = vmul.f32 %v1893, %v1963
    %v1973 = vmul.f32 %v1894, %v1963
    %v1974 = vmul.f32 %v1895, %v1963
    %v1975 = vmul.f32 %v1896, %v1963
    %v1976 = vmul.f32 %v1897, %v1963
    %v1977 = vmul.f32 %v1898, %v1963
    %v1978 = vmul.f32 %v1899, %v1963
    %v1979 = vmul.f32 %v1900, %v1963
    %v1980 = vmul.f32 %v1901, %v1963
    %v1982 = vlaneseq
    %v1983 = vshrl.u32 %v1982, 7
    %v1984 = vsub.s32 0, %v1983
    %v1985 = vrot.slane %v1535, %v1984
    %v1987 = vadd.f32 %v1965, %v1985
    %v1988 = vadd.f32 %v1966, %v1985
    %v1989 = vadd.f32 %v1967, %v1985
    %v1990 = vadd.f32 %v1968, %v1985
    %v1991 = vadd.f32 %v1969, %v1985
    %v1992 = vadd.f32 %v1970, %v1985
    %v1993 = vadd.f32 %v1971, %v1985
    %v1994 = vadd.f32 %v1972, %v1985
    %v1995 = vadd.f32 %v1973, %v1985
    %v1996 = vadd.f32 %v1974, %v1985
    %v1997 = vadd.f32 %v1975, %v1985
    %v1998 = vadd.f32 %v1976, %v1985
    %v1999 = vadd.f32 %v1977, %v1985
    %v2000 = vadd.f32 %v1978, %v1985
    %v2001 = vadd.f32 %v1979, %v1985
    %v2002 = vadd.f32 %v1980, %v1985
    %v2003 = vmax.f32 %v1987, 0.0
    %v2004 = vmax.f32 %v1988, 0.0
    %v2005 = vmax.f32 %v1989, 0.0
    %v2006 = vmax.f32 %v1990, 0.0
    %v2007 = vmax.f32 %v1991, 0.0
    %v2008 = vmax.f32 %v1992, 0.0
    %v2009 = vmax.f32 %v1993, 0.0
    %v2010 = vmax.f32 %v1994, 0.0
    %v2011 = vmax.f32 %v1995, 0.0
    %v2012 = vmax.f32 %v1996, 0.0
    %v2013 = vmax.f32 %v1997, 0.0
    %v2014 = vmax.f32 %v1998, 0.0
    %v2015 = vmax.f32 %v1999, 0.0
    %v2016 = vmax.f32 %v2000, 0.0
    %v2017 = vmax.f32 %v2001, 0.0
    %v2018 = vmax.f32 %v2002, 0.0
    %v2019 = vadd.f32 %v2003, %v1497
    %v2020 = vadd.f32 %v2004, %v1498
    %v2021 = vadd.f32 %v2005, %v1499
    %v2022 = vadd.f32 %v2006, %v1500
    %v2023 = vadd.f32 %v2007, %v1501
    %v2024 = vadd.f32 %v2008, %v1502
    %v2025 = vadd.f32 %v2009, %v1503
    %v2026 = vadd.f32 %v2010, %v1504
    %v2027 = vadd.f32 %v2011, %v1505
    %v2028 = vadd.f32 %v2012, %v1506
    %v2029 = vadd.f32 %v2013, %v1507
    %v2030 = vadd.f32 %v2014, %v1508
    %v2031 = vadd.f32 %v2015, %v1509
    %v2032 = vadd.f32 %v2016, %v1510
    %v2033 = vadd.f32 %v2017, %v1511
    %v2034 = vadd.f32 %v2018, %v1512
    %v2035 = vld [vmem:[#allocation6] sm:$0xf]
    %v2036 = vld [vmem:[#allocation6 + $0x4] sm:$0xf]
    %v2037 = vld [vmem:[#allocation6 + $0x8] sm:$0xf]
    %v2038 = vld [vmem:[#allocation6 + $0xc] sm:$0xf]
    %v2039 = vld [vmem:[#allocation6 + $0x10] sm:$0xf]
    %v2040 = vld [vmem:[#allocation6 + $0x14] sm:$0xf]
    %v2041 = vld [vmem:[#allocation6 + $0x18] sm:$0xf]
    %v2042 = vld [vmem:[#allocation6 + $0x1c] sm:$0xf]
    %v2043 = vld [vmem:[#allocation6 + $0x20] sm:$0xf]
    %v2044 = vld [vmem:[#allocation6 + $0x24] sm:$0xf]
    %v2045 = vld [vmem:[#allocation6 + $0x28] sm:$0xf]
    %v2046 = vld [vmem:[#allocation6 + $0x2c] sm:$0xf]
    %v2047 = vld [vmem:[#allocation6 + $0x30] sm:$0xf]
    %v2048 = vld [vmem:[#allocation6 + $0x34] sm:$0xf]
    %v2049 = vld [vmem:[#allocation6 + $0x38] sm:$0xf]
    %v2050 = vld [vmem:[#allocation6 + $0x3c] sm:$0xf]
    %v2051 = vld [vmem:[%s4] sm:$0xff]
    %v2052 = vld [vmem:[%s4 + $0x8] sm:$0xff]
    %v2053 = vld [vmem:[%s4 + $0x10] sm:$0xff]
    %v2054 = vld [vmem:[%s4 + $0x18] sm:$0xff]
    %v2055 = vld [vmem:[%s4 + $0x20] sm:$0xff]
    %v2056 = vld [vmem:[%s4 + $0x28] sm:$0xff]
    %v2057 = vld [vmem:[%s4 + $0x30] sm:$0xff]
    %v2058 = vld [vmem:[%s4 + $0x38] sm:$0xff]
    %v2059 = vld [vmem:[%s4 + $0x40] sm:$0xff]
    %v2060 = vld [vmem:[%s4 + $0x48] sm:$0xff]
    %v2061 = vld [vmem:[%s4 + $0x50] sm:$0xff]
    %v2062 = vld [vmem:[%s4 + $0x58] sm:$0xff]
    %v2063 = vld [vmem:[%s4 + $0x60] sm:$0xff]
    %v2064 = vld [vmem:[%s4 + $0x68] sm:$0xff]
    %v2065 = vld [vmem:[%s4 + $0x70] sm:$0xff]
    %v2066 = vld [vmem:[%s4 + $0x78] sm:$0xff]
    %v2067 = vld [vmem:[#allocation14] sm:$0xf]
    %v2068 = vld [vmem:[#allocation14 + $0x4] sm:$0xf]
    %v2069 = vld [vmem:[#allocation14 + $0x8] sm:$0xf]
    %v2070 = vld [vmem:[#allocation14 + $0xc] sm:$0xf]
    %v2071 = vld [vmem:[#allocation14 + $0x10] sm:$0xf]
    %v2072 = vld [vmem:[#allocation14 + $0x14] sm:$0xf]
    %v2073 = vld [vmem:[#allocation14 + $0x18] sm:$0xf]
    %v2074 = vld [vmem:[#allocation14 + $0x1c] sm:$0xf]
    %v2075 = vld [vmem:[#allocation14 + $0x20] sm:$0xf]
    %v2076 = vld [vmem:[#allocation14 + $0x24] sm:$0xf]
    %v2077 = vld [vmem:[#allocation14 + $0x28] sm:$0xf]
    %v2078 = vld [vmem:[#allocation14 + $0x2c] sm:$0xf]
    %v2079 = vld [vmem:[#allocation14 + $0x30] sm:$0xf]
    %v2080 = vld [vmem:[#allocation14 + $0x34] sm:$0xf]
    %v2081 = vld [vmem:[#allocation14 + $0x38] sm:$0xf]
    %v2082 = vld [vmem:[#allocation14 + $0x3c] sm:$0xf]
    %v2083 = vld [vmem:[%s14] sm:$0x1]
    %v2084 = vld [vmem:[%s15] sm:$0x1]
    %v2085 = vld [vmem:[%s16] sm:$0x1]
    %v2102 = vunpack.c.l.b16 %v2067
    %v2103 = vunpack.c.l.b16 %v2068
    %v2104 = vunpack.c.l.b16 %v2069
    %v2105 = vunpack.c.l.b16 %v2070
    %v2106 = vunpack.c.l.b16 %v2071
    %v2107 = vunpack.c.l.b16 %v2072
    %v2108 = vunpack.c.l.b16 %v2073
    %v2109 = vunpack.c.l.b16 %v2074
    %v2110 = vunpack.c.l.b16 %v2075
    %v2111 = vunpack.c.l.b16 %v2076
    %v2112 = vunpack.c.l.b16 %v2077
    %v2113 = vunpack.c.l.b16 %v2078
    %v2114 = vunpack.c.l.b16 %v2079
    %v2115 = vunpack.c.l.b16 %v2080
    %v2116 = vunpack.c.l.b16 %v2081
    %v2117 = vunpack.c.l.b16 %v2082
    %v2118 = vpack.c.b16 %v2103, %v2102
    %v2119 = vpack.c.b16 %v2105, %v2104
    %v2120 = vpack.c.b16 %v2107, %v2106
    %v2121 = vpack.c.b16 %v2109, %v2108
    %v2122 = vpack.c.b16 %v2111, %v2110
    %v2123 = vpack.c.b16 %v2113, %v2112
    %v2124 = vpack.c.b16 %v2115, %v2114
    %v2125 = vpack.c.b16 %v2117, %v2116
    %2134 = vmatprep.subr.bf16.mxu0 0
    %2135 = vmatpush1.bf16.msra.mxu0 %v2118
    %2136 = vmatprep.subr.bf16.mxu0 0
    %2137 = vmatpush1.bf16.msra.mxu0 %v2119
    %2138 = vmatprep.subr.bf16.mxu0 0
    %2139 = vmatpush1.bf16.msra.mxu0 %v2120
    %2140 = vmatprep.subr.bf16.mxu0 0
    %2141 = vmatpush1.bf16.msra.mxu0 %v2121
    %2142 = vmatprep.subr.bf16.mxu0 0
    %2143 = vmatpush1.bf16.msra.mxu0 %v2122
    %2144 = vmatprep.subr.bf16.mxu0 0
    %2145 = vmatpush1.bf16.msra.mxu0 %v2123
    %2146 = vmatprep.subr.bf16.mxu0 0
    %2147 = vmatpush1.bf16.msra.mxu0 %v2124
    %2148 = vmatprep.subr.bf16.mxu0 0
    %2149 = vmatpush1.bf16.msra.mxu0 %v2125
    %2150 = vmatprep.subr.bf16.mxu0 0
    %2151 = vmatpush1.bf16.msra.mxu0 0
    %2152 = vmatprep.subr.bf16.mxu0 0
    %2153 = vmatpush1.bf16.msra.mxu0 0
    %2154 = vmatprep.subr.bf16.mxu0 0
    %2155 = vmatpush1.bf16.msra.mxu0 0
    %2156 = vmatprep.subr.bf16.mxu0 0
    %2157 = vmatpush1.bf16.msra.mxu0 0
    %2158 = vmatprep.subr.bf16.mxu0 0
    %2159 = vmatpush1.bf16.msra.mxu0 0
    %2160 = vmatprep.subr.bf16.mxu0 0
    %2161 = vmatpush1.bf16.msra.mxu0 0
    %2162 = vmatprep.subr.bf16.mxu0 0
    %2163 = vmatpush1.bf16.msra.mxu0 0
    %2164 = vmatprep.subr.bf16.mxu0 0
    %2165 = vmatpush1.bf16.msra.mxu0 0
    %2166 = vmatprep.mubr.bf16.mxu0 0
    %2167 = vmatmul.mubr.bf16.gmra.mrb[0].mxu0 %v363
    %v2168 = vpop.f32.mrb[0].mxu0
    %v2169 = vadd.f32 0.0, %v2168
    %v2170 = vpop.f32.mrb[0].mxu0
    %v2171 = vpop.f32.mrb[0].mxu0
    %v2172 = vadd.f32 0.0, %v2171
    %v2173 = vpop.f32.mrb[0].mxu0
    %2174 = vmatprep.mubr.bf16.mxu0 0
    %2175 = vmatmul.mubr.bf16.gmra.mrb[0].mxu0 %v364
    %v2176 = vpop.f32.mrb[0].mxu0
    %v2177 = vadd.f32 0.0, %v2176
    %v2178 = vpop.f32.mrb[0].mxu0
    %v2179 = vpop.f32.mrb[0].mxu0
    %v2180 = vadd.f32 0.0, %v2179
    %v2181 = vpop.f32.mrb[0].mxu0
    %2182 = vmatprep.mubr.bf16.mxu0 0
    %2183 = vmatmul.mubr.bf16.gmra.mrb[0].mxu0 %v365
    %v2184 = vpop.f32.mrb[0].mxu0
    %v2185 = vadd.f32 0.0, %v2184
    %v2186 = vpop.f32.mrb[0].mxu0
    %v2187 = vpop.f32.mrb[0].mxu0
    %v2188 = vadd.f32 0.0, %v2187
    %v2189 = vpop.f32.mrb[0].mxu0
    %2190 = vmatprep.mubr.bf16.mxu0 0
    %2191 = vmatmul.mubr.bf16.gmra.mrb[0].mxu0 %v366
    %v2192 = vpop.f32.mrb[0].mxu0
    %v2193 = vadd.f32 0.0, %v2192
    %v2194 = vpop.f32.mrb[0].mxu0
    %v2195 = vpop.f32.mrb[0].mxu0
    %v2196 = vadd.f32 0.0, %v2195
    %v2197 = vpop.f32.mrb[0].mxu0
    %2198 = vmatprep.mubr.bf16.mxu0 0
    %2199 = vmatmul.mubr.bf16.gmra.mrb[0].mxu0 %v367
    %v2200 = vpop.f32.mrb[0].mxu0
    %v2201 = vadd.f32 0.0, %v2200
    %v2202 = vpop.f32.mrb[0].mxu0
    %v2203 = vpop.f32.mrb[0].mxu0
    %v2204 = vadd.f32 0.0, %v2203
    %v2205 = vpop.f32.mrb[0].mxu0
    %2206 = vmatprep.mubr.bf16.mxu0 0
    %2207 = vmatmul.mubr.bf16.gmra.mrb[0].mxu0 %v368
    %v2208 = vpop.f32.mrb[0].mxu0
    %v2209 = vadd.f32 0.0, %v2208
    %v2210 = vpop.f32.mrb[0].mxu0
    %v2211 = vpop.f32.mrb[0].mxu0
    %v2212 = vadd.f32 0.0, %v2211
    %v2213 = vpop.f32.mrb[0].mxu0
    %2214 = vmatprep.mubr.bf16.mxu0 0
    %2215 = vmatmul.mubr.bf16.gmra.mrb[0].mxu0 %v369
    %v2216 = vpop.f32.mrb[0].mxu0
    %v2217 = vadd.f32 0.0, %v2216
    %v2218 = vpop.f32.mrb[0].mxu0
    %v2219 = vpop.f32.mrb[0].mxu0
    %v2220 = vadd.f32 0.0, %v2219
    %v2221 = vpop.f32.mrb[0].mxu0
    %2222 = vmatprep.mubr.bf16.mxu0 0
    %2223 = vmatmul.mubr.bf16.gmra.mrb[0].mxu0 %v370
    %v2224 = vpop.f32.mrb[0].mxu0
    %v2225 = vadd.f32 0.0, %v2224
    %v2226 = vpop.f32.mrb[0].mxu0
    %v2227 = vpop.f32.mrb[0].mxu0
    %v2228 = vadd.f32 0.0, %v2227
    %v2229 = vpop.f32.mrb[0].mxu0
    %2230 = vdwg.mxu0
    %2232 = vset.pattern.permute.xlu0 0
    %2233 = vperm.xlu0 %2232, %v2051
    %v2234 = vpop.permute.xlu0 %2233
    %2237 = vset.pattern.permute.xlu0 0
    %2238 = vperm.xlu0 %2237, %v2052
    %v2239 = vpop.permute.xlu0 %2238
    %2242 = vset.pattern.permute.xlu0 0
    %2243 = vperm.xlu0 %2242, %v2053
    %v2244 = vpop.permute.xlu0 %2243
    %2247 = vset.pattern.permute.xlu0 0
    %2248 = vperm.xlu0 %2247, %v2054
    %v2249 = vpop.permute.xlu0 %2248
    %2252 = vset.pattern.permute.xlu0 0
    %2253 = vperm.xlu0 %2252, %v2055
    %v2254 = vpop.permute.xlu0 %2253
    %2257 = vset.pattern.permute.xlu0 0
    %2258 = vperm.xlu0 %2257, %v2056
    %v2259 = vpop.permute.xlu0 %2258
    %2262 = vset.pattern.permute.xlu0 0
    %2263 = vperm.xlu0 %2262, %v2057
    %v2264 = vpop.permute.xlu0 %2263
    %2267 = vset.pattern.permute.xlu0 0
    %2268 = vperm.xlu0 %2267, %v2058
    %v2269 = vpop.permute.xlu0 %2268
    %2272 = vset.pattern.permute.xlu0 0
    %2273 = vperm.xlu0 %2272, %v2059
    %v2274 = vpop.permute.xlu0 %2273
    %2277 = vset.pattern.permute.xlu0 0
    %2278 = vperm.xlu0 %2277, %v2060
    %v2279 = vpop.permute.xlu0 %2278
    %2282 = vset.pattern.permute.xlu0 0
    %2283 = vperm.xlu0 %2282, %v2061
    %v2284 = vpop.permute.xlu0 %2283
    %2287 = vset.pattern.permute.xlu0 0
    %2288 = vperm.xlu0 %2287, %v2062
    %v2289 = vpop.permute.xlu0 %2288
    %2292 = vset.pattern.permute.xlu0 0
    %2293 = vperm.xlu0 %2292, %v2063
    %v2294 = vpop.permute.xlu0 %2293
    %2297 = vset.pattern.permute.xlu0 0
    %2298 = vperm.xlu0 %2297, %v2064
    %v2299 = vpop.permute.xlu0 %2298
    %2302 = vset.pattern.permute.xlu0 0
    %2303 = vperm.xlu0 %2302, %v2065
    %v2304 = vpop.permute.xlu0 %2303
    %2307 = vset.pattern.permute.xlu0 0
    %2308 = vperm.xlu0 %2307, %v2066
    %v2309 = vpop.permute.xlu0 %2308
    %v2311 = vmul.f32 %v2169, %v2234
    %v2312 = vmul.f32 %v2172, %v2239
    %v2313 = vmul.f32 %v2177, %v2244
    %v2314 = vmul.f32 %v2180, %v2249
    %v2315 = vmul.f32 %v2185, %v2254
    %v2316 = vmul.f32 %v2188, %v2259
    %v2317 = vmul.f32 %v2193, %v2264
    %v2318 = vmul.f32 %v2196, %v2269
    %v2319 = vmul.f32 %v2201, %v2274
    %v2320 = vmul.f32 %v2204, %v2279
    %v2321 = vmul.f32 %v2209, %v2284
    %v2322 = vmul.f32 %v2212, %v2289
    %v2323 = vmul.f32 %v2217, %v2294
    %v2324 = vmul.f32 %v2220, %v2299
    %v2325 = vmul.f32 %v2225, %v2304
    %v2326 = vmul.f32 %v2228, %v2309
    %v2327 = vpack.c.bf16 %v2312, %v2311
    %v2328 = vpack.c.bf16 %v2314, %v2313
    %v2329 = vpack.c.bf16 %v2316, %v2315
    %v2330 = vpack.c.bf16 %v2318, %v2317
    %v2331 = vpack.c.bf16 %v2320, %v2319
    %v2332 = vpack.c.bf16 %v2322, %v2321
    %v2333 = vpack.c.bf16 %v2324, %v2323
    %v2334 = vpack.c.bf16 %v2326, %v2325
    %v2351 = vunpack.c.l.b16 %v2035
    %v2352 = vunpack.c.l.b16 %v2036
    %v2353 = vunpack.c.l.b16 %v2037
    %v2354 = vunpack.c.l.b16 %v2038
    %v2355 = vunpack.c.l.b16 %v2039
    %v2356 = vunpack.c.l.b16 %v2040
    %v2357 = vunpack.c.l.b16 %v2041
    %v2358 = vunpack.c.l.b16 %v2042
    %v2359 = vunpack.c.l.b16 %v2043
    %v2360 = vunpack.c.l.b16 %v2044
    %v2361 = vunpack.c.l.b16 %v2045
    %v2362 = vunpack.c.l.b16 %v2046
    %v2363 = vunpack.c.l.b16 %v2047
    %v2364 = vunpack.c.l.b16 %v2048
    %v2365 = vunpack.c.l.b16 %v2049
    %v2366 = vunpack.c.l.b16 %v2050
    %v2367 = vpack.c.b16 %v2352, %v2351
    %v2368 = vpack.c.b16 %v2354, %v2353
    %v2369 = vpack.c.b16 %v2356, %v2355
    %v2370 = vpack.c.b16 %v2358, %v2357
    %v2371 = vpack.c.b16 %v2360, %v2359
    %v2372 = vpack.c.b16 %v2362, %v2361
    %v2373 = vpack.c.b16 %v2364, %v2363
    %v2374 = vpack.c.b16 %v2366, %v2365
    %2383 = vmatprep.subr.bf16.mxu0 0
    %2384 = vmatpush1.bf16.msra.mxu0 %v2327
    %2385 = vmatprep.subr.bf16.mxu0 0
    %2386 = vmatpush1.bf16.msra.mxu0 %v2328
    %2387 = vmatprep.subr.bf16.mxu0 0
    %2388 = vmatpush1.bf16.msra.mxu0 %v2329
    %2389 = vmatprep.subr.bf16.mxu0 0
    %2390 = vmatpush1.bf16.msra.mxu0 %v2330
    %2391 = vmatprep.subr.bf16.mxu0 0
    %2392 = vmatpush1.bf16.msra.mxu0 %v2331
    %2393 = vmatprep.subr.bf16.mxu0 0
    %2394 = vmatpush1.bf16.msra.mxu0 %v2332
    %2395 = vmatprep.subr.bf16.mxu0 0
    %2396 = vmatpush1.bf16.msra.mxu0 %v2333
    %2397 = vmatprep.subr.bf16.mxu0 0
    %2398 = vmatpush1.bf16.msra.mxu0 %v2334
    %2399 = vmatprep.subr.bf16.mxu0 0
    %2400 = vmatpush1.bf16.msra.mxu0 0
    %2401 = vmatprep.subr.bf16.mxu0 0
    %2402 = vmatpush1.bf16.msra.mxu0 0
    %2403 = vmatprep.subr.bf16.mxu0 0
    %2404 = vmatpush1.bf16.msra.mxu0 0
    %2405 = vmatprep.subr.bf16.mxu0 0
    %2406 = vmatpush1.bf16.msra.mxu0 0
    %2407 = vmatprep.subr.bf16.mxu0 0
    %2408 = vmatpush1.bf16.msra.mxu0 0
    %2409 = vmatprep.subr.bf16.mxu0 0
    %2410 = vmatpush1.bf16.msra.mxu0 0
    %2411 = vmatprep.subr.bf16.mxu0 0
    %2412 = vmatpush1.bf16.msra.mxu0 0
    %2413 = vmatprep.subr.bf16.mxu0 0
    %2414 = vmatpush1.bf16.msra.mxu0 0
    %2415 = vmatprep.mubr.bf16.mxu0 0
    %2416 = vmatmul.mubr.bf16.gmra.mrb[0].mxu0 %v2367
    %v2417 = vpop.f32.mrb[0].mxu0
    %v2418 = vadd.f32 0.0, %v2417
    %v2419 = vpop.f32.mrb[0].mxu0
    %v2420 = vpop.f32.mrb[0].mxu0
    %v2421 = vadd.f32 0.0, %v2420
    %v2422 = vpop.f32.mrb[0].mxu0
    %2423 = vmatprep.mubr.bf16.mxu0 0
    %2424 = vmatmul.mubr.bf16.gmra.mrb[0].mxu0 %v2368
    %v2425 = vpop.f32.mrb[0].mxu0
    %v2426 = vadd.f32 0.0, %v2425
    %v2427 = vpop.f32.mrb[0].mxu0
    %v2428 = vpop.f32.mrb[0].mxu0
    %v2429 = vadd.f32 0.0, %v2428
    %v2430 = vpop.f32.mrb[0].mxu0
    %2431 = vmatprep.mubr.bf16.mxu0 0
    %2432 = vmatmul.mubr.bf16.gmra.mrb[0].mxu0 %v2369
    %v2433 = vpop.f32.mrb[0].mxu0
    %v2434 = vadd.f32 0.0, %v2433
    %v2435 = vpop.f32.mrb[0].mxu0
    %v2436 = vpop.f32.mrb[0].mxu0
    %v2437 = vadd.f32 0.0, %v2436
    %v2438 = vpop.f32.mrb[0].mxu0
    %2439 = vmatprep.mubr.bf16.mxu0 0
    %2440 = vmatmul.mubr.bf16.gmra.mrb[0].mxu0 %v2370
    %v2441 = vpop.f32.mrb[0].mxu0
    %v2442 = vadd.f32 0.0, %v2441
    %v2443 = vpop.f32.mrb[0].mxu0
    %v2444 = vpop.f32.mrb[0].mxu0
    %v2445 = vadd.f32 0.0, %v2444
    %v2446 = vpop.f32.mrb[0].mxu0
    %2447 = vmatprep.mubr.bf16.mxu0 0
    %2448 = vmatmul.mubr.bf16.gmra.mrb[0].mxu0 %v2371
    %v2449 = vpop.f32.mrb[0].mxu0
    %v2450 = vadd.f32 0.0, %v2449
    %v2451 = vpop.f32.mrb[0].mxu0
    %v2452 = vpop.f32.mrb[0].mxu0
    %v2453 = vadd.f32 0.0, %v2452
    %v2454 = vpop.f32.mrb[0].mxu0
    %2455 = vmatprep.mubr.bf16.mxu0 0
    %2456 = vmatmul.mubr.bf16.gmra.mrb[0].mxu0 %v2372
    %v2457 = vpop.f32.mrb[0].mxu0
    %v2458 = vadd.f32 0.0, %v2457
    %v2459 = vpop.f32.mrb[0].mxu0
    %v2460 = vpop.f32.mrb[0].mxu0
    %v2461 = vadd.f32 0.0, %v2460
    %v2462 = vpop.f32.mrb[0].mxu0
    %2463 = vmatprep.mubr.bf16.mxu0 0
    %2464 = vmatmul.mubr.bf16.gmra.mrb[0].mxu0 %v2373
    %v2465 = vpop.f32.mrb[0].mxu0
    %v2466 = vadd.f32 0.0, %v2465
    %v2467 = vpop.f32.mrb[0].mxu0
    %v2468 = vpop.f32.mrb[0].mxu0
    %v2469 = vadd.f32 0.0, %v2468
    %v2470 = vpop.f32.mrb[0].mxu0
    %2471 = vmatprep.mubr.bf16.mxu0 0
    %2472 = vmatmul.mubr.bf16.gmra.mrb[0].mxu0 %v2374
    %v2473 = vpop.f32.mrb[0].mxu0
    %v2474 = vadd.f32 0.0, %v2473
    %v2475 = vpop.f32.mrb[0].mxu0
    %v2476 = vpop.f32.mrb[0].mxu0
    %v2477 = vadd.f32 0.0, %v2476
    %v2478 = vpop.f32.mrb[0].mxu0
    %2479 = vdwg.mxu0
    %v2480 = vmul.f32 %v2418, %v2234
    %v2481 = vmul.f32 %v2421, %v2239
    %v2482 = vmul.f32 %v2426, %v2244
    %v2483 = vmul.f32 %v2429, %v2249
    %v2484 = vmul.f32 %v2434, %v2254
    %v2485 = vmul.f32 %v2437, %v2259
    %v2486 = vmul.f32 %v2442, %v2264
    %v2487 = vmul.f32 %v2445, %v2269
    %v2488 = vmul.f32 %v2450, %v2274
    %v2489 = vmul.f32 %v2453, %v2279
    %v2490 = vmul.f32 %v2458, %v2284
    %v2491 = vmul.f32 %v2461, %v2289
    %v2492 = vmul.f32 %v2466, %v2294
    %v2493 = vmul.f32 %v2469, %v2299
    %v2494 = vmul.f32 %v2474, %v2304
    %v2495 = vmul.f32 %v2477, %v2309
    %v2497 = vlaneseq
    %v2498 = vshrl.u32 %v2497, 7
    %v2499 = vsub.s32 0, %v2498
    %v2500 = vrot.slane %v2083, %v2499
    %v2502 = vadd.f32 %v2480, %v2500
    %v2503 = vadd.f32 %v2481, %v2500
    %v2504 = vadd.f32 %v2482, %v2500
    %v2505 = vadd.f32 %v2483, %v2500
    %v2506 = vadd.f32 %v2484, %v2500
    %v2507 = vadd.f32 %v2485, %v2500
    %v2508 = vadd.f32 %v2486, %v2500
    %v2509 = vadd.f32 %v2487, %v2500
    %v2510 = vadd.f32 %v2488, %v2500
    %v2511 = vadd.f32 %v2489, %v2500
    %v2512 = vadd.f32 %v2490, %v2500
    %v2513 = vadd.f32 %v2491, %v2500
    %v2514 = vadd.f32 %v2492, %v2500
    %v2515 = vadd.f32 %v2493, %v2500
    %v2516 = vadd.f32 %v2494, %v2500
    %v2517 = vadd.f32 %v2495, %v2500
    %v2518 = vmul.f32 %v2502, %v235
    %v2519 = vmul.f32 %v2503, %v240
    %v2520 = vmul.f32 %v2504, %v245
    %v2521 = vmul.f32 %v2505, %v250
    %v2522 = vmul.f32 %v2506, %v255
    %v2523 = vmul.f32 %v2507, %v260
    %v2524 = vmul.f32 %v2508, %v265
    %v2525 = vmul.f32 %v2509, %v270
    %v2526 = vmul.f32 %v2510, %v275
    %v2527 = vmul.f32 %v2511, %v280
    %v2528 = vmul.f32 %v2512, %v285
    %v2529 = vmul.f32 %v2513, %v290
    %v2530 = vmul.f32 %v2514, %v295
    %v2531 = vmul.f32 %v2515, %v300
    %v2532 = vmul.f32 %v2516, %v305
    %v2533 = vmul.f32 %v2517, %v310
    %v2534 = vadd.f32 %v2518, %v2519
    %v2535 = vadd.f32 %v2534, %v2520
    %v2536 = vadd.f32 %v2535, %v2521
    %v2537 = vadd.f32 %v2536, %v2522
    %v2538 = vadd.f32 %v2537, %v2523
    %v2539 = vadd.f32 %v2538, %v2524
    %v2540 = vadd.f32 %v2539, %v2525
    %v2541 = vadd.f32 %v2540, %v2526
    %v2542 = vadd.f32 %v2541, %v2527
    %v2543 = vadd.f32 %v2542, %v2528
    %v2544 = vadd.f32 %v2543, %v2529
    %v2545 = vadd.f32 %v2544, %v2530
    %v2546 = vadd.f32 %v2545, %v2531
    %v2547 = vadd.f32 %v2546, %v2532
    %v2548 = vadd.f32 %v2547, %v2533
    %v2549 = vrot.slane %v2548, 4
    %v2550 = vadd.f32 %v2548, %v2549
    %v2551 = vrot.slane %v2550, 2
    %v2552 = vadd.f32 %v2550, %v2551
    %v2553 = vrot.slane %v2552, 1
    %v2554 = vadd.f32 %v2552, %v2553
    %v2555 = vmul.f32 %v2554, %v840
    %v2556 = vsub.f32 %v2502, %v2555
    %v2557 = vsub.f32 %v2503, %v2555
    %v2558 = vsub.f32 %v2504, %v2555
    %v2559 = vsub.f32 %v2505, %v2555
    %v2560 = vsub.f32 %v2506, %v2555
    %v2561 = vsub.f32 %v2507, %v2555
    %v2562 = vsub.f32 %v2508, %v2555
    %v2563 = vsub.f32 %v2509, %v2555
    %v2564 = vsub.f32 %v2510, %v2555
    %v2565 = vsub.f32 %v2511, %v2555
    %v2566 = vsub.f32 %v2512, %v2555
    %v2567 = vsub.f32 %v2513, %v2555
    %v2568 = vsub.f32 %v2514, %v2555
    %v2569 = vsub.f32 %v2515, %v2555
    %v2570 = vsub.f32 %v2516, %v2555
    %v2571 = vsub.f32 %v2517, %v2555
    %v2572 = vmul.f32 %v2556, %v235
    %v2573 = vmul.f32 %v2557, %v240
    %v2574 = vmul.f32 %v2558, %v245
    %v2575 = vmul.f32 %v2559, %v250
    %v2576 = vmul.f32 %v2560, %v255
    %v2577 = vmul.f32 %v2561, %v260
    %v2578 = vmul.f32 %v2562, %v265
    %v2579 = vmul.f32 %v2563, %v270
    %v2580 = vmul.f32 %v2564, %v275
    %v2581 = vmul.f32 %v2565, %v280
    %v2582 = vmul.f32 %v2566, %v285
    %v2583 = vmul.f32 %v2567, %v290
    %v2584 = vmul.f32 %v2568, %v295
    %v2585 = vmul.f32 %v2569, %v300
    %v2586 = vmul.f32 %v2570, %v305
    %v2587 = vmul.f32 %v2571, %v310
    %v2588 = vmul.f32 %v2572, %v2572
    %v2589 = vmul.f32 %v2573, %v2573
    %v2590 = vmul.f32 %v2574, %v2574
    %v2591 = vmul.f32 %v2575, %v2575
    %v2592 = vmul.f32 %v2576, %v2576
    %v2593 = vmul.f32 %v2577, %v2577
    %v2594 = vmul.f32 %v2578, %v2578
    %v2595 = vmul.f32 %v2579, %v2579
    %v2596 = vmul.f32 %v2580, %v2580
    %v2597 = vmul.f32 %v2581, %v2581
    %v2598 = vmul.f32 %v2582, %v2582
    %v2599 = vmul.f32 %v2583, %v2583
    %v2600 = vmul.f32 %v2584, %v2584
    %v2601 = vmul.f32 %v2585, %v2585
    %v2602 = vmul.f32 %v2586, %v2586
    %v2603 = vmul.f32 %v2587, %v2587
    %v2604 = vadd.f32 %v2588, %v2589
    %v2605 = vadd.f32 %v2604, %v2590
    %v2606 = vadd.f32 %v2605, %v2591
    %v2607 = vadd.f32 %v2606, %v2592
    %v2608 = vadd.f32 %v2607, %v2593
    %v2609 = vadd.f32 %v2608, %v2594
    %v2610 = vadd.f32 %v2609, %v2595
    %v2611 = vadd.f32 %v2610, %v2596
    %v2612 = vadd.f32 %v2611, %v2597
    %v2613 = vadd.f32 %v2612, %v2598
    %v2614 = vadd.f32 %v2613, %v2599
    %v2615 = vadd.f32 %v2614, %v2600
    %v2616 = vadd.f32 %v2615, %v2601
    %v2617 = vadd.f32 %v2616, %v2602
    %v2618 = vadd.f32 %v2617, %v2603
    %v2619 = vrot.slane %v2618, 4
    %v2620 = vadd.f32 %v2618, %v2619
    %v2621 = vrot.slane %v2620, 2
    %v2622 = vadd.f32 %v2620, %v2621
    %v2623 = vrot.slane %v2622, 1
    %v2624 = vadd.f32 %v2622, %v2623
    %v2625 = vmul.f32 %v2624, %v840
    %v2626 = vadd.f32 %v2625, 1e-05
    %v2627 = vrsqrt.pop %v2626
    %v2628 = vmul.f32 %v2084, %v2627
    %v2630 = vlaneseq
    %v2631 = vshrl.u32 %v2630, 7
    %v2632 = vsub.s32 0, %v2631
    %v2633 = vrot.slane %v2628, %v2632
    %v2635 = vmul.f32 %v2556, %v2633
    %v2636 = vmul.f32 %v2557, %v2633
    %v2637 = vmul.f32 %v2558, %v2633
    %v2638 = vmul.f32 %v2559, %v2633
    %v2639 = vmul.f32 %v2560, %v2633
    %v2640 = vmul.f32 %v2561, %v2633
    %v2641 = vmul.f32 %v2562, %v2633
    %v2642 = vmul.f32 %v2563, %v2633
    %v2643 = vmul.f32 %v2564, %v2633
    %v2644 = vmul.f32 %v2565, %v2633
    %v2645 = vmul.f32 %v2566, %v2633
    %v2646 = vmul.f32 %v2567, %v2633
    %v2647 = vmul.f32 %v2568, %v2633
    %v2648 = vmul.f32 %v2569, %v2633
    %v2649 = vmul.f32 %v2570, %v2633
    %v2650 = vmul.f32 %v2571, %v2633
    %v2652 = vlaneseq
    %v2653 = vshrl.u32 %v2652, 7
    %v2654 = vsub.s32 0, %v2653
    %v2655 = vrot.slane %v2085, %v2654
    %v2657 = vadd.f32 %v2635, %v2655
    %v2658 = vadd.f32 %v2636, %v2655
    %v2659 = vadd.f32 %v2637, %v2655
    %v2660 = vadd.f32 %v2638, %v2655
    %v2661 = vadd.f32 %v2639, %v2655
    %v2662 = vadd.f32 %v2640, %v2655
    %v2663 = vadd.f32 %v2641, %v2655
    %v2664 = vadd.f32 %v2642, %v2655
    %v2665 = vadd.f32 %v2643, %v2655
    %v2666 = vadd.f32 %v2644, %v2655
    %v2667 = vadd.f32 %v2645, %v2655
    %v2668 = vadd.f32 %v2646, %v2655
    %v2669 = vadd.f32 %v2647, %v2655
    %v2670 = vadd.f32 %v2648, %v2655
    %v2671 = vadd.f32 %v2649, %v2655
    %v2672 = vadd.f32 %v2650, %v2655
    %v2673 = vmax.f32 %v2657, 0.0
    %v2674 = vmax.f32 %v2658, 0.0
    %v2675 = vmax.f32 %v2659, 0.0
    %v2676 = vmax.f32 %v2660, 0.0
    %v2677 = vmax.f32 %v2661, 0.0
    %v2678 = vmax.f32 %v2662, 0.0
    %v2679 = vmax.f32 %v2663, 0.0
    %v2680 = vmax.f32 %v2664, 0.0
    %v2681 = vmax.f32 %v2665, 0.0
    %v2682 = vmax.f32 %v2666, 0.0
    %v2683 = vmax.f32 %v2667, 0.0
    %v2684 = vmax.f32 %v2668, 0.0
    %v2685 = vmax.f32 %v2669, 0.0
    %v2686 = vmax.f32 %v2670, 0.0
    %v2687 = vmax.f32 %v2671, 0.0
    %v2688 = vmax.f32 %v2672, 0.0
    %v2689 = vadd.f32 %v2673, %v200
    %v2690 = vadd.f32 %v2674, %v201
    %v2691 = vadd.f32 %v2675, %v202
    %v2692 = vadd.f32 %v2676, %v203
    %v2693 = vadd.f32 %v2677, %v204
    %v2694 = vadd.f32 %v2678, %v205
    %v2695 = vadd.f32 %v2679, %v206
    %v2696 = vadd.f32 %v2680, %v207
    %v2697 = vadd.f32 %v2681, %v208
    %v2698 = vadd.f32 %v2682, %v209
    %v2699 = vadd.f32 %v2683, %v210
    %v2700 = vadd.f32 %v2684, %v211
    %v2701 = vadd.f32 %v2685, %v212
    %v2702 = vadd.f32 %v2686, %v213
    %v2703 = vadd.f32 %v2687, %v214
    %v2704 = vadd.f32 %v2688, %v215
    %v2705 = vld [vmem:[#allocation8] sm:$0xf]
    %v2706 = vld [vmem:[#allocation8 + $0x4] sm:$0xf]
    %v2707 = vpack.c.bf16 %v2020, %v2019
    %v2708 = vpack.c.bf16 %v2690, %v2689
    %v2709 = vpack.c.bf16 %v2022, %v2021
    %v2710 = vpack.c.bf16 %v2692, %v2691
    %v2711 = vpack.c.bf16 %v2024, %v2023
    %v2712 = vpack.c.bf16 %v2694, %v2693
    %v2713 = vpack.c.bf16 %v2026, %v2025
    %v2714 = vpack.c.bf16 %v2696, %v2695
    %v2715 = vpack.c.bf16 %v2028, %v2027
    %v2716 = vpack.c.bf16 %v2698, %v2697
    %v2717 = vpack.c.bf16 %v2030, %v2029
    %v2718 = vpack.c.bf16 %v2700, %v2699
    %v2719 = vpack.c.bf16 %v2032, %v2031
    %v2720 = vpack.c.bf16 %v2702, %v2701
    %v2721 = vpack.c.bf16 %v2034, %v2033
    %v2722 = vpack.c.bf16 %v2704, %v2703
    %v2725 = vunpack.c.l.b16 %v2705
    %v2726 = vunpack.c.l.b16 %v2706
    %v2727 = vpack.c.b16 %v2726, %v2725
    %2729 = vmatprep.subr.bf16.mxu0 %v2708
    %2730 = vmatpush1.bf16.msra.mxu0 %v2707
    %2731 = vmatprep.subr.bf16.mxu0 %v2710
    %2732 = vmatpush1.bf16.msra.mxu0 %v2709
    %2733 = vmatprep.subr.bf16.mxu0 %v2712
    %2734 = vmatpush1.bf16.msra.mxu0 %v2711
    %2735 = vmatprep.subr.bf16.mxu0 %v2714
    %2736 = vmatpush1.bf16.msra.mxu0 %v2713
    %2737 = vmatprep.subr.bf16.mxu0 %v2716
    %2738 = vmatpush1.bf16.msra.mxu0 %v2715
    %2739 = vmatprep.subr.bf16.mxu0 %v2718
    %2740 = vmatpush1.bf16.msra.mxu0 %v2717
    %2741 = vmatprep.subr.bf16.mxu0 %v2720
    %2742 = vmatpush1.bf16.msra.mxu0 %v2719
    %2743 = vmatprep.subr.bf16.mxu0 %v2722
    %2744 = vmatpush1.bf16.msra.mxu0 %v2721
    %2745 = vmatprep.subr.bf16.mxu0 0
    %2746 = vmatpush1.bf16.msra.mxu0 0
    %2747 = vmatprep.subr.bf16.mxu0 0
    %2748 = vmatpush1.bf16.msra.mxu0 0
    %2749 = vmatprep.subr.bf16.mxu0 0
    %2750 = vmatpush1.bf16.msra.mxu0 0
    %2751 = vmatprep.subr.bf16.mxu0 0
    %2752 = vmatpush1.bf16.msra.mxu0 0
    %2753 = vmatprep.subr.bf16.mxu0 0
    %2754 = vmatpush1.bf16.msra.mxu0 0
    %2755 = vmatprep.subr.bf16.mxu0 0
    %2756 = vmatpush1.bf16.msra.mxu0 0
    %2757 = vmatprep.subr.bf16.mxu0 0
    %2758 = vmatpush1.bf16.msra.mxu0 0
    %2759 = vmatprep.subr.bf16.mxu0 0
    %2760 = vmatpush1.bf16.msra.mxu0 0
    %2761 = vmatprep.mubr.bf16.mxu0 0
    %2762 = vmatmul.mubr.bf16.gmra.mrb[0].mxu0 %v2727
    %v2763 = vpop.f32.mrb[0].mxu0
    %v2764 = vadd.f32 0.0, %v2763
    %v2765 = vpop.f32.mrb[0].mxu0
    %v2766 = vadd.f32 0.0, %v2765
    %v2767 = vpop.f32.mrb[0].mxu0
    %v2768 = vadd.f32 0.0, %v2767
    %v2769 = vpop.f32.mrb[0].mxu0
    %v2770 = vadd.f32 0.0, %v2769
    %2771 = vdwg.mxu0
    %v2772 = vld [vmem:[%s8] sm:$0xff]
    %v2773 = vld [vmem:[%s8 + $0x8] sm:$0xff]
    %2775 = vset.pattern.permute.xlu0 0
    %2776 = vperm.xlu0 %2775, %v2772
    %v2777 = vpop.permute.xlu0 %2776
    %2780 = vset.pattern.permute.xlu0 0
    %2781 = vperm.xlu0 %2780, %v2773
    %v2782 = vpop.permute.xlu0 %2781
    %v2784 = vmul.f32 %v2764, %v2777
    %v2785 = vmul.f32 %v2766, %v2777
    %v2786 = vmul.f32 %v2768, %v2782
    %v2787 = vmul.f32 %v2770, %v2782
    %v2788 = vpack.c.bf16 %v2786, %v2784
    %v2789 = vpack.c.bf16 %v2787, %v2785
    %v2790 = vld [vmem:[%s17] sm:$0xf]
    %v2791 = vld [vmem:[%s17 + $0x4] sm:$0xf]
    %v2792 = vld [vmem:[%s17 + $0x8] sm:$0xf]
    %v2793 = vld [vmem:[%s17 + $0xc] sm:$0xf]
    %v2794 = vld [vmem:[%s17 + $0x10] sm:$0xf]
    %v2795 = vld [vmem:[%s17 + $0x14] sm:$0xf]
    %v2796 = vld [vmem:[%s17 + $0x18] sm:$0xf]
    %v2797 = vld [vmem:[%s17 + $0x1c] sm:$0xf]
    %v2798 = vld [vmem:[%s17 + $0x20] sm:$0xf]
    %v2799 = vld [vmem:[%s17 + $0x24] sm:$0xf]
    %v2800 = vld [vmem:[%s17 + $0x28] sm:$0xf]
    %v2801 = vld [vmem:[%s17 + $0x2c] sm:$0xf]
    %v2802 = vld [vmem:[%s17 + $0x30] sm:$0xf]
    %v2803 = vld [vmem:[%s17 + $0x34] sm:$0xf]
    %v2804 = vld [vmem:[%s17 + $0x38] sm:$0xf]
    %v2805 = vld [vmem:[%s17 + $0x3c] sm:$0xf]
    %v2806 = vld [vmem:[%s17 + $0x40] sm:$0xf]
    %v2807 = vld [vmem:[%s17 + $0x44] sm:$0xf]
    %v2808 = vld [vmem:[%s17 + $0x48] sm:$0xf]
    %v2809 = vld [vmem:[%s17 + $0x4c] sm:$0xf]
    %v2810 = vld [vmem:[%s17 + $0x50] sm:$0xf]
    %v2811 = vld [vmem:[%s17 + $0x54] sm:$0xf]
    %v2812 = vld [vmem:[%s17 + $0x58] sm:$0xf]
    %v2813 = vld [vmem:[%s17 + $0x5c] sm:$0xf]
    %v2814 = vld [vmem:[%s17 + $0x60] sm:$0xf]
    %v2815 = vld [vmem:[%s17 + $0x64] sm:$0xf]
    %v2816 = vld [vmem:[%s17 + $0x68] sm:$0xf]
    %v2817 = vld [vmem:[%s17 + $0x6c] sm:$0xf]
    %v2818 = vld [vmem:[%s17 + $0x70] sm:$0xf]
    %v2819 = vld [vmem:[%s17 + $0x74] sm:$0xf]
    %v2820 = vld [vmem:[%s17 + $0x78] sm:$0xf]
    %v2821 = vld [vmem:[%s17 + $0x7c] sm:$0xf]
    %v2822 = vld [vmem:[%s18] sm:$0x1]
    %v2824 = vlaneseq
    %v2825 = vshrl.u32 %v2824, 7
    %v2826 = vsub.s32 0, %v2825
    %v2827 = vrot.slane %v2822, %v2826
    %v2861 = vunpack.c.l.b16 %v2790
    %v2862 = vunpack.c.l.b16 %v2791
    %v2863 = vunpack.c.l.b16 %v2792
    %v2864 = vunpack.c.l.b16 %v2793
    %v2865 = vunpack.c.l.b16 %v2794
    %v2866 = vunpack.c.l.b16 %v2795
    %v2867 = vunpack.c.l.b16 %v2796
    %v2868 = vunpack.c.l.b16 %v2797
    %v2869 = vunpack.c.l.b16 %v2798
    %v2870 = vunpack.c.l.b16 %v2799
    %v2871 = vunpack.c.l.b16 %v2800
    %v2872 = vunpack.c.l.b16 %v2801
    %v2873 = vunpack.c.l.b16 %v2802
    %v2874 = vunpack.c.l.b16 %v2803
    %v2875 = vunpack.c.l.b16 %v2804
    %v2876 = vunpack.c.l.b16 %v2805
    %v2877 = vunpack.c.l.b16 %v2806
    %v2878 = vunpack.c.l.b16 %v2807
    %v2879 = vunpack.c.l.b16 %v2808
    %v2880 = vunpack.c.l.b16 %v2809
    %v2881 = vunpack.c.l.b16 %v2810
    %v2882 = vunpack.c.l.b16 %v2811
    %v2883 = vunpack.c.l.b16 %v2812
    %v2884 = vunpack.c.l.b16 %v2813
    %v2885 = vunpack.c.l.b16 %v2814
    %v2886 = vunpack.c.l.b16 %v2815
    %v2887 = vunpack.c.l.b16 %v2816
    %v2888 = vunpack.c.l.b16 %v2817
    %v2889 = vunpack.c.l.b16 %v2818
    %v2890 = vunpack.c.l.b16 %v2819
    %v2891 = vunpack.c.l.b16 %v2820
    %v2892 = vunpack.c.l.b16 %v2821
    %v2893 = vpack.c.b16 %v2862, %v2861
    %v2894 = vpack.c.b16 %v2864, %v2863
    %v2895 = vpack.c.b16 %v2866, %v2865
    %v2896 = vpack.c.b16 %v2868, %v2867
    %v2897 = vpack.c.b16 %v2870, %v2869
    %v2898 = vpack.c.b16 %v2872, %v2871
    %v2899 = vpack.c.b16 %v2874, %v2873
    %v2900 = vpack.c.b16 %v2876, %v2875
    %v2901 = vpack.c.b16 %v2878, %v2877
    %v2902 = vpack.c.b16 %v2880, %v2879
    %v2903 = vpack.c.b16 %v2882, %v2881
    %v2904 = vpack.c.b16 %v2884, %v2883
    %v2905 = vpack.c.b16 %v2886, %v2885
    %v2906 = vpack.c.b16 %v2888, %v2887
    %v2907 = vpack.c.b16 %v2890, %v2889
    %v2908 = vpack.c.b16 %v2892, %v2891
    %2925 = vmatprep.subr.bf16.mxu0 0
    %2926 = vmatpush1.bf16.msra.mxu0 %v2893
    %2927 = vmatprep.subr.bf16.mxu0 0
    %2928 = vmatpush1.bf16.msra.mxu0 %v2894
    %2929 = vmatprep.subr.bf16.mxu0 0
    %2930 = vmatpush1.bf16.msra.mxu0 %v2895
    %2931 = vmatprep.subr.bf16.mxu0 0
    %2932 = vmatpush1.bf16.msra.mxu0 %v2896
    %2933 = vmatprep.subr.bf16.mxu0 0
    %2934 = vmatpush1.bf16.msra.mxu0 %v2897
    %2935 = vmatprep.subr.bf16.mxu0 0
    %2936 = vmatpush1.bf16.msra.mxu0 %v2898
    %2937 = vmatprep.subr.bf16.mxu0 0
    %2938 = vmatpush1.bf16.msra.mxu0 %v2899
    %2939 = vmatprep.subr.bf16.mxu0 0
    %2940 = vmatpush1.bf16.msra.mxu0 %v2900
    %2941 = vmatprep.subr.bf16.mxu0 0
    %2942 = vmatpush1.bf16.msra.mxu0 %v2901
    %2943 = vmatprep.subr.bf16.mxu0 0
    %2944 = vmatpush1.bf16.msra.mxu0 %v2902
    %2945 = vmatprep.subr.bf16.mxu0 0
    %2946 = vmatpush1.bf16.msra.mxu0 %v2903
    %2947 = vmatprep.subr.bf16.mxu0 0
    %2948 = vmatpush1.bf16.msra.mxu0 %v2904
    %2949 = vmatprep.subr.bf16.mxu0 0
    %2950 = vmatpush1.bf16.msra.mxu0 %v2905
    %2951 = vmatprep.subr.bf16.mxu0 0
    %2952 = vmatpush1.bf16.msra.mxu0 %v2906
    %2953 = vmatprep.subr.bf16.mxu0 0
    %2954 = vmatpush1.bf16.msra.mxu0 %v2907
    %2955 = vmatprep.subr.bf16.mxu0 0
    %2956 = vmatpush1.bf16.msra.mxu0 %v2908
    %2957 = vmatprep.mubr.bf16.mxu0 %v2789
    %2958 = vmatmul.mubr.bf16.gmra.mrb[0].mxu0 %v2788
    %v2959 = vpop.f32.mrb[0].mxu0
    %v2960 = vadd.f32 %v2827, %v2959
    %v2961 = vpop.f32.mrb[0].mxu0
    %v2962 = vpop.f32.mrb[0].mxu0
    %v2963 = vadd.f32 %v2827, %v2962
    %v2964 = vpop.f32.mrb[0].mxu0
    %2965 = vdwg.mxu0
    %v2966 = vmax.f32 %v2960, 0.0
    %v2967 = vmax.f32 %v2963, 0.0
    %v2968 = vpack.c.bf16 %v2967, %v2966
    %v2969 = vld [vmem:[#allocation15] sm:$0xf]
    %v2970 = vld [vmem:[#allocation15 + $0x4] sm:$0xf]
    %v2971 = vld [vmem:[#allocation15 + $0x8] sm:$0xf]
    %v2972 = vld [vmem:[#allocation15 + $0xc] sm:$0xf]
    %v2973 = vld [vmem:[#allocation15 + $0x10] sm:$0xf]
    %v2974 = vld [vmem:[#allocation15 + $0x14] sm:$0xf]
    %v2975 = vld [vmem:[#allocation15 + $0x18] sm:$0xf]
    %v2976 = vld [vmem:[#allocation15 + $0x1c] sm:$0xf]
    %v2977 = vld [vmem:[#allocation15 + $0x20] sm:$0xf]
    %v2978 = vld [vmem:[#allocation15 + $0x24] sm:$0xf]
    %v2979 = vld [vmem:[#allocation15 + $0x28] sm:$0xf]
    %v2980 = vld [vmem:[#allocation15 + $0x2c] sm:$0xf]
    %v2981 = vld [vmem:[#allocation15 + $0x30] sm:$0xf]
    %v2982 = vld [vmem:[#allocation15 + $0x34] sm:$0xf]
    %v2983 = vld [vmem:[#allocation15 + $0x38] sm:$0xf]
    %v2984 = vld [vmem:[#allocation15 + $0x3c] sm:$0xf]
    %v2985 = vld [vmem:[%s20] sm:$0x1]
    %v2987 = vlaneseq
    %v2988 = vshrl.u32 %v2987, 7
    %v2989 = vsub.s32 0, %v2988
    %v2990 = vrot.slane %v2985, %v2989
    %v3008 = vunpack.c.l.b16 %v2969
    %v3009 = vunpack.c.l.b16 %v2970
    %v3010 = vunpack.c.l.b16 %v2971
    %v3011 = vunpack.c.l.b16 %v2972
    %v3012 = vunpack.c.l.b16 %v2973
    %v3013 = vunpack.c.l.b16 %v2974
    %v3014 = vunpack.c.l.b16 %v2975
    %v3015 = vunpack.c.l.b16 %v2976
    %v3016 = vunpack.c.l.b16 %v2977
    %v3017 = vunpack.c.l.b16 %v2978
    %v3018 = vunpack.c.l.b16 %v2979
    %v3019 = vunpack.c.l.b16 %v2980
    %v3020 = vunpack.c.l.b16 %v2981
    %v3021 = vunpack.c.l.b16 %v2982
    %v3022 = vunpack.c.l.b16 %v2983
    %v3023 = vunpack.c.l.b16 %v2984
    %v3024 = vpack.c.b16 %v3009, %v3008
    %v3025 = vpack.c.b16 %v3011, %v3010
    %v3026 = vpack.c.b16 %v3013, %v3012
    %v3027 = vpack.c.b16 %v3015, %v3014
    %v3028 = vpack.c.b16 %v3017, %v3016
    %v3029 = vpack.c.b16 %v3019, %v3018
    %v3030 = vpack.c.b16 %v3021, %v3020
    %v3031 = vpack.c.b16 %v3023, %v3022
    %3040 = vmatprep.subr.bf16.mxu0 0
    %3041 = vmatpush1.bf16.msra.mxu0 %v3024
    %3042 = vmatprep.subr.bf16.mxu0 0
    %3043 = vmatpush1.bf16.msra.mxu0 %v3025
    %3044 = vmatprep.subr.bf16.mxu0 0
    %3045 = vmatpush1.bf16.msra.mxu0 %v3026
    %3046 = vmatprep.subr.bf16.mxu0 0
    %3047 = vmatpush1.bf16.msra.mxu0 %v3027
    %3048 = vmatprep.subr.bf16.mxu0 0
    %3049 = vmatpush1.bf16.msra.mxu0 %v3028
    %3050 = vmatprep.subr.bf16.mxu0 0
    %3051 = vmatpush1.bf16.msra.mxu0 %v3029
    %3052 = vmatprep.subr.bf16.mxu0 0
    %3053 = vmatpush1.bf16.msra.mxu0 %v3030
    %3054 = vmatprep.subr.bf16.mxu0 0
    %3055 = vmatpush1.bf16.msra.mxu0 %v3031
    %3056 = vmatprep.subr.bf16.mxu0 0
    %3057 = vmatpush1.bf16.msra.mxu0 0
    %3058 = vmatprep.subr.bf16.mxu0 0
    %3059 = vmatpush1.bf16.msra.mxu0 0
    %3060 = vmatprep.subr.bf16.mxu0 0
    %3061 = vmatpush1.bf16.msra.mxu0 0
    %3062 = vmatprep.subr.bf16.mxu0 0
    %3063 = vmatpush1.bf16.msra.mxu0 0
    %3064 = vmatprep.subr.bf16.mxu0 0
    %3065 = vmatpush1.bf16.msra.mxu0 0
    %3066 = vmatprep.subr.bf16.mxu0 0
    %3067 = vmatpush1.bf16.msra.mxu0 0
    %3068 = vmatprep.subr.bf16.mxu0 0
    %3069 = vmatpush1.bf16.msra.mxu0 0
    %3070 = vmatprep.subr.bf16.mxu0 0
    %3071 = vmatpush1.bf16.msra.mxu0 0
    %3072 = vmatprep.mubr.bf16.mxu0 0
    %3073 = vmatmul.mubr.bf16.gmra.mrb[0].mxu0 %v2968
    %v3074 = vpop.f32.mrb[0].mxu0
    %v3075 = vadd.f32 %v2990, %v3074
    %v3076 = vpop.f32.mrb[0].mxu0
    %v3077 = vpop.f32.mrb[0].mxu0
    %v3078 = vadd.f32 %v2990, %v3077
    %v3079 = vpop.f32.mrb[0].mxu0
    %3080 = vdwg.mxu0
    %v3081 = vmax.f32 %v3075, 0.0
    %v3082 = vmax.f32 %v3078, 0.0
    %v3083 = vpack.c.bf16 %v3082, %v3081
    %v3084 = vld [vmem:[#allocation17] sm:$0xf]
    %v3085 = vld [vmem:[#allocation17 + $0x4] sm:$0xf]
    %v3086 = vld [vmem:[#allocation17 + $0x8] sm:$0xf]
    %v3087 = vld [vmem:[#allocation17 + $0xc] sm:$0xf]
    %v3088 = vld [vmem:[#allocation17 + $0x10] sm:$0xf]
    %v3089 = vld [vmem:[#allocation17 + $0x14] sm:$0xf]
    %v3090 = vld [vmem:[#allocation17 + $0x18] sm:$0xf]
    %v3091 = vld [vmem:[#allocation17 + $0x1c] sm:$0xf]
    %v3092 = vld [vmem:[#allocation17 + $0x20] sm:$0xf]
    %v3093 = vld [vmem:[#allocation17 + $0x24] sm:$0xf]
    %v3094 = vld [vmem:[#allocation17 + $0x28] sm:$0xf]
    %v3095 = vld [vmem:[#allocation17 + $0x2c] sm:$0xf]
    %v3096 = vld [vmem:[#allocation17 + $0x30] sm:$0xf]
    %v3097 = vld [vmem:[#allocation17 + $0x34] sm:$0xf]
    %v3098 = vld [vmem:[#allocation17 + $0x38] sm:$0xf]
    %v3099 = vld [vmem:[#allocation17 + $0x3c] sm:$0xf]
    %v3100 = vld [vmem:[%s22] sm:$0x1]
    %v3102 = vlaneseq
    %v3103 = vshrl.u32 %v3102, 7
    %v3104 = vsub.s32 0, %v3103
    %v3105 = vrot.slane %v3100, %v3104
    %v3123 = vunpack.c.l.b16 %v3084
    %v3124 = vunpack.c.l.b16 %v3085
    %v3125 = vunpack.c.l.b16 %v3086
    %v3126 = vunpack.c.l.b16 %v3087
    %v3127 = vunpack.c.l.b16 %v3088
    %v3128 = vunpack.c.l.b16 %v3089
    %v3129 = vunpack.c.l.b16 %v3090
    %v3130 = vunpack.c.l.b16 %v3091
    %v3131 = vunpack.c.l.b16 %v3092
    %v3132 = vunpack.c.l.b16 %v3093
    %v3133 = vunpack.c.l.b16 %v3094
    %v3134 = vunpack.c.l.b16 %v3095
    %v3135 = vunpack.c.l.b16 %v3096
    %v3136 = vunpack.c.l.b16 %v3097
    %v3137 = vunpack.c.l.b16 %v3098
    %v3138 = vunpack.c.l.b16 %v3099
    %v3139 = vpack.c.b16 %v3124, %v3123
    %v3140 = vpack.c.b16 %v3126, %v3125
    %v3141 = vpack.c.b16 %v3128, %v3127
    %v3142 = vpack.c.b16 %v3130, %v3129
    %v3143 = vpack.c.b16 %v3132, %v3131
    %v3144 = vpack.c.b16 %v3134, %v3133
    %v3145 = vpack.c.b16 %v3136, %v3135
    %v3146 = vpack.c.b16 %v3138, %v3137
    %3155 = vmatprep.subr.bf16.mxu0 0
    %3156 = vmatpush1.bf16.msra.mxu0 %v3139
    %3157 = vmatprep.subr.bf16.mxu0 0
    %3158 = vmatpush1.bf16.msra.mxu0 %v3140
    %3159 = vmatprep.subr.bf16.mxu0 0
    %3160 = vmatpush1.bf16.msra.mxu0 %v3141
    %3161 = vmatprep.subr.bf16.mxu0 0
    %3162 = vmatpush1.bf16.msra.mxu0 %v3142
    %3163 = vmatprep.subr.bf16.mxu0 0
    %3164 = vmatpush1.bf16.msra.mxu0 %v3143
    %3165 = vmatprep.subr.bf16.mxu0 0
    %3166 = vmatpush1.bf16.msra.mxu0 %v3144
    %3167 = vmatprep.subr.bf16.mxu0 0
    %3168 = vmatpush1.bf16.msra.mxu0 %v3145
    %3169 = vmatprep.subr.bf16.mxu0 0
    %3170 = vmatpush1.bf16.msra.mxu0 %v3146
    %3171 = vmatprep.subr.bf16.mxu0 0
    %3172 = vmatpush1.bf16.msra.mxu0 0
    %3173 = vmatprep.subr.bf16.mxu0 0
    %3174 = vmatpush1.bf16.msra.mxu0 0
    %3175 = vmatprep.subr.bf16.mxu0 0
    %3176 = vmatpush1.bf16.msra.mxu0 0
    %3177 = vmatprep.subr.bf16.mxu0 0
    %3178 = vmatpush1.bf16.msra.mxu0 0
    %3179 = vmatprep.subr.bf16.mxu0 0
    %3180 = vmatpush1.bf16.msra.mxu0 0
    %3181 = vmatprep.subr.bf16.mxu0 0
    %3182 = vmatpush1.bf16.msra.mxu0 0
    %3183 = vmatprep.subr.bf16.mxu0 0
    %3184 = vmatpush1.bf16.msra.mxu0 0
    %3185 = vmatprep.subr.bf16.mxu0 0
    %3186 = vmatpush1.bf16.msra.mxu0 0
    %3187 = vmatprep.mubr.bf16.mxu0 0
    %3188 = vmatmul.mubr.bf16.gmra.mrb[0].mxu0 %v3083
    %v3189 = vpop.f32.mrb[0].mxu0
    %v3190 = vadd.f32 %v3105, %v3189
    %v3191 = vpop.f32.mrb[0].mxu0
    %v3192 = vpop.f32.mrb[0].mxu0
    %v3193 = vadd.f32 %v3105, %v3192
    %v3194 = vpop.f32.mrb[0].mxu0
    %3195 = vdwg.mxu0
    %3196 = vst [vmem:[#allocation18] sm:$0xff] %v3190
    %3197 = vst [vmem:[#allocation18 + $0x8] sm:$0xff] %v3193
    // Predicated region
    $region130: #{tpu_custom_call.1} parent=1 // pred_check
      _
    $region131: #{tpu_custom_call.1} parent=1 // pred_check_branch
      %3199 = sbr.rel (0) target = $region133
    $region132: #{tpu_custom_call.1} parent=1 // pred_region
      %s3201 = ssub.s32 256, 256
      %3202 = vsyncadd [#allocation5], %s3201
      %s3203 = sshll.u32 [#allocation18], 4
      %s3204 = int_to_ptr.vmem [resolvable:$true] %s3203
      %3209 = dma.vmem_to_hbm [thread:$0]  %s3204, 256, %s23, [#allocation5], 128, 128, 8
    $region133: #{tpu_custom_call.1} parent=1 // pred_fallthru
      _
    // Predicated region
    $region134: #{tpu_custom_call.1} parent=1 // pred_check
      _
    $region135: #{tpu_custom_call.1} parent=1 // pred_check_branch
      %3211 = sbr.rel (0) target = $region137
    $region136: #{tpu_custom_call.1} parent=1 // pred_region
      %3212 = dma.done [#allocation5], 256
    $region137: #{tpu_custom_call.1} parent=1 // pred_fallthru
      _
    %3213 = vsyncpa [#allocation4], 1
    %3214 = vsyncpa [#allocation7], 1
    %3215 = vsyncpa [#allocation10], 1
    %3216 = vsyncpa [#allocation13], 1
    %3217 = vsyncpa [#allocation16], 1
    %3218 = vsyncpa [#allocation5], 1

</llo_original>
